<compile_context>
chip_gen: v6e
topology: v6e:2x2x1
jax: 0.10.0
libtpu: 0.0.40
codegen_flags: <defaults>
</compile_context>

<pallas_src>
from functools import partial

import jax
import jax.numpy as jnp
from jax import lax
from jax.experimental import pallas as pl
from jax.experimental.pallas import tpu as pltpu


def _round_up(v, m):
    return -(-v // m) * m


def _fused_kernel(cols_ref, w1_ref, b1_ref, w2_ref, b2_ref, skip_ref, o_ref):
    R1, TB, CKKp = cols_ref.shape
    G = w1_ref.shape[1]

    # ---- conv1 (k=5, s=3, p=3): one MXU matmul over this batch tile's im2col
    #      rows (row order (r, b_local)), bias + ReLU fused.
    y1 = jnp.dot(cols_ref[...].reshape(R1 * TB, CKKp), w1_ref[...],
                 preferred_element_type=jnp.float32)              # (R1*TB, G)
    y1 = jnp.maximum(y1 + b1_ref[...], 0.0)
    y1 = y1.reshape(R1, TB, G).astype(w2_ref.dtype)               # (R1, TB, G)

    # ---- conv2 (kernel == full H1 x W1 extent -> 1x1 output) on the MXU:
    #      batched matmul over the spatial axis r (batch dim), contracting
    #      g_in, then a cheap f32 reduction over r.
    part = lax.dot_general(
        y1, w2_ref[...],
        dimension_numbers=(((2,), (1,)), ((0,), (0,))),
        preferred_element_type=jnp.float32)                       # (R1, TB, G)
    conv = jnp.sum(part, axis=0) + b2_ref[...]                    # (TB, G)

    # ---- skip path was precomputed in the wrapper as a tiny (TB, G) tile.
    o_ref[...] = (conv + skip_ref[...]).astype(o_ref.dtype)


@partial(jax.jit, static_argnums=(5,), static_argnames=("matmul_dtype", "batch_tile"))
def aggressive_conv_to_gestalt(x, w1, b1, w2, b2, gestalt_size, *,
                               matmul_dtype=jnp.bfloat16, batch_tile=None):
    B, C, H, W = x.shape
    G = gestalt_size
    K, S, P = 5, 3, 3
    assert G % C == 0 or C % G == 0, "mirrors the PyTorch module's assert"
    H1 = (H + 2 * P - K) // S + 1          # == (H+1)//3 + 1 for k=5, s=3, p=3
    W1 = (W + 2 * P - K) // S + 1
    assert w1.shape == (G, C, K, K)
    assert w2.shape == (G, G, H1, W1)
    R1 = H1 * W1
    CKK = C * K * K
    CKKp = _round_up(CKK, 128)             # pad contraction dim to full lanes only

    # ---- batch tile: multiple of 16 (bf16 sublane packing of the im2col rows),
    #      large enough that TB*R1 feeds the MXU M axis, split so the grid has
    #      >= 2 steps when the batch allows it (megacore sharding).
    if batch_tile is None:
        batch_tile = max(16, _round_up(-(-512 // R1), 16))
    TB = _round_up(max(1, min(batch_tile, B)), 16)
    if TB < B < 2 * TB:
        TB = _round_up(-(-B // 2), 16)     # split an awkward remainder evenly
    Bp = _round_up(B, TB)
    grid = (Bp // TB,)

    exact = (jnp.dtype(matmul_dtype) == jnp.dtype(jnp.float32))
    patch_prec = lax.Precision.HIGHEST if exact else lax.Precision.DEFAULT

    # ---- im2col: ONE fused XLA op (exact 0/1 identity kernel).  Feature order
    #      is (c, kh, kw), matching w1.reshape(G, C*K*K).
    # TODO(synk): build the im2col tile in-kernel from a raw (TB, C, H, W)
    # block (memory_space=pl.ANY + strided slices) to avoid the HBM-materialized
    # cols buffer -- the biggest remaining bandwidth lever on v5e/v6e.
    patches = lax.conv_general_dilated_patches(
        x, filter_shape=(K, K), window_strides=(S, S),
        padding=((P, P), (P, P)),
        dimension_numbers=("NCHW", "OIHW", "NHWC"),
        precision=patch_prec)                                # (B, H1, W1, CKK)
    cols = patches.reshape(B, R1, CKK)
    cols = jnp.pad(cols, ((0, Bp - B), (0, 0), (0, CKKp - CKK)))
    cols = cols.transpose(1, 0, 2).astype(matmul_dtype)      # (R1, Bp, CKKp)

    # conv1 weight as (CKKp, G) matmul operand (zero-padded contraction rows).
    w1mat = jnp.pad(w1.reshape(G, CKK).T, ((0, CKKp - CKK), (0, 0)))
    w1mat = w1mat.astype(matmul_dtype)
    b1r = b1.reshape(1, G).astype(jnp.float32)

    # conv2 weight as (R1, G_in, G_out): batched-matmul operand, NOT replicated
    # over the batch tile; resident in VMEM via a constant index map.
    w2r = w2.reshape(G, G, R1).transpose(2, 1, 0).astype(matmul_dtype)
    b2r = b2.reshape(1, G).astype(jnp.float32)

    # ---- skip path: spatial mean + channel repeat / group-mean, done in XLA
    #      on a tiny (B, G) tensor so the kernel never re-reads x.
    meanx = jnp.mean(x.astype(jnp.float32), axis=(2, 3))     # (B, C)
    if G >= C:
        skip = jnp.repeat(meanx, G // C, axis=1)              # (B, G)
    else:
        n = C // G
        skip = meanx.reshape(B, G, n).mean(axis=2)            # (B, G)
    skip = jnp.pad(skip, ((0, Bp - B), (0, 0)))

    itemsize = jnp.dtype(matmul_dtype).itemsize
    cost = pl.CostEstimate(
        flops=2 * Bp * R1 * CKKp * G + 2 * Bp * R1 * G * G,
        transcendentals=0,
        bytes_accessed=(cols.size * itemsize + w1mat.size * itemsize
                        + w2r.size * itemsize + 2 * Bp * G * 4 + 2 * G * 4))

    out = pl.pallas_call(
        _fused_kernel,
        out_shape=jax.ShapeDtypeStruct((Bp, G), jnp.float32),
        grid_spec=pltpu.PrefetchScalarGridSpec(
            num_scalar_prefetch=0,
            grid=grid,
            in_specs=[
                pl.BlockSpec((R1, TB, CKKp), lambda i: (0, i, 0)),  # im2col tile
                pl.BlockSpec((CKKp, G), lambda i: (0, 0)),          # w1 (resident)
                pl.BlockSpec((1, G), lambda i: (0, 0)),             # b1
                pl.BlockSpec((R1, G, G), lambda i: (0, 0, 0)),      # w2 (resident)
                pl.BlockSpec((1, G), lambda i: (0, 0)),             # b2
                pl.BlockSpec((TB, G), lambda i: (i, 0)),            # skip (tiled)
            ],
            out_specs=pl.BlockSpec((TB, G), lambda i: (i, 0)),
        ),
        compiler_params=pltpu.CompilerParams(
            dimension_semantics=("parallel",)),
        cost_estimate=cost,
    )(cols, w1mat, b1r, w2r, b2r, skip)

    return out[:B].reshape(B, G, 1, 1)


def reference(x, w1, b1, w2, b2, G):
    """Pure-JAX reference matching the PyTorch module."""
    prec = lax.Precision.HIGHEST
    y = lax.conv_general_dilated(x, w1, (3, 3), ((3, 3), (3, 3)),
                                 dimension_numbers=("NCHW", "OIHW", "NCHW"),
                                 precision=prec)
    y = jnp.maximum(y + b1.reshape(1, -1, 1, 1), 0.0)
    y = lax.conv_general_dilated(y, w2, (1, 1), "VALID",
                                 dimension_numbers=("NCHW", "OIHW", "NCHW"),
                                 precision=prec)
    y = y + b2.reshape(1, -1, 1, 1)
    B, C, H, W = x.shape
    if G >= C:
        skip = jnp.mean(x, axis=(2, 3), keepdims=True)
        skip = jnp.repeat(skip, G // C, axis=1)
    else:
        n = C // G
        skip = x.reshape(B, G, n, H, W).mean(axis=(2, 3, 4)).reshape(B, G, 1, 1)
    return skip + y


if __name__ == "__main__":
    key = jax.random.PRNGKey(0)
    B, C, G = 2, 4, 8          # channels=4, gestalt_size=8 (gestalt % channels == 0)
    H = W = 16                 # size=(16, 16)
    H1 = (H + 1) // 3 + 1      # conv1 output spatial == second conv kernel size
    W1 = (W + 1) // 3 + 1

    k = jax.random.split(key, 5)
    x = jax.random.normal(k[0], (B, C, H, W), jnp.float32)
    w1 = jax.random.normal(k[1], (G, C, 5, 5), jnp.float32) * 0.1
    b1 = jax.random.normal(k[2], (G,), jnp.float32) * 0.1
    w2 = jax.random.normal(k[3], (G, G, H1, W1), jnp.float32) * 0.05
    b2 = jax.random.normal(k[4], (G,), jnp.float32) * 0.1

    ref = jax.block_until_ready(reference(x, w1, b1, w2, b2, G))

    # exact-math path (f32 MXU operands, f32 accumulation)
    out_f32 = jax.block_until_ready(
        aggressive_conv_to_gestalt(x, w1, b1, w2, b2, G,
                                   matmul_dtype=jnp.float32))
    assert out_f32.shape == (B, G, 1, 1), out_f32.shape
    err32 = float(jnp.max(jnp.abs(out_f32 - ref)))
    assert jnp.allclose(out_f32, ref, atol=5e-4, rtol=5e-4), err32

    # default fast path: bf16 MXU operands, f32 accumulation
    out_bf16 = jax.block_until_ready(
        aggressive_conv_to_gestalt(x, w1, b1, w2, b2, G,
                                   matmul_dtype=jnp.bfloat16))
    assert out_bf16.shape == (B, G, 1, 1), out_bf16.shape
    err16 = float(jnp.max(jnp.abs(out_bf16 - ref)))
    assert jnp.allclose(out_bf16, ref, atol=5e-2, rtol=5e-2), err16

    print("KERNEL_OK")
</pallas_src>

<mosaic_0001>
module attributes {stable_mosaic.version = 11 : i64} {
  func.func @_fused_kernel(%arg0: i32, %arg1: memref<36x16x128xf32, #tpu.memory_space<vmem>>, %arg2: memref<128x8xf32, #tpu.memory_space<vmem>>, %arg3: memref<1x8xf32, #tpu.memory_space<vmem>>, %arg4: memref<36x8x8xf32, #tpu.memory_space<vmem>>, %arg5: memref<1x8xf32, #tpu.memory_space<vmem>>, %arg6: memref<16x8xf32, #tpu.memory_space<vmem>>, %arg7: memref<16x8xf32, #tpu.memory_space<vmem>>) attributes {dimension_semantics = [#tpu.dimension_semantics<parallel>], iteration_bounds = array<i64: 1>, scalar_prefetch = 0 : i64, scratch_operands = 0 : i64, tpu.core_type = #tpu.core_type<tc>, window_params = [{transform_indices = @transform_0, window_bounds = array<i64: 36, 16, 128>}, {pipeline_mode = #tpu.pipeline_mode<synchronous>, transform_indices = @transform_1, window_bounds = array<i64: 128, 8>}, {pipeline_mode = #tpu.pipeline_mode<synchronous>, transform_indices = @transform_2, window_bounds = array<i64: 1, 8>}, {pipeline_mode = #tpu.pipeline_mode<synchronous>, transform_indices = @transform_3, window_bounds = array<i64: 36, 8, 8>}, {pipeline_mode = #tpu.pipeline_mode<synchronous>, transform_indices = @transform_4, window_bounds = array<i64: 1, 8>}, {transform_indices = @transform_5, window_bounds = array<i64: 16, 8>}, {transform_indices = @transform_6, window_bounds = array<i64: 16, 8>}]} {
    %c0 = arith.constant 0 : index
    %c0_0 = arith.constant 0 : index
    %c0_1 = arith.constant 0 : index
    %0 = vector.load %arg1[%c0, %c0_0, %c0_1] : memref<36x16x128xf32, #tpu.memory_space<vmem>>, vector<36x16x128xf32>
    %1 = vector.shape_cast %0 : vector<36x16x128xf32> to vector<576x128xf32>
    %c0_2 = arith.constant 0 : index
    %c0_3 = arith.constant 0 : index
    %2 = vector.load %arg2[%c0_2, %c0_3] : memref<128x8xf32, #tpu.memory_space<vmem>>, vector<128x8xf32>
    %cst = arith.constant dense<0.000000e+00> : vector<576x8xf32>
    %3 = tpu.matmul %1, %2, %cst {dimension_numbers = #tpu.dot_dimension_numbers<[1], [0], [0], [1], [0, 0, 1, 1], [], []>} : vector<576x128xf32>, vector<128x8xf32>, vector<576x8xf32> -> vector<576x8xf32>
    %c0_4 = arith.constant 0 : index
    %c0_5 = arith.constant 0 : index
    %4 = vector.load %arg3[%c0_4, %c0_5] : memref<1x8xf32, #tpu.memory_space<vmem>>, vector<1x8xf32>
    %5 = vector.broadcast %4 : vector<1x8xf32> to vector<576x8xf32>
    %6 = arith.addf %3, %5 : vector<576x8xf32>
    %cst_6 = arith.constant 0.000000e+00 : f32
    %7 = vector.broadcast %cst_6 : f32 to vector<576x8xf32>
    %8 = arith.maximumf %6, %7 : vector<576x8xf32>
    %9 = vector.shape_cast %8 : vector<576x8xf32> to vector<36x16x8xf32>
    %c0_7 = arith.constant 0 : index
    %c0_8 = arith.constant 0 : index
    %c0_9 = arith.constant 0 : index
    %10 = vector.load %arg4[%c0_7, %c0_8, %c0_9] : memref<36x8x8xf32, #tpu.memory_space<vmem>>, vector<36x8x8xf32>
    %cst_10 = arith.constant dense<0.000000e+00> : vector<36x16x8xf32>
    %11 = tpu.matmul %9, %10, %cst_10 {dimension_numbers = #tpu.dot_dimension_numbers<[2], [1], [1], [2], [0, 0, 0, 1, 1, 2], [0], [0]>} : vector<36x16x8xf32>, vector<36x8x8xf32>, vector<36x16x8xf32> -> vector<36x16x8xf32>
    %cst_11 = arith.constant dense<0.000000e+00> : vector<16x8xf32>
    %12 = vector.multi_reduction <add>, %11, %cst_11 [0] : vector<36x16x8xf32> to vector<16x8xf32>
    %c0_12 = arith.constant 0 : index
    %c0_13 = arith.constant 0 : index
    %13 = vector.load %arg5[%c0_12, %c0_13] : memref<1x8xf32, #tpu.memory_space<vmem>>, vector<1x8xf32>
    %14 = vector.broadcast %13 : vector<1x8xf32> to vector<16x8xf32>
    %15 = arith.addf %12, %14 : vector<16x8xf32>
    %c0_14 = arith.constant 0 : index
    %c0_15 = arith.constant 0 : index
    %16 = vector.load %arg6[%c0_14, %c0_15] : memref<16x8xf32, #tpu.memory_space<vmem>>, vector<16x8xf32>
    %17 = arith.addf %15, %16 : vector<16x8xf32>
    %c0_16 = arith.constant 0 : index
    %c0_17 = arith.constant 0 : index
    %18 = vector.load %arg7[%c0_16, %c0_17] : memref<16x8xf32, #tpu.memory_space<vmem>>, vector<16x8xf32>
    tpu.vector_store %arg7[%c0_16, %c0_17], %17 {strides = array<i32>} : memref<16x8xf32, #tpu.memory_space<vmem>>, vector<16x8xf32>,
    return
  }
  func.func @transform_0(%arg0: i32) -> (i32, i32, i32) {
    %c0_i32 = arith.constant 0 : i32
    %c0_i32_0 = arith.constant 0 : i32
    %c0_i32_1 = arith.constant 0 : i32
    return %c0_i32, %arg0, %c0_i32_0 : i32, i32, i32
  }
  func.func @transform_1(%arg0: i32) -> (i32, i32) {
    %c0_i32 = arith.constant 0 : i32
    %c0_i32_0 = arith.constant 0 : i32
    %c0_i32_1 = arith.constant 0 : i32
    return %c0_i32, %c0_i32_0 : i32, i32
  }
  func.func @transform_2(%arg0: i32) -> (i32, i32) {
    %c0_i32 = arith.constant 0 : i32
    %c0_i32_0 = arith.constant 0 : i32
    %c0_i32_1 = arith.constant 0 : i32
    return %c0_i32, %c0_i32_0 : i32, i32
  }
  func.func @transform_3(%arg0: i32) -> (i32, i32, i32) {
    %c0_i32 = arith.constant 0 : i32
    %c0_i32_0 = arith.constant 0 : i32
    %c0_i32_1 = arith.constant 0 : i32
    %c0_i32_2 = arith.constant 0 : i32
    return %c0_i32, %c0_i32_0, %c0_i32_1 : i32, i32, i32
  }
  func.func @transform_4(%arg0: i32) -> (i32, i32) {
    %c0_i32 = arith.constant 0 : i32
    %c0_i32_0 = arith.constant 0 : i32
    %c0_i32_1 = arith.constant 0 : i32
    return %c0_i32, %c0_i32_0 : i32, i32
  }
  func.func @transform_5(%arg0: i32) -> (i32, i32) {
    %c0_i32 = arith.constant 0 : i32
    %c0_i32_0 = arith.constant 0 : i32
    return %arg0, %c0_i32 : i32, i32
  }
  func.func @transform_6(%arg0: i32) -> (i32, i32) {
    %c0_i32 = arith.constant 0 : i32
    %c0_i32_0 = arith.constant 0 : i32
    return %arg0, %c0_i32 : i32, i32
  }
}

</mosaic_0001>

<llo_original>
// kernel: aggressive_conv_to_gestalt.1
$region0: #{aggressive_conv_to_gestalt.1}
  #allocation0 [shape = 'u32[]', space=smem, size = 0x4, offset = 0x4, fixed_abs, tag = 'smem constant byte address 0x4 - core index']
  #allocation1 [shape = 'u32[144,128]{1,0:T(1,128)}', space=vmem, size = 0x12000, scoped, tag = 'internal scratch']
  %s0 = inlined_call_operand.vmem [shape: f32[36,16,128], index: 0, kind: input, shape index: {}]
  %s1 = inlined_call_operand.vmem [shape: f32[128,8], index: 1, kind: input, shape index: {}]
  %s2 = inlined_call_operand.vmem [shape: f32[1,8], index: 2, kind: input, shape index: {}]
  %s3 = inlined_call_operand.vmem [shape: f32[36,8,8], index: 3, kind: input, shape index: {}]
  %s4 = inlined_call_operand.vmem [shape: f32[1,8], index: 4, kind: input, shape index: {}]
  %s5 = inlined_call_operand.vmem [shape: f32[16,8], index: 5, kind: input, shape index: {}]
  %s6 = inlined_call_operand.vmem [shape: f32[16,8], index: 6, kind: output, shape index: {}]
  %s7 = sld [smem:[#allocation0]]
  $region34: #{aggressive_conv_to_gestalt.1} parent=0
    _
  %s9 = ssub.s32 1, %s7
  %s10 = scalar_select 0, %s9, %s7
  // Predicated region
  $region2: #{aggressive_conv_to_gestalt.1} parent=0 // pred_check
    _
  $region3: #{aggressive_conv_to_gestalt.1} parent=0 // pred_check_branch
    %12 = sbr.rel (0) target = $region5
  $region4: #{aggressive_conv_to_gestalt.1} parent=0 // pred_region
    _
  $region5: #{aggressive_conv_to_gestalt.1} parent=0 // pred_fallthru
    _
  // Predicated region
  $region6: #{aggressive_conv_to_gestalt.1} parent=0 // pred_check
    _
  $region7: #{aggressive_conv_to_gestalt.1} parent=0 // pred_check_branch
    %14 = sbr.rel (0) target = $region9
  $region8: #{aggressive_conv_to_gestalt.1} parent=0 // pred_region
    _
  $region9: #{aggressive_conv_to_gestalt.1} parent=0 // pred_fallthru
    _
  // Predicated region
  $region10: #{aggressive_conv_to_gestalt.1} parent=0 // pred_check
    _
  $region11: #{aggressive_conv_to_gestalt.1} parent=0 // pred_check_branch
    %16 = sbr.rel (0) target = $region13
  $region12: #{aggressive_conv_to_gestalt.1} parent=0 // pred_region
    _
  $region13: #{aggressive_conv_to_gestalt.1} parent=0 // pred_fallthru
    _
  // Predicated region
  $region14: #{aggressive_conv_to_gestalt.1} parent=0 // pred_check
    _
  $region15: #{aggressive_conv_to_gestalt.1} parent=0 // pred_check_branch
    %18 = sbr.rel (0) target = $region17
  $region16: #{aggressive_conv_to_gestalt.1} parent=0 // pred_region
    _
  $region17: #{aggressive_conv_to_gestalt.1} parent=0 // pred_fallthru
    _
  // Predicated region
  $region18: #{aggressive_conv_to_gestalt.1} parent=0 // pred_check
    _
  $region19: #{aggressive_conv_to_gestalt.1} parent=0 // pred_check_branch
    %20 = sbr.rel (0) target = $region21
  $region20: #{aggressive_conv_to_gestalt.1} parent=0 // pred_region
    _
  $region21: #{aggressive_conv_to_gestalt.1} parent=0 // pred_fallthru
    _
  // Predicated region
  $region22: #{aggressive_conv_to_gestalt.1} parent=0 // pred_check
    _
  $region23: #{aggressive_conv_to_gestalt.1} parent=0 // pred_check_branch
    %22 = sbr.rel (0) target = $region25
  $region24: #{aggressive_conv_to_gestalt.1} parent=0 // pred_region
    _
  $region25: #{aggressive_conv_to_gestalt.1} parent=0 // pred_fallthru
    _
  %v23 = vld [vmem:[%s0] sm:$0xff]
  %v24 = vld [vmem:[%s0 + $0x8] sm:$0xff]
  %v25 = vld [vmem:[%s0 + $0x10] sm:$0xff]
  %v26 = vld [vmem:[%s0 + $0x18] sm:$0xff]
  %v27 = vld [vmem:[%s0 + $0x20] sm:$0xff]
  %v28 = vld [vmem:[%s0 + $0x28] sm:$0xff]
  %v29 = vld [vmem:[%s0 + $0x30] sm:$0xff]
  %v30 = vld [vmem:[%s0 + $0x38] sm:$0xff]
  %v31 = vld [vmem:[%s0 + $0x40] sm:$0xff]
  %v32 = vld [vmem:[%s0 + $0x48] sm:$0xff]
  %v33 = vld [vmem:[%s0 + $0x50] sm:$0xff]
  %v34 = vld [vmem:[%s0 + $0x58] sm:$0xff]
  %v35 = vld [vmem:[%s0 + $0x60] sm:$0xff]
  %v36 = vld [vmem:[%s0 + $0x68] sm:$0xff]
  %v37 = vld [vmem:[%s0 + $0x70] sm:$0xff]
  %v38 = vld [vmem:[%s0 + $0x78] sm:$0xff]
  %v39 = vld [vmem:[%s0 + $0x80] sm:$0xff]
  %v40 = vld [vmem:[%s0 + $0x88] sm:$0xff]
  %v41 = vld [vmem:[%s0 + $0x90] sm:$0xff]
  %v42 = vld [vmem:[%s0 + $0x98] sm:$0xff]
  %v43 = vld [vmem:[%s0 + $0xa0] sm:$0xff]
  %v44 = vld [vmem:[%s0 + $0xa8] sm:$0xff]
  %v45 = vld [vmem:[%s0 + $0xb0] sm:$0xff]
  %v46 = vld [vmem:[%s0 + $0xb8] sm:$0xff]
  %v47 = vld [vmem:[%s0 + $0xc0] sm:$0xff]
  %v48 = vld [vmem:[%s0 + $0xc8] sm:$0xff]
  %v49 = vld [vmem:[%s0 + $0xd0] sm:$0xff]
  %v50 = vld [vmem:[%s0 + $0xd8] sm:$0xff]
  %v51 = vld [vmem:[%s0 + $0xe0] sm:$0xff]
  %v52 = vld [vmem:[%s0 + $0xe8] sm:$0xff]
  %v53 = vld [vmem:[%s0 + $0xf0] sm:$0xff]
  %v54 = vld [vmem:[%s0 + $0xf8] sm:$0xff]
  %v55 = vld [vmem:[%s0 + $0x100] sm:$0xff]
  %v56 = vld [vmem:[%s0 + $0x108] sm:$0xff]
  %v57 = vld [vmem:[%s0 + $0x110] sm:$0xff]
  %v58 = vld [vmem:[%s0 + $0x118] sm:$0xff]
  %v59 = vld [vmem:[%s0 + $0x120] sm:$0xff]
  %v60 = vld [vmem:[%s0 + $0x128] sm:$0xff]
  %v61 = vld [vmem:[%s0 + $0x130] sm:$0xff]
  %v62 = vld [vmem:[%s0 + $0x138] sm:$0xff]
  %v63 = vld [vmem:[%s0 + $0x140] sm:$0xff]
  %v64 = vld [vmem:[%s0 + $0x148] sm:$0xff]
  %v65 = vld [vmem:[%s0 + $0x150] sm:$0xff]
  %v66 = vld [vmem:[%s0 + $0x158] sm:$0xff]
  %v67 = vld [vmem:[%s0 + $0x160] sm:$0xff]
  %v68 = vld [vmem:[%s0 + $0x168] sm:$0xff]
  %v69 = vld [vmem:[%s0 + $0x170] sm:$0xff]
  %v70 = vld [vmem:[%s0 + $0x178] sm:$0xff]
  %v71 = vld [vmem:[%s0 + $0x180] sm:$0xff]
  %v72 = vld [vmem:[%s0 + $0x188] sm:$0xff]
  %v73 = vld [vmem:[%s0 + $0x190] sm:$0xff]
  %v74 = vld [vmem:[%s0 + $0x198] sm:$0xff]
  %v75 = vld [vmem:[%s0 + $0x1a0] sm:$0xff]
  %v76 = vld [vmem:[%s0 + $0x1a8] sm:$0xff]
  %v77 = vld [vmem:[%s0 + $0x1b0] sm:$0xff]
  %v78 = vld [vmem:[%s0 + $0x1b8] sm:$0xff]
  %v79 = vld [vmem:[%s0 + $0x1c0] sm:$0xff]
  %v80 = vld [vmem:[%s0 + $0x1c8] sm:$0xff]
  %v81 = vld [vmem:[%s0 + $0x1d0] sm:$0xff]
  %v82 = vld [vmem:[%s0 + $0x1d8] sm:$0xff]
  %v83 = vld [vmem:[%s0 + $0x1e0] sm:$0xff]
  %v84 = vld [vmem:[%s0 + $0x1e8] sm:$0xff]
  %v85 = vld [vmem:[%s0 + $0x1f0] sm:$0xff]
  %v86 = vld [vmem:[%s0 + $0x1f8] sm:$0xff]
  %v87 = vld [vmem:[%s0 + $0x200] sm:$0xff]
  %v88 = vld [vmem:[%s0 + $0x208] sm:$0xff]
  %v89 = vld [vmem:[%s0 + $0x210] sm:$0xff]
  %v90 = vld [vmem:[%s0 + $0x218] sm:$0xff]
  %v91 = vld [vmem:[%s0 + $0x220] sm:$0xff]
  %v92 = vld [vmem:[%s0 + $0x228] sm:$0xff]
  %v93 = vld [vmem:[%s0 + $0x230] sm:$0xff]
  %v94 = vld [vmem:[%s0 + $0x238] sm:$0xff]
  %v95 = vld [vmem:[%s1] sm:$0xff]
  %v96 = vld [vmem:[%s1 + $0x8] sm:$0xff]
  %v97 = vld [vmem:[%s1 + $0x10] sm:$0xff]
  %v98 = vld [vmem:[%s1 + $0x18] sm:$0xff]
  %v99 = vld [vmem:[%s1 + $0x20] sm:$0xff]
  %v100 = vld [vmem:[%s1 + $0x28] sm:$0xff]
  %v101 = vld [vmem:[%s1 + $0x30] sm:$0xff]
  %v102 = vld [vmem:[%s1 + $0x38] sm:$0xff]
  %v103 = vld [vmem:[%s1 + $0x40] sm:$0xff]
  %v104 = vld [vmem:[%s1 + $0x48] sm:$0xff]
  %v105 = vld [vmem:[%s1 + $0x50] sm:$0xff]
  %v106 = vld [vmem:[%s1 + $0x58] sm:$0xff]
  %v107 = vld [vmem:[%s1 + $0x60] sm:$0xff]
  %v108 = vld [vmem:[%s1 + $0x68] sm:$0xff]
  %v109 = vld [vmem:[%s1 + $0x70] sm:$0xff]
  %v110 = vld [vmem:[%s1 + $0x78] sm:$0xff]
  %v111 = vld [vmem:[%s2] sm:$0x1]
  %v113 = vlaneseq
  %v114 = vshrl.u32 %v113, 7
  %v115 = vsub.s32 0, %v114
  %v116 = vrot.slane %v111, %v115
  %118 = vmatprep.subr.mxu0 0.0
  %119 = vmatpush1.msra.mxu0 %v110
  %120 = vmatprep.subr.mxu0 0.0
  %121 = vmatpush1.msra.mxu0 %v109
  %122 = vmatprep.subr.mxu0 0.0
  %123 = vmatpush1.msra.mxu0 %v108
  %124 = vmatprep.subr.mxu0 0.0
  %125 = vmatpush1.msra.mxu0 %v107
  %126 = vmatprep.subr.mxu0 0.0
  %127 = vmatpush1.msra.mxu0 %v106
  %128 = vmatprep.subr.mxu0 0.0
  %129 = vmatpush1.msra.mxu0 %v105
  %130 = vmatprep.subr.mxu0 0.0
  %131 = vmatpush1.msra.mxu0 %v104
  %132 = vmatprep.subr.mxu0 0.0
  %133 = vmatpush1.msra.mxu0 %v103
  %134 = vmatprep.subr.mxu0 0.0
  %135 = vmatpush1.msra.mxu0 %v102
  %136 = vmatprep.subr.mxu0 0.0
  %137 = vmatpush1.msra.mxu0 %v101
  %138 = vmatprep.subr.mxu0 0.0
  %139 = vmatpush1.msra.mxu0 %v100
  %140 = vmatprep.subr.mxu0 0.0
  %141 = vmatpush1.msra.mxu0 %v99
  %142 = vmatprep.subr.mxu0 0.0
  %143 = vmatpush1.msra.mxu0 %v98
  %144 = vmatprep.subr.mxu0 0.0
  %145 = vmatpush1.msra.mxu0 %v97
  %146 = vmatprep.subr.mxu0 0.0
  %147 = vmatpush1.msra.mxu0 %v96
  %148 = vmatprep.subr.mxu0 0.0
  %149 = vmatpush1.msra.mxu0 %v95
  %150 = vmatprep.subr.mxu0 0.0
  %151 = vmatpush2.msra.mxu0 0.0
  %152 = vmatprep.subr.mxu0 0.0
  %153 = vmatpush2.msra.mxu0 0.0
  %154 = vmatprep.subr.mxu0 0.0
  %155 = vmatpush2.msra.mxu0 0.0
  %156 = vmatprep.subr.mxu0 0.0
  %157 = vmatpush2.msra.mxu0 0.0
  %158 = vmatprep.subr.mxu0 0.0
  %159 = vmatpush2.msra.mxu0 0.0
  %160 = vmatprep.subr.mxu0 0.0
  %161 = vmatpush2.msra.mxu0 0.0
  %162 = vmatprep.subr.mxu0 0.0
  %163 = vmatpush2.msra.mxu0 0.0
  %164 = vmatprep.subr.mxu0 0.0
  %165 = vmatpush2.msra.mxu0 0.0
  %166 = vmatprep.subr.mxu0 0.0
  %167 = vmatpush2.msra.mxu0 0.0
  %168 = vmatprep.subr.mxu0 0.0
  %169 = vmatpush2.msra.mxu0 0.0
  %170 = vmatprep.subr.mxu0 0.0
  %171 = vmatpush2.msra.mxu0 0.0
  %172 = vmatprep.subr.mxu0 0.0
  %173 = vmatpush2.msra.mxu0 0.0
  %174 = vmatprep.subr.mxu0 0.0
  %175 = vmatpush2.msra.mxu0 0.0
  %176 = vmatprep.subr.mxu0 0.0
  %177 = vmatpush2.msra.mxu0 0.0
  %178 = vmatprep.subr.mxu0 0.0
  %179 = vmatpush2.msra.mxu0 0.0
  %180 = vmatprep.subr.mxu0 0.0
  %181 = vmatpush2.msra.mxu0 0.0
  %182 = vmatprep.mubr.f32.mxu0 0.0
  %183 = vmatmul.mubr.f32.gmra.mxu0 %v23
  %v184 = vpop.f32.mrf.mxu0
  %v185 = vadd.f32 %v116, %v184
  %v186 = vpop.f32.mrf.mxu0
  %187 = vmatprep.mubr.f32.mxu0 0.0
  %188 = vmatmul.mubr.f32.gmra.mxu0 %v24
  %v189 = vpop.f32.mrf.mxu0
  %v190 = vadd.f32 %v116, %v189
  %v191 = vpop.f32.mrf.mxu0
  %192 = vmatprep.mubr.f32.mxu0 0.0
  %193 = vmatmul.mubr.f32.gmra.mxu0 %v25
  %v194 = vpop.f32.mrf.mxu0
  %v195 = vadd.f32 %v116, %v194
  %v196 = vpop.f32.mrf.mxu0
  %197 = vmatprep.mubr.f32.mxu0 0.0
  %198 = vmatmul.mubr.f32.gmra.mxu0 %v26
  %v199 = vpop.f32.mrf.mxu0
  %v200 = vadd.f32 %v116, %v199
  %v201 = vpop.f32.mrf.mxu0
  %202 = vmatprep.mubr.f32.mxu0 0.0
  %203 = vmatmul.mubr.f32.gmra.mxu0 %v27
  %v204 = vpop.f32.mrf.mxu0
  %v205 = vadd.f32 %v116, %v204
  %v206 = vpop.f32.mrf.mxu0
  %207 = vmatprep.mubr.f32.mxu0 0.0
  %208 = vmatmul.mubr.f32.gmra.mxu0 %v28
  %v209 = vpop.f32.mrf.mxu0
  %v210 = vadd.f32 %v116, %v209
  %v211 = vpop.f32.mrf.mxu0
  %212 = vmatprep.mubr.f32.mxu0 0.0
  %213 = vmatmul.mubr.f32.gmra.mxu0 %v29
  %v214 = vpop.f32.mrf.mxu0
  %v215 = vadd.f32 %v116, %v214
  %v216 = vpop.f32.mrf.mxu0
  %217 = vmatprep.mubr.f32.mxu0 0.0
  %218 = vmatmul.mubr.f32.gmra.mxu0 %v30
  %v219 = vpop.f32.mrf.mxu0
  %v220 = vadd.f32 %v116, %v219
  %v221 = vpop.f32.mrf.mxu0
  %222 = vmatprep.mubr.f32.mxu0 0.0
  %223 = vmatmul.mubr.f32.gmra.mxu0 %v31
  %v224 = vpop.f32.mrf.mxu0
  %v225 = vadd.f32 %v116, %v224
  %v226 = vpop.f32.mrf.mxu0
  %227 = vmatprep.mubr.f32.mxu0 0.0
  %228 = vmatmul.mubr.f32.gmra.mxu0 %v32
  %v229 = vpop.f32.mrf.mxu0
  %v230 = vadd.f32 %v116, %v229
  %v231 = vpop.f32.mrf.mxu0
  %232 = vmatprep.mubr.f32.mxu0 0.0
  %233 = vmatmul.mubr.f32.gmra.mxu0 %v33
  %v234 = vpop.f32.mrf.mxu0
  %v235 = vadd.f32 %v116, %v234
  %v236 = vpop.f32.mrf.mxu0
  %237 = vmatprep.mubr.f32.mxu0 0.0
  %238 = vmatmul.mubr.f32.gmra.mxu0 %v34
  %v239 = vpop.f32.mrf.mxu0
  %v240 = vadd.f32 %v116, %v239
  %v241 = vpop.f32.mrf.mxu0
  %242 = vmatprep.mubr.f32.mxu0 0.0
  %243 = vmatmul.mubr.f32.gmra.mxu0 %v35
  %v244 = vpop.f32.mrf.mxu0
  %v245 = vadd.f32 %v116, %v244
  %v246 = vpop.f32.mrf.mxu0
  %247 = vmatprep.mubr.f32.mxu0 0.0
  %248 = vmatmul.mubr.f32.gmra.mxu0 %v36
  %v249 = vpop.f32.mrf.mxu0
  %v250 = vadd.f32 %v116, %v249
  %v251 = vpop.f32.mrf.mxu0
  %252 = vmatprep.mubr.f32.mxu0 0.0
  %253 = vmatmul.mubr.f32.gmra.mxu0 %v37
  %v254 = vpop.f32.mrf.mxu0
  %v255 = vadd.f32 %v116, %v254
  %v256 = vpop.f32.mrf.mxu0
  %257 = vmatprep.mubr.f32.mxu0 0.0
  %258 = vmatmul.mubr.f32.gmra.mxu0 %v38
  %v259 = vpop.f32.mrf.mxu0
  %v260 = vadd.f32 %v116, %v259
  %v261 = vpop.f32.mrf.mxu0
  %262 = vmatprep.mubr.f32.mxu0 0.0
  %263 = vmatmul.mubr.f32.gmra.mxu0 %v39
  %v264 = vpop.f32.mrf.mxu0
  %v265 = vadd.f32 %v116, %v264
  %v266 = vpop.f32.mrf.mxu0
  %267 = vmatprep.mubr.f32.mxu0 0.0
  %268 = vmatmul.mubr.f32.gmra.mxu0 %v40
  %v269 = vpop.f32.mrf.mxu0
  %v270 = vadd.f32 %v116, %v269
  %v271 = vpop.f32.mrf.mxu0
  %272 = vmatprep.mubr.f32.mxu0 0.0
  %273 = vmatmul.mubr.f32.gmra.mxu0 %v41
  %v274 = vpop.f32.mrf.mxu0
  %v275 = vadd.f32 %v116, %v274
  %v276 = vpop.f32.mrf.mxu0
  %277 = vmatprep.mubr.f32.mxu0 0.0
  %278 = vmatmul.mubr.f32.gmra.mxu0 %v42
  %v279 = vpop.f32.mrf.mxu0
  %v280 = vadd.f32 %v116, %v279
  %v281 = vpop.f32.mrf.mxu0
  %282 = vmatprep.mubr.f32.mxu0 0.0
  %283 = vmatmul.mubr.f32.gmra.mxu0 %v43
  %v284 = vpop.f32.mrf.mxu0
  %v285 = vadd.f32 %v116, %v284
  %v286 = vpop.f32.mrf.mxu0
  %287 = vmatprep.mubr.f32.mxu0 0.0
  %288 = vmatmul.mubr.f32.gmra.mxu0 %v44
  %v289 = vpop.f32.mrf.mxu0
  %v290 = vadd.f32 %v116, %v289
  %v291 = vpop.f32.mrf.mxu0
  %292 = vmatprep.mubr.f32.mxu0 0.0
  %293 = vmatmul.mubr.f32.gmra.mxu0 %v45
  %v294 = vpop.f32.mrf.mxu0
  %v295 = vadd.f32 %v116, %v294
  %v296 = vpop.f32.mrf.mxu0
  %297 = vmatprep.mubr.f32.mxu0 0.0
  %298 = vmatmul.mubr.f32.gmra.mxu0 %v46
  %v299 = vpop.f32.mrf.mxu0
  %v300 = vadd.f32 %v116, %v299
  %v301 = vpop.f32.mrf.mxu0
  %302 = vmatprep.mubr.f32.mxu0 0.0
  %303 = vmatmul.mubr.f32.gmra.mxu0 %v47
  %v304 = vpop.f32.mrf.mxu0
  %v305 = vadd.f32 %v116, %v304
  %v306 = vpop.f32.mrf.mxu0
  %307 = vmatprep.mubr.f32.mxu0 0.0
  %308 = vmatmul.mubr.f32.gmra.mxu0 %v48
  %v309 = vpop.f32.mrf.mxu0
  %v310 = vadd.f32 %v116, %v309
  %v311 = vpop.f32.mrf.mxu0
  %312 = vmatprep.mubr.f32.mxu0 0.0
  %313 = vmatmul.mubr.f32.gmra.mxu0 %v49
  %v314 = vpop.f32.mrf.mxu0
  %v315 = vadd.f32 %v116, %v314
  %v316 = vpop.f32.mrf.mxu0
  %317 = vmatprep.mubr.f32.mxu0 0.0
  %318 = vmatmul.mubr.f32.gmra.mxu0 %v50
  %v319 = vpop.f32.mrf.mxu0
  %v320 = vadd.f32 %v116, %v319
  %v321 = vpop.f32.mrf.mxu0
  %322 = vmatprep.mubr.f32.mxu0 0.0
  %323 = vmatmul.mubr.f32.gmra.mxu0 %v51
  %v324 = vpop.f32.mrf.mxu0
  %v325 = vadd.f32 %v116, %v324
  %v326 = vpop.f32.mrf.mxu0
  %327 = vmatprep.mubr.f32.mxu0 0.0
  %328 = vmatmul.mubr.f32.gmra.mxu0 %v52
  %v329 = vpop.f32.mrf.mxu0
  %v330 = vadd.f32 %v116, %v329
  %v331 = vpop.f32.mrf.mxu0
  %332 = vmatprep.mubr.f32.mxu0 0.0
  %333 = vmatmul.mubr.f32.gmra.mxu0 %v53
  %v334 = vpop.f32.mrf.mxu0
  %v335 = vadd.f32 %v116, %v334
  %v336 = vpop.f32.mrf.mxu0
  %337 = vmatprep.mubr.f32.mxu0 0.0
  %338 = vmatmul.mubr.f32.gmra.mxu0 %v54
  %v339 = vpop.f32.mrf.mxu0
  %v340 = vadd.f32 %v116, %v339
  %v341 = vpop.f32.mrf.mxu0
  %342 = vmatprep.mubr.f32.mxu0 0.0
  %343 = vmatmul.mubr.f32.gmra.mxu0 %v55
  %v344 = vpop.f32.mrf.mxu0
  %v345 = vadd.f32 %v116, %v344
  %v346 = vpop.f32.mrf.mxu0
  %347 = vmatprep.mubr.f32.mxu0 0.0
  %348 = vmatmul.mubr.f32.gmra.mxu0 %v56
  %v349 = vpop.f32.mrf.mxu0
  %v350 = vadd.f32 %v116, %v349
  %v351 = vpop.f32.mrf.mxu0
  %352 = vmatprep.mubr.f32.mxu0 0.0
  %353 = vmatmul.mubr.f32.gmra.mxu0 %v57
  %v354 = vpop.f32.mrf.mxu0
  %v355 = vadd.f32 %v116, %v354
  %v356 = vpop.f32.mrf.mxu0
  %357 = vmatprep.mubr.f32.mxu0 0.0
  %358 = vmatmul.mubr.f32.gmra.mxu0 %v58
  %v359 = vpop.f32.mrf.mxu0
  %v360 = vadd.f32 %v116, %v359
  %v361 = vpop.f32.mrf.mxu0
  %362 = vmatprep.mubr.f32.mxu0 0.0
  %363 = vmatmul.mubr.f32.gmra.mxu0 %v59
  %v364 = vpop.f32.mrf.mxu0
  %v365 = vadd.f32 %v116, %v364
  %v366 = vpop.f32.mrf.mxu0
  %367 = vmatprep.mubr.f32.mxu0 0.0
  %368 = vmatmul.mubr.f32.gmra.mxu0 %v60
  %v369 = vpop.f32.mrf.mxu0
  %v370 = vadd.f32 %v116, %v369
  %v371 = vpop.f32.mrf.mxu0
  %372 = vmatprep.mubr.f32.mxu0 0.0
  %373 = vmatmul.mubr.f32.gmra.mxu0 %v61
  %v374 = vpop.f32.mrf.mxu0
  %v375 = vadd.f32 %v116, %v374
  %v376 = vpop.f32.mrf.mxu0
  %377 = vmatprep.mubr.f32.mxu0 0.0
  %378 = vmatmul.mubr.f32.gmra.mxu0 %v62
  %v379 = vpop.f32.mrf.mxu0
  %v380 = vadd.f32 %v116, %v379
  %v381 = vpop.f32.mrf.mxu0
  %382 = vmatprep.mubr.f32.mxu0 0.0
  %383 = vmatmul.mubr.f32.gmra.mxu0 %v63
  %v384 = vpop.f32.mrf.mxu0
  %v385 = vadd.f32 %v116, %v384
  %v386 = vpop.f32.mrf.mxu0
  %387 = vmatprep.mubr.f32.mxu0 0.0
  %388 = vmatmul.mubr.f32.gmra.mxu0 %v64
  %v389 = vpop.f32.mrf.mxu0
  %v390 = vadd.f32 %v116, %v389
  %v391 = vpop.f32.mrf.mxu0
  %392 = vmatprep.mubr.f32.mxu0 0.0
  %393 = vmatmul.mubr.f32.gmra.mxu0 %v65
  %v394 = vpop.f32.mrf.mxu0
  %v395 = vadd.f32 %v116, %v394
  %v396 = vpop.f32.mrf.mxu0
  %397 = vmatprep.mubr.f32.mxu0 0.0
  %398 = vmatmul.mubr.f32.gmra.mxu0 %v66
  %v399 = vpop.f32.mrf.mxu0
  %v400 = vadd.f32 %v116, %v399
  %v401 = vpop.f32.mrf.mxu0
  %402 = vmatprep.mubr.f32.mxu0 0.0
  %403 = vmatmul.mubr.f32.gmra.mxu0 %v67
  %v404 = vpop.f32.mrf.mxu0
  %v405 = vadd.f32 %v116, %v404
  %v406 = vpop.f32.mrf.mxu0
  %407 = vmatprep.mubr.f32.mxu0 0.0
  %408 = vmatmul.mubr.f32.gmra.mxu0 %v68
  %v409 = vpop.f32.mrf.mxu0
  %v410 = vadd.f32 %v116, %v409
  %v411 = vpop.f32.mrf.mxu0
  %412 = vmatprep.mubr.f32.mxu0 0.0
  %413 = vmatmul.mubr.f32.gmra.mxu0 %v69
  %v414 = vpop.f32.mrf.mxu0
  %v415 = vadd.f32 %v116, %v414
  %v416 = vpop.f32.mrf.mxu0
  %417 = vmatprep.mubr.f32.mxu0 0.0
  %418 = vmatmul.mubr.f32.gmra.mxu0 %v70
  %v419 = vpop.f32.mrf.mxu0
  %v420 = vadd.f32 %v116, %v419
  %v421 = vpop.f32.mrf.mxu0
  %422 = vmatprep.mubr.f32.mxu0 0.0
  %423 = vmatmul.mubr.f32.gmra.mxu0 %v71
  %v424 = vpop.f32.mrf.mxu0
  %v425 = vadd.f32 %v116, %v424
  %v426 = vpop.f32.mrf.mxu0
  %427 = vmatprep.mubr.f32.mxu0 0.0
  %428 = vmatmul.mubr.f32.gmra.mxu0 %v72
  %v429 = vpop.f32.mrf.mxu0
  %v430 = vadd.f32 %v116, %v429
  %v431 = vpop.f32.mrf.mxu0
  %432 = vmatprep.mubr.f32.mxu0 0.0
  %433 = vmatmul.mubr.f32.gmra.mxu0 %v73
  %v434 = vpop.f32.mrf.mxu0
  %v435 = vadd.f32 %v116, %v434
  %v436 = vpop.f32.mrf.mxu0
  %437 = vmatprep.mubr.f32.mxu0 0.0
  %438 = vmatmul.mubr.f32.gmra.mxu0 %v74
  %v439 = vpop.f32.mrf.mxu0
  %v440 = vadd.f32 %v116, %v439
  %v441 = vpop.f32.mrf.mxu0
  %442 = vmatprep.mubr.f32.mxu0 0.0
  %443 = vmatmul.mubr.f32.gmra.mxu0 %v75
  %v444 = vpop.f32.mrf.mxu0
  %v445 = vadd.f32 %v116, %v444
  %v446 = vpop.f32.mrf.mxu0
  %447 = vmatprep.mubr.f32.mxu0 0.0
  %448 = vmatmul.mubr.f32.gmra.mxu0 %v76
  %v449 = vpop.f32.mrf.mxu0
  %v450 = vadd.f32 %v116, %v449
  %v451 = vpop.f32.mrf.mxu0
  %452 = vmatprep.mubr.f32.mxu0 0.0
  %453 = vmatmul.mubr.f32.gmra.mxu0 %v77
  %v454 = vpop.f32.mrf.mxu0
  %v455 = vadd.f32 %v116, %v454
  %v456 = vpop.f32.mrf.mxu0
  %457 = vmatprep.mubr.f32.mxu0 0.0
  %458 = vmatmul.mubr.f32.gmra.mxu0 %v78
  %v459 = vpop.f32.mrf.mxu0
  %v460 = vadd.f32 %v116, %v459
  %v461 = vpop.f32.mrf.mxu0
  %462 = vmatprep.mubr.f32.mxu0 0.0
  %463 = vmatmul.mubr.f32.gmra.mxu0 %v79
  %v464 = vpop.f32.mrf.mxu0
  %v465 = vadd.f32 %v116, %v464
  %v466 = vpop.f32.mrf.mxu0
  %467 = vmatprep.mubr.f32.mxu0 0.0
  %468 = vmatmul.mubr.f32.gmra.mxu0 %v80
  %v469 = vpop.f32.mrf.mxu0
  %v470 = vadd.f32 %v116, %v469
  %v471 = vpop.f32.mrf.mxu0
  %472 = vmatprep.mubr.f32.mxu0 0.0
  %473 = vmatmul.mubr.f32.gmra.mxu0 %v81
  %v474 = vpop.f32.mrf.mxu0
  %v475 = vadd.f32 %v116, %v474
  %v476 = vpop.f32.mrf.mxu0
  %477 = vmatprep.mubr.f32.mxu0 0.0
  %478 = vmatmul.mubr.f32.gmra.mxu0 %v82
  %v479 = vpop.f32.mrf.mxu0
  %v480 = vadd.f32 %v116, %v479
  %v481 = vpop.f32.mrf.mxu0
  %482 = vmatprep.mubr.f32.mxu0 0.0
  %483 = vmatmul.mubr.f32.gmra.mxu0 %v83
  %v484 = vpop.f32.mrf.mxu0
  %v485 = vadd.f32 %v116, %v484
  %v486 = vpop.f32.mrf.mxu0
  %487 = vmatprep.mubr.f32.mxu0 0.0
  %488 = vmatmul.mubr.f32.gmra.mxu0 %v84
  %v489 = vpop.f32.mrf.mxu0
  %v490 = vadd.f32 %v116, %v489
  %v491 = vpop.f32.mrf.mxu0
  %492 = vmatprep.mubr.f32.mxu0 0.0
  %493 = vmatmul.mubr.f32.gmra.mxu0 %v85
  %v494 = vpop.f32.mrf.mxu0
  %v495 = vadd.f32 %v116, %v494
  %v496 = vpop.f32.mrf.mxu0
  %497 = vmatprep.mubr.f32.mxu0 0.0
  %498 = vmatmul.mubr.f32.gmra.mxu0 %v86
  %v499 = vpop.f32.mrf.mxu0
  %v500 = vadd.f32 %v116, %v499
  %v501 = vpop.f32.mrf.mxu0
  %502 = vmatprep.mubr.f32.mxu0 0.0
  %503 = vmatmul.mubr.f32.gmra.mxu0 %v87
  %v504 = vpop.f32.mrf.mxu0
  %v505 = vadd.f32 %v116, %v504
  %v506 = vpop.f32.mrf.mxu0
  %507 = vmatprep.mubr.f32.mxu0 0.0
  %508 = vmatmul.mubr.f32.gmra.mxu0 %v88
  %v509 = vpop.f32.mrf.mxu0
  %v510 = vadd.f32 %v116, %v509
  %v511 = vpop.f32.mrf.mxu0
  %512 = vmatprep.mubr.f32.mxu0 0.0
  %513 = vmatmul.mubr.f32.gmra.mxu0 %v89
  %v514 = vpop.f32.mrf.mxu0
  %v515 = vadd.f32 %v116, %v514
  %v516 = vpop.f32.mrf.mxu0
  %517 = vmatprep.mubr.f32.mxu0 0.0
  %518 = vmatmul.mubr.f32.gmra.mxu0 %v90
  %v519 = vpop.f32.mrf.mxu0
  %v520 = vadd.f32 %v116, %v519
  %v521 = vpop.f32.mrf.mxu0
  %522 = vmatprep.mubr.f32.mxu0 0.0
  %523 = vmatmul.mubr.f32.gmra.mxu0 %v91
  %v524 = vpop.f32.mrf.mxu0
  %v525 = vadd.f32 %v116, %v524
  %v526 = vpop.f32.mrf.mxu0
  %527 = vmatprep.mubr.f32.mxu0 0.0
  %528 = vmatmul.mubr.f32.gmra.mxu0 %v92
  %v529 = vpop.f32.mrf.mxu0
  %v530 = vadd.f32 %v116, %v529
  %v531 = vpop.f32.mrf.mxu0
  %532 = vmatprep.mubr.f32.mxu0 0.0
  %533 = vmatmul.mubr.f32.gmra.mxu0 %v93
  %v534 = vpop.f32.mrf.mxu0
  %v535 = vadd.f32 %v116, %v534
  %v536 = vpop.f32.mrf.mxu0
  %537 = vmatprep.mubr.f32.mxu0 0.0
  %538 = vmatmul.mubr.f32.gmra.mxu0 %v94
  %v539 = vpop.f32.mrf.mxu0
  %v540 = vadd.f32 %v116, %v539
  %v541 = vpop.f32.mrf.mxu0
  %542 = vdwg.mxu0
  %v543 = vmax.f32 %v185, 0.0
  %v544 = vmax.f32 %v190, 0.0
  %v545 = vmax.f32 %v195, 0.0
  %v546 = vmax.f32 %v200, 0.0
  %v547 = vmax.f32 %v205, 0.0
  %v548 = vmax.f32 %v210, 0.0
  %v549 = vmax.f32 %v215, 0.0
  %v550 = vmax.f32 %v220, 0.0
  %v551 = vmax.f32 %v225, 0.0
  %v552 = vmax.f32 %v230, 0.0
  %v553 = vmax.f32 %v235, 0.0
  %v554 = vmax.f32 %v240, 0.0
  %v555 = vmax.f32 %v245, 0.0
  %v556 = vmax.f32 %v250, 0.0
  %v557 = vmax.f32 %v255, 0.0
  %v558 = vmax.f32 %v260, 0.0
  %v559 = vmax.f32 %v265, 0.0
  %v560 = vmax.f32 %v270, 0.0
  %v561 = vmax.f32 %v275, 0.0
  %v562 = vmax.f32 %v280, 0.0
  %v563 = vmax.f32 %v285, 0.0
  %v564 = vmax.f32 %v290, 0.0
  %v565 = vmax.f32 %v295, 0.0
  %v566 = vmax.f32 %v300, 0.0
  %v567 = vmax.f32 %v305, 0.0
  %v568 = vmax.f32 %v310, 0.0
  %v569 = vmax.f32 %v315, 0.0
  %v570 = vmax.f32 %v320, 0.0
  %v571 = vmax.f32 %v325, 0.0
  %v572 = vmax.f32 %v330, 0.0
  %v573 = vmax.f32 %v335, 0.0
  %v574 = vmax.f32 %v340, 0.0
  %v575 = vmax.f32 %v345, 0.0
  %v576 = vmax.f32 %v350, 0.0
  %v577 = vmax.f32 %v355, 0.0
  %v578 = vmax.f32 %v360, 0.0
  %v579 = vmax.f32 %v365, 0.0
  %v580 = vmax.f32 %v370, 0.0
  %v581 = vmax.f32 %v375, 0.0
  %v582 = vmax.f32 %v380, 0.0
  %v583 = vmax.f32 %v385, 0.0
  %v584 = vmax.f32 %v390, 0.0
  %v585 = vmax.f32 %v395, 0.0
  %v586 = vmax.f32 %v400, 0.0
  %v587 = vmax.f32 %v405, 0.0
  %v588 = vmax.f32 %v410, 0.0
  %v589 = vmax.f32 %v415, 0.0
  %v590 = vmax.f32 %v420, 0.0
  %v591 = vmax.f32 %v425, 0.0
  %v592 = vmax.f32 %v430, 0.0
  %v593 = vmax.f32 %v435, 0.0
  %v594 = vmax.f32 %v440, 0.0
  %v595 = vmax.f32 %v445, 0.0
  %v596 = vmax.f32 %v450, 0.0
  %v597 = vmax.f32 %v455, 0.0
  %v598 = vmax.f32 %v460, 0.0
  %v599 = vmax.f32 %v465, 0.0
  %v600 = vmax.f32 %v470, 0.0
  %v601 = vmax.f32 %v475, 0.0
  %v602 = vmax.f32 %v480, 0.0
  %v603 = vmax.f32 %v485, 0.0
  %v604 = vmax.f32 %v490, 0.0
  %v605 = vmax.f32 %v495, 0.0
  %v606 = vmax.f32 %v500, 0.0
  %v607 = vmax.f32 %v505, 0.0
  %v608 = vmax.f32 %v510, 0.0
  %v609 = vmax.f32 %v515, 0.0
  %v610 = vmax.f32 %v520, 0.0
  %v611 = vmax.f32 %v525, 0.0
  %v612 = vmax.f32 %v530, 0.0
  %v613 = vmax.f32 %v535, 0.0
  %v614 = vmax.f32 %v540, 0.0
  %v615 = vld [vmem:[%s3] sm:$0xff]
  %v616 = vld [vmem:[%s3 + $0x8] sm:$0xff]
  %v617 = vld [vmem:[%s3 + $0x10] sm:$0xff]
  %v618 = vld [vmem:[%s3 + $0x18] sm:$0xff]
  %v619 = vld [vmem:[%s3 + $0x20] sm:$0xff]
  %v620 = vld [vmem:[%s3 + $0x28] sm:$0xff]
  %v621 = vld [vmem:[%s3 + $0x30] sm:$0xff]
  %v622 = vld [vmem:[%s3 + $0x38] sm:$0xff]
  %v623 = vld [vmem:[%s3 + $0x40] sm:$0xff]
  %v624 = vld [vmem:[%s3 + $0x48] sm:$0xff]
  %v625 = vld [vmem:[%s3 + $0x50] sm:$0xff]
  %v626 = vld [vmem:[%s3 + $0x58] sm:$0xff]
  %v627 = vld [vmem:[%s3 + $0x60] sm:$0xff]
  %v628 = vld [vmem:[%s3 + $0x68] sm:$0xff]
  %v629 = vld [vmem:[%s3 + $0x70] sm:$0xff]
  %v630 = vld [vmem:[%s3 + $0x78] sm:$0xff]
  %v631 = vld [vmem:[%s3 + $0x80] sm:$0xff]
  %v632 = vld [vmem:[%s3 + $0x88] sm:$0xff]
  %v633 = vld [vmem:[%s3 + $0x90] sm:$0xff]
  %v634 = vld [vmem:[%s3 + $0x98] sm:$0xff]
  %v635 = vld [vmem:[%s3 + $0xa0] sm:$0xff]
  %v636 = vld [vmem:[%s3 + $0xa8] sm:$0xff]
  %v637 = vld [vmem:[%s3 + $0xb0] sm:$0xff]
  %v638 = vld [vmem:[%s3 + $0xb8] sm:$0xff]
  %v639 = vld [vmem:[%s3 + $0xc0] sm:$0xff]
  %v640 = vld [vmem:[%s3 + $0xc8] sm:$0xff]
  %v641 = vld [vmem:[%s3 + $0xd0] sm:$0xff]
  %v642 = vld [vmem:[%s3 + $0xd8] sm:$0xff]
  %v643 = vld [vmem:[%s3 + $0xe0] sm:$0xff]
  %v644 = vld [vmem:[%s3 + $0xe8] sm:$0xff]
  %v645 = vld [vmem:[%s3 + $0xf0] sm:$0xff]
  %v646 = vld [vmem:[%s3 + $0xf8] sm:$0xff]
  %v647 = vld [vmem:[%s3 + $0x100] sm:$0xff]
  %v648 = vld [vmem:[%s3 + $0x108] sm:$0xff]
  %v649 = vld [vmem:[%s3 + $0x110] sm:$0xff]
  %v650 = vld [vmem:[%s3 + $0x118] sm:$0xff]
  %vm651 = vcmask 64512
  %v653 = vsel %vm651, %v543, 0
  %v656 = vsel %vm651, %v544, 0
  %658 = vmatprep.subr.mxu0 0.0
  %659 = vmatpush1.msra.mxu0 0.0
  %660 = vmatprep.subr.mxu0 0.0
  %661 = vmatpush1.msra.mxu0 0.0
  %662 = vmatprep.subr.mxu0 0.0
  %663 = vmatpush1.msra.mxu0 0.0
  %664 = vmatprep.subr.mxu0 0.0
  %665 = vmatpush1.msra.mxu0 0.0
  %666 = vmatprep.subr.mxu0 0.0
  %667 = vmatpush1.msra.mxu0 0.0
  %668 = vmatprep.subr.mxu0 0.0
  %669 = vmatpush1.msra.mxu0 0.0
  %670 = vmatprep.subr.mxu0 0.0
  %671 = vmatpush1.msra.mxu0 0.0
  %672 = vmatprep.subr.mxu0 0.0
  %673 = vmatpush1.msra.mxu0 0.0
  %674 = vmatprep.subr.mxu0 0.0
  %675 = vmatpush1.msra.mxu0 0.0
  %676 = vmatprep.subr.mxu0 0.0
  %677 = vmatpush1.msra.mxu0 0.0
  %678 = vmatprep.subr.mxu0 0.0
  %679 = vmatpush1.msra.mxu0 0.0
  %680 = vmatprep.subr.mxu0 0.0
  %681 = vmatpush1.msra.mxu0 0.0
  %682 = vmatprep.subr.mxu0 0.0
  %683 = vmatpush1.msra.mxu0 0.0
  %684 = vmatprep.subr.mxu0 0.0
  %685 = vmatpush1.msra.mxu0 0.0
  %686 = vmatprep.subr.mxu0 0.0
  %687 = vmatpush1.msra.mxu0 0.0
  %688 = vmatprep.subr.mxu0 0.0
  %689 = vmatpush1.msra.mxu0 %v615
  %690 = vmatprep.subr.mxu0 0.0
  %691 = vmatpush2.msra.mxu0 0.0
  %692 = vmatprep.subr.mxu0 0.0
  %693 = vmatpush2.msra.mxu0 0.0
  %694 = vmatprep.subr.mxu0 0.0
  %695 = vmatpush2.msra.mxu0 0.0
  %696 = vmatprep.subr.mxu0 0.0
  %697 = vmatpush2.msra.mxu0 0.0
  %698 = vmatprep.subr.mxu0 0.0
  %699 = vmatpush2.msra.mxu0 0.0
  %700 = vmatprep.subr.mxu0 0.0
  %701 = vmatpush2.msra.mxu0 0.0
  %702 = vmatprep.subr.mxu0 0.0
  %703 = vmatpush2.msra.mxu0 0.0
  %704 = vmatprep.subr.mxu0 0.0
  %705 = vmatpush2.msra.mxu0 0.0
  %706 = vmatprep.subr.mxu0 0.0
  %707 = vmatpush2.msra.mxu0 0.0
  %708 = vmatprep.subr.mxu0 0.0
  %709 = vmatpush2.msra.mxu0 0.0
  %710 = vmatprep.subr.mxu0 0.0
  %711 = vmatpush2.msra.mxu0 0.0
  %712 = vmatprep.subr.mxu0 0.0
  %713 = vmatpush2.msra.mxu0 0.0
  %714 = vmatprep.subr.mxu0 0.0
  %715 = vmatpush2.msra.mxu0 0.0
  %716 = vmatprep.subr.mxu0 0.0
  %717 = vmatpush2.msra.mxu0 0.0
  %718 = vmatprep.subr.mxu0 0.0
  %719 = vmatpush2.msra.mxu0 0.0
  %720 = vmatprep.subr.mxu0 0.0
  %721 = vmatpush2.msra.mxu0 0.0
  %722 = vmatprep.mubr.f32.mxu0 0.0
  %723 = vmatmul.mubr.f32.gmra.mxu0 %v653
  %v724 = vpop.f32.mrf.mxu0
  %v725 = vadd.f32 0.0, %v724
  %v726 = vpop.f32.mrf.mxu0
  %727 = vmatprep.mubr.f32.mxu0 0.0
  %728 = vmatmul.mubr.f32.gmra.mxu0 %v656
  %v729 = vpop.f32.mrf.mxu0
  %v730 = vadd.f32 0.0, %v729
  %v731 = vpop.f32.mrf.mxu0
  %732 = vdwg.mxu0
  %v734 = vsel %vm651, %v545, 0
  %v737 = vsel %vm651, %v546, 0
  %739 = vmatprep.subr.mxu0 0.0
  %740 = vmatpush1.msra.mxu0 0.0
  %741 = vmatprep.subr.mxu0 0.0
  %742 = vmatpush1.msra.mxu0 0.0
  %743 = vmatprep.subr.mxu0 0.0
  %744 = vmatpush1.msra.mxu0 0.0
  %745 = vmatprep.subr.mxu0 0.0
  %746 = vmatpush1.msra.mxu0 0.0
  %747 = vmatprep.subr.mxu0 0.0
  %748 = vmatpush1.msra.mxu0 0.0
  %749 = vmatprep.subr.mxu0 0.0
  %750 = vmatpush1.msra.mxu0 0.0
  %751 = vmatprep.subr.mxu0 0.0
  %752 = vmatpush1.msra.mxu0 0.0
  %753 = vmatprep.subr.mxu0 0.0
  %754 = vmatpush1.msra.mxu0 0.0
  %755 = vmatprep.subr.mxu0 0.0
  %756 = vmatpush1.msra.mxu0 0.0
  %757 = vmatprep.subr.mxu0 0.0
  %758 = vmatpush1.msra.mxu0 0.0
  %759 = vmatprep.subr.mxu0 0.0
  %760 = vmatpush1.msra.mxu0 0.0
  %761 = vmatprep.subr.mxu0 0.0
  %762 = vmatpush1.msra.mxu0 0.0
  %763 = vmatprep.subr.mxu0 0.0
  %764 = vmatpush1.msra.mxu0 0.0
  %765 = vmatprep.subr.mxu0 0.0
  %766 = vmatpush1.msra.mxu0 0.0
  %767 = vmatprep.subr.mxu0 0.0
  %768 = vmatpush1.msra.mxu0 0.0
  %769 = vmatprep.subr.mxu0 0.0
  %770 = vmatpush1.msra.mxu0 %v616
  %771 = vmatprep.subr.mxu0 0.0
  %772 = vmatpush2.msra.mxu0 0.0
  %773 = vmatprep.subr.mxu0 0.0
  %774 = vmatpush2.msra.mxu0 0.0
  %775 = vmatprep.subr.mxu0 0.0
  %776 = vmatpush2.msra.mxu0 0.0
  %777 = vmatprep.subr.mxu0 0.0
  %778 = vmatpush2.msra.mxu0 0.0
  %779 = vmatprep.subr.mxu0 0.0
  %780 = vmatpush2.msra.mxu0 0.0
  %781 = vmatprep.subr.mxu0 0.0
  %782 = vmatpush2.msra.mxu0 0.0
  %783 = vmatprep.subr.mxu0 0.0
  %784 = vmatpush2.msra.mxu0 0.0
  %785 = vmatprep.subr.mxu0 0.0
  %786 = vmatpush2.msra.mxu0 0.0
  %787 = vmatprep.subr.mxu0 0.0
  %788 = vmatpush2.msra.mxu0 0.0
  %789 = vmatprep.subr.mxu0 0.0
  %790 = vmatpush2.msra.mxu0 0.0
  %791 = vmatprep.subr.mxu0 0.0
  %792 = vmatpush2.msra.mxu0 0.0
  %793 = vmatprep.subr.mxu0 0.0
  %794 = vmatpush2.msra.mxu0 0.0
  %795 = vmatprep.subr.mxu0 0.0
  %796 = vmatpush2.msra.mxu0 0.0
  %797 = vmatprep.subr.mxu0 0.0
  %798 = vmatpush2.msra.mxu0 0.0
  %799 = vmatprep.subr.mxu0 0.0
  %800 = vmatpush2.msra.mxu0 0.0
  %801 = vmatprep.subr.mxu0 0.0
  %802 = vmatpush2.msra.mxu0 0.0
  %803 = vmatprep.mubr.f32.mxu0 0.0
  %804 = vmatmul.mubr.f32.gmra.mxu0 %v734
  %v805 = vpop.f32.mrf.mxu0
  %v806 = vadd.f32 0.0, %v805
  %v807 = vpop.f32.mrf.mxu0
  %808 = vmatprep.mubr.f32.mxu0 0.0
  %809 = vmatmul.mubr.f32.gmra.mxu0 %v737
  %v810 = vpop.f32.mrf.mxu0
  %v811 = vadd.f32 0.0, %v810
  %v812 = vpop.f32.mrf.mxu0
  %813 = vdwg.mxu0
  %v815 = vsel %vm651, %v547, 0
  %v818 = vsel %vm651, %v548, 0
  %820 = vmatprep.subr.mxu0 0.0
  %821 = vmatpush1.msra.mxu0 0.0
  %822 = vmatprep.subr.mxu0 0.0
  %823 = vmatpush1.msra.mxu0 0.0
  %824 = vmatprep.subr.mxu0 0.0
  %825 = vmatpush1.msra.mxu0 0.0
  %826 = vmatprep.subr.mxu0 0.0
  %827 = vmatpush1.msra.mxu0 0.0
  %828 = vmatprep.subr.mxu0 0.0
  %829 = vmatpush1.msra.mxu0 0.0
  %830 = vmatprep.subr.mxu0 0.0
  %831 = vmatpush1.msra.mxu0 0.0
  %832 = vmatprep.subr.mxu0 0.0
  %833 = vmatpush1.msra.mxu0 0.0
  %834 = vmatprep.subr.mxu0 0.0
  %835 = vmatpush1.msra.mxu0 0.0
  %836 = vmatprep.subr.mxu0 0.0
  %837 = vmatpush1.msra.mxu0 0.0
  %838 = vmatprep.subr.mxu0 0.0
  %839 = vmatpush1.msra.mxu0 0.0
  %840 = vmatprep.subr.mxu0 0.0
  %841 = vmatpush1.msra.mxu0 0.0
  %842 = vmatprep.subr.mxu0 0.0
  %843 = vmatpush1.msra.mxu0 0.0
  %844 = vmatprep.subr.mxu0 0.0
  %845 = vmatpush1.msra.mxu0 0.0
  %846 = vmatprep.subr.mxu0 0.0
  %847 = vmatpush1.msra.mxu0 0.0
  %848 = vmatprep.subr.mxu0 0.0
  %849 = vmatpush1.msra.mxu0 0.0
  %850 = vmatprep.subr.mxu0 0.0
  %851 = vmatpush1.msra.mxu0 %v617
  %852 = vmatprep.subr.mxu0 0.0
  %853 = vmatpush2.msra.mxu0 0.0
  %854 = vmatprep.subr.mxu0 0.0
  %855 = vmatpush2.msra.mxu0 0.0
  %856 = vmatprep.subr.mxu0 0.0
  %857 = vmatpush2.msra.mxu0 0.0
  %858 = vmatprep.subr.mxu0 0.0
  %859 = vmatpush2.msra.mxu0 0.0
  %860 = vmatprep.subr.mxu0 0.0
  %861 = vmatpush2.msra.mxu0 0.0
  %862 = vmatprep.subr.mxu0 0.0
  %863 = vmatpush2.msra.mxu0 0.0
  %864 = vmatprep.subr.mxu0 0.0
  %865 = vmatpush2.msra.mxu0 0.0
  %866 = vmatprep.subr.mxu0 0.0
  %867 = vmatpush2.msra.mxu0 0.0
  %868 = vmatprep.subr.mxu0 0.0
  %869 = vmatpush2.msra.mxu0 0.0
  %870 = vmatprep.subr.mxu0 0.0
  %871 = vmatpush2.msra.mxu0 0.0
  %872 = vmatprep.subr.mxu0 0.0
  %873 = vmatpush2.msra.mxu0 0.0
  %874 = vmatprep.subr.mxu0 0.0
  %875 = vmatpush2.msra.mxu0 0.0
  %876 = vmatprep.subr.mxu0 0.0
  %877 = vmatpush2.msra.mxu0 0.0
  %878 = vmatprep.subr.mxu0 0.0
  %879 = vmatpush2.msra.mxu0 0.0
  %880 = vmatprep.subr.mxu0 0.0
  %881 = vmatpush2.msra.mxu0 0.0
  %882 = vmatprep.subr.mxu0 0.0
  %883 = vmatpush2.msra.mxu0 0.0
  %884 = vmatprep.mubr.f32.mxu0 0.0
  %885 = vmatmul.mubr.f32.gmra.mxu0 %v815
  %v886 = vpop.f32.mrf.mxu0
  %v887 = vadd.f32 0.0, %v886
  %v888 = vpop.f32.mrf.mxu0
  %889 = vmatprep.mubr.f32.mxu0 0.0
  %890 = vmatmul.mubr.f32.gmra.mxu0 %v818
  %v891 = vpop.f32.mrf.mxu0
  %v892 = vadd.f32 0.0, %v891
  %v893 = vpop.f32.mrf.mxu0
  %894 = vdwg.mxu0
  %v896 = vsel %vm651, %v549, 0
  %v899 = vsel %vm651, %v550, 0
  %901 = vmatprep.subr.mxu0 0.0
  %902 = vmatpush1.msra.mxu0 0.0
  %903 = vmatprep.subr.mxu0 0.0
  %904 = vmatpush1.msra.mxu0 0.0
  %905 = vmatprep.subr.mxu0 0.0
  %906 = vmatpush1.msra.mxu0 0.0
  %907 = vmatprep.subr.mxu0 0.0
  %908 = vmatpush1.msra.mxu0 0.0
  %909 = vmatprep.subr.mxu0 0.0
  %910 = vmatpush1.msra.mxu0 0.0
  %911 = vmatprep.subr.mxu0 0.0
  %912 = vmatpush1.msra.mxu0 0.0
  %913 = vmatprep.subr.mxu0 0.0
  %914 = vmatpush1.msra.mxu0 0.0
  %915 = vmatprep.subr.mxu0 0.0
  %916 = vmatpush1.msra.mxu0 0.0
  %917 = vmatprep.subr.mxu0 0.0
  %918 = vmatpush1.msra.mxu0 0.0
  %919 = vmatprep.subr.mxu0 0.0
  %920 = vmatpush1.msra.mxu0 0.0
  %921 = vmatprep.subr.mxu0 0.0
  %922 = vmatpush1.msra.mxu0 0.0
  %923 = vmatprep.subr.mxu0 0.0
  %924 = vmatpush1.msra.mxu0 0.0
  %925 = vmatprep.subr.mxu0 0.0
  %926 = vmatpush1.msra.mxu0 0.0
  %927 = vmatprep.subr.mxu0 0.0
  %928 = vmatpush1.msra.mxu0 0.0
  %929 = vmatprep.subr.mxu0 0.0
  %930 = vmatpush1.msra.mxu0 0.0
  %931 = vmatprep.subr.mxu0 0.0
  %932 = vmatpush1.msra.mxu0 %v618
  %933 = vmatprep.subr.mxu0 0.0
  %934 = vmatpush2.msra.mxu0 0.0
  %935 = vmatprep.subr.mxu0 0.0
  %936 = vmatpush2.msra.mxu0 0.0
  %937 = vmatprep.subr.mxu0 0.0
  %938 = vmatpush2.msra.mxu0 0.0
  %939 = vmatprep.subr.mxu0 0.0
  %940 = vmatpush2.msra.mxu0 0.0
  %941 = vmatprep.subr.mxu0 0.0
  %942 = vmatpush2.msra.mxu0 0.0
  %943 = vmatprep.subr.mxu0 0.0
  %944 = vmatpush2.msra.mxu0 0.0
  %945 = vmatprep.subr.mxu0 0.0
  %946 = vmatpush2.msra.mxu0 0.0
  %947 = vmatprep.subr.mxu0 0.0
  %948 = vmatpush2.msra.mxu0 0.0
  %949 = vmatprep.subr.mxu0 0.0
  %950 = vmatpush2.msra.mxu0 0.0
  %951 = vmatprep.subr.mxu0 0.0
  %952 = vmatpush2.msra.mxu0 0.0
  %953 = vmatprep.subr.mxu0 0.0
  %954 = vmatpush2.msra.mxu0 0.0
  %955 = vmatprep.subr.mxu0 0.0
  %956 = vmatpush2.msra.mxu0 0.0
  %957 = vmatprep.subr.mxu0 0.0
  %958 = vmatpush2.msra.mxu0 0.0
  %959 = vmatprep.subr.mxu0 0.0
  %960 = vmatpush2.msra.mxu0 0.0
  %961 = vmatprep.subr.mxu0 0.0
  %962 = vmatpush2.msra.mxu0 0.0
  %963 = vmatprep.subr.mxu0 0.0
  %964 = vmatpush2.msra.mxu0 0.0
  %965 = vmatprep.mubr.f32.mxu0 0.0
  %966 = vmatmul.mubr.f32.gmra.mxu0 %v896
  %v967 = vpop.f32.mrf.mxu0
  %v968 = vadd.f32 0.0, %v967
  %v969 = vpop.f32.mrf.mxu0
  %970 = vmatprep.mubr.f32.mxu0 0.0
  %971 = vmatmul.mubr.f32.gmra.mxu0 %v899
  %v972 = vpop.f32.mrf.mxu0
  %v973 = vadd.f32 0.0, %v972
  %v974 = vpop.f32.mrf.mxu0
  %975 = vdwg.mxu0
  %v977 = vsel %vm651, %v551, 0
  %v980 = vsel %vm651, %v552, 0
  %982 = vmatprep.subr.mxu0 0.0
  %983 = vmatpush1.msra.mxu0 0.0
  %984 = vmatprep.subr.mxu0 0.0
  %985 = vmatpush1.msra.mxu0 0.0
  %986 = vmatprep.subr.mxu0 0.0
  %987 = vmatpush1.msra.mxu0 0.0
  %988 = vmatprep.subr.mxu0 0.0
  %989 = vmatpush1.msra.mxu0 0.0
  %990 = vmatprep.subr.mxu0 0.0
  %991 = vmatpush1.msra.mxu0 0.0
  %992 = vmatprep.subr.mxu0 0.0
  %993 = vmatpush1.msra.mxu0 0.0
  %994 = vmatprep.subr.mxu0 0.0
  %995 = vmatpush1.msra.mxu0 0.0
  %996 = vmatprep.subr.mxu0 0.0
  %997 = vmatpush1.msra.mxu0 0.0
  %998 = vmatprep.subr.mxu0 0.0
  %999 = vmatpush1.msra.mxu0 0.0
  %1000 = vmatprep.subr.mxu0 0.0
  %1001 = vmatpush1.msra.mxu0 0.0
  %1002 = vmatprep.subr.mxu0 0.0
  %1003 = vmatpush1.msra.mxu0 0.0
  %1004 = vmatprep.subr.mxu0 0.0
  %1005 = vmatpush1.msra.mxu0 0.0
  %1006 = vmatprep.subr.mxu0 0.0
  %1007 = vmatpush1.msra.mxu0 0.0
  %1008 = vmatprep.subr.mxu0 0.0
  %1009 = vmatpush1.msra.mxu0 0.0
  %1010 = vmatprep.subr.mxu0 0.0
  %1011 = vmatpush1.msra.mxu0 0.0
  %1012 = vmatprep.subr.mxu0 0.0
  %1013 = vmatpush1.msra.mxu0 %v619
  %1014 = vmatprep.subr.mxu0 0.0
  %1015 = vmatpush2.msra.mxu0 0.0
  %1016 = vmatprep.subr.mxu0 0.0
  %1017 = vmatpush2.msra.mxu0 0.0
  %1018 = vmatprep.subr.mxu0 0.0
  %1019 = vmatpush2.msra.mxu0 0.0
  %1020 = vmatprep.subr.mxu0 0.0
  %1021 = vmatpush2.msra.mxu0 0.0
  %1022 = vmatprep.subr.mxu0 0.0
  %1023 = vmatpush2.msra.mxu0 0.0
  %1024 = vmatprep.subr.mxu0 0.0
  %1025 = vmatpush2.msra.mxu0 0.0
  %1026 = vmatprep.subr.mxu0 0.0
  %1027 = vmatpush2.msra.mxu0 0.0
  %1028 = vmatprep.subr.mxu0 0.0
  %1029 = vmatpush2.msra.mxu0 0.0
  %1030 = vmatprep.subr.mxu0 0.0
  %1031 = vmatpush2.msra.mxu0 0.0
  %1032 = vmatprep.subr.mxu0 0.0
  %1033 = vmatpush2.msra.mxu0 0.0
  %1034 = vmatprep.subr.mxu0 0.0
  %1035 = vmatpush2.msra.mxu0 0.0
  %1036 = vmatprep.subr.mxu0 0.0
  %1037 = vmatpush2.msra.mxu0 0.0
  %1038 = vmatprep.subr.mxu0 0.0
  %1039 = vmatpush2.msra.mxu0 0.0
  %1040 = vmatprep.subr.mxu0 0.0
  %1041 = vmatpush2.msra.mxu0 0.0
  %1042 = vmatprep.subr.mxu0 0.0
  %1043 = vmatpush2.msra.mxu0 0.0
  %1044 = vmatprep.subr.mxu0 0.0
  %1045 = vmatpush2.msra.mxu0 0.0
  %1046 = vmatprep.mubr.f32.mxu0 0.0
  %1047 = vmatmul.mubr.f32.gmra.mxu0 %v977
  %v1048 = vpop.f32.mrf.mxu0
  %v1049 = vadd.f32 0.0, %v1048
  %v1050 = vpop.f32.mrf.mxu0
  %1051 = vmatprep.mubr.f32.mxu0 0.0
  %1052 = vmatmul.mubr.f32.gmra.mxu0 %v980
  %v1053 = vpop.f32.mrf.mxu0
  %v1054 = vadd.f32 0.0, %v1053
  %v1055 = vpop.f32.mrf.mxu0
  %1056 = vdwg.mxu0
  %v1058 = vsel %vm651, %v553, 0
  %v1061 = vsel %vm651, %v554, 0
  %1063 = vmatprep.subr.mxu0 0.0
  %1064 = vmatpush1.msra.mxu0 0.0
  %1065 = vmatprep.subr.mxu0 0.0
  %1066 = vmatpush1.msra.mxu0 0.0
  %1067 = vmatprep.subr.mxu0 0.0
  %1068 = vmatpush1.msra.mxu0 0.0
  %1069 = vmatprep.subr.mxu0 0.0
  %1070 = vmatpush1.msra.mxu0 0.0
  %1071 = vmatprep.subr.mxu0 0.0
  %1072 = vmatpush1.msra.mxu0 0.0
  %1073 = vmatprep.subr.mxu0 0.0
  %1074 = vmatpush1.msra.mxu0 0.0
  %1075 = vmatprep.subr.mxu0 0.0
  %1076 = vmatpush1.msra.mxu0 0.0
  %1077 = vmatprep.subr.mxu0 0.0
  %1078 = vmatpush1.msra.mxu0 0.0
  %1079 = vmatprep.subr.mxu0 0.0
  %1080 = vmatpush1.msra.mxu0 0.0
  %1081 = vmatprep.subr.mxu0 0.0
  %1082 = vmatpush1.msra.mxu0 0.0
  %1083 = vmatprep.subr.mxu0 0.0
  %1084 = vmatpush1.msra.mxu0 0.0
  %1085 = vmatprep.subr.mxu0 0.0
  %1086 = vmatpush1.msra.mxu0 0.0
  %1087 = vmatprep.subr.mxu0 0.0
  %1088 = vmatpush1.msra.mxu0 0.0
  %1089 = vmatprep.subr.mxu0 0.0
  %1090 = vmatpush1.msra.mxu0 0.0
  %1091 = vmatprep.subr.mxu0 0.0
  %1092 = vmatpush1.msra.mxu0 0.0
  %1093 = vmatprep.subr.mxu0 0.0
  %1094 = vmatpush1.msra.mxu0 %v620
  %1095 = vmatprep.subr.mxu0 0.0
  %1096 = vmatpush2.msra.mxu0 0.0
  %1097 = vmatprep.subr.mxu0 0.0
  %1098 = vmatpush2.msra.mxu0 0.0
  %1099 = vmatprep.subr.mxu0 0.0
  %1100 = vmatpush2.msra.mxu0 0.0
  %1101 = vmatprep.subr.mxu0 0.0
  %1102 = vmatpush2.msra.mxu0 0.0
  %1103 = vmatprep.subr.mxu0 0.0
  %1104 = vmatpush2.msra.mxu0 0.0
  %1105 = vmatprep.subr.mxu0 0.0
  %1106 = vmatpush2.msra.mxu0 0.0
  %1107 = vmatprep.subr.mxu0 0.0
  %1108 = vmatpush2.msra.mxu0 0.0
  %1109 = vmatprep.subr.mxu0 0.0
  %1110 = vmatpush2.msra.mxu0 0.0
  %1111 = vmatprep.subr.mxu0 0.0
  %1112 = vmatpush2.msra.mxu0 0.0
  %1113 = vmatprep.subr.mxu0 0.0
  %1114 = vmatpush2.msra.mxu0 0.0
  %1115 = vmatprep.subr.mxu0 0.0
  %1116 = vmatpush2.msra.mxu0 0.0
  %1117 = vmatprep.subr.mxu0 0.0
  %1118 = vmatpush2.msra.mxu0 0.0
  %1119 = vmatprep.subr.mxu0 0.0
  %1120 = vmatpush2.msra.mxu0 0.0
  %1121 = vmatprep.subr.mxu0 0.0
  %1122 = vmatpush2.msra.mxu0 0.0
  %1123 = vmatprep.subr.mxu0 0.0
  %1124 = vmatpush2.msra.mxu0 0.0
  %1125 = vmatprep.subr.mxu0 0.0
  %1126 = vmatpush2.msra.mxu0 0.0
  %1127 = vmatprep.mubr.f32.mxu0 0.0
  %1128 = vmatmul.mubr.f32.gmra.mxu0 %v1058
  %v1129 = vpop.f32.mrf.mxu0
  %v1130 = vadd.f32 0.0, %v1129
  %v1131 = vpop.f32.mrf.mxu0
  %1132 = vmatprep.mubr.f32.mxu0 0.0
  %1133 = vmatmul.mubr.f32.gmra.mxu0 %v1061
  %v1134 = vpop.f32.mrf.mxu0
  %v1135 = vadd.f32 0.0, %v1134
  %v1136 = vpop.f32.mrf.mxu0
  %1137 = vdwg.mxu0
  %v1139 = vsel %vm651, %v555, 0
  %v1142 = vsel %vm651, %v556, 0
  %1144 = vmatprep.subr.mxu0 0.0
  %1145 = vmatpush1.msra.mxu0 0.0
  %1146 = vmatprep.subr.mxu0 0.0
  %1147 = vmatpush1.msra.mxu0 0.0
  %1148 = vmatprep.subr.mxu0 0.0
  %1149 = vmatpush1.msra.mxu0 0.0
  %1150 = vmatprep.subr.mxu0 0.0
  %1151 = vmatpush1.msra.mxu0 0.0
  %1152 = vmatprep.subr.mxu0 0.0
  %1153 = vmatpush1.msra.mxu0 0.0
  %1154 = vmatprep.subr.mxu0 0.0
  %1155 = vmatpush1.msra.mxu0 0.0
  %1156 = vmatprep.subr.mxu0 0.0
  %1157 = vmatpush1.msra.mxu0 0.0
  %1158 = vmatprep.subr.mxu0 0.0
  %1159 = vmatpush1.msra.mxu0 0.0
  %1160 = vmatprep.subr.mxu0 0.0
  %1161 = vmatpush1.msra.mxu0 0.0
  %1162 = vmatprep.subr.mxu0 0.0
  %1163 = vmatpush1.msra.mxu0 0.0
  %1164 = vmatprep.subr.mxu0 0.0
  %1165 = vmatpush1.msra.mxu0 0.0
  %1166 = vmatprep.subr.mxu0 0.0
  %1167 = vmatpush1.msra.mxu0 0.0
  %1168 = vmatprep.subr.mxu0 0.0
  %1169 = vmatpush1.msra.mxu0 0.0
  %1170 = vmatprep.subr.mxu0 0.0
  %1171 = vmatpush1.msra.mxu0 0.0
  %1172 = vmatprep.subr.mxu0 0.0
  %1173 = vmatpush1.msra.mxu0 0.0
  %1174 = vmatprep.subr.mxu0 0.0
  %1175 = vmatpush1.msra.mxu0 %v621
  %1176 = vmatprep.subr.mxu0 0.0
  %1177 = vmatpush2.msra.mxu0 0.0
  %1178 = vmatprep.subr.mxu0 0.0
  %1179 = vmatpush2.msra.mxu0 0.0
  %1180 = vmatprep.subr.mxu0 0.0
  %1181 = vmatpush2.msra.mxu0 0.0
  %1182 = vmatprep.subr.mxu0 0.0
  %1183 = vmatpush2.msra.mxu0 0.0
  %1184 = vmatprep.subr.mxu0 0.0
  %1185 = vmatpush2.msra.mxu0 0.0
  %1186 = vmatprep.subr.mxu0 0.0
  %1187 = vmatpush2.msra.mxu0 0.0
  %1188 = vmatprep.subr.mxu0 0.0
  %1189 = vmatpush2.msra.mxu0 0.0
  %1190 = vmatprep.subr.mxu0 0.0
  %1191 = vmatpush2.msra.mxu0 0.0
  %1192 = vmatprep.subr.mxu0 0.0
  %1193 = vmatpush2.msra.mxu0 0.0
  %1194 = vmatprep.subr.mxu0 0.0
  %1195 = vmatpush2.msra.mxu0 0.0
  %1196 = vmatprep.subr.mxu0 0.0
  %1197 = vmatpush2.msra.mxu0 0.0
  %1198 = vmatprep.subr.mxu0 0.0
  %1199 = vmatpush2.msra.mxu0 0.0
  %1200 = vmatprep.subr.mxu0 0.0
  %1201 = vmatpush2.msra.mxu0 0.0
  %1202 = vmatprep.subr.mxu0 0.0
  %1203 = vmatpush2.msra.mxu0 0.0
  %1204 = vmatprep.subr.mxu0 0.0
  %1205 = vmatpush2.msra.mxu0 0.0
  %1206 = vmatprep.subr.mxu0 0.0
  %1207 = vmatpush2.msra.mxu0 0.0
  %1208 = vmatprep.mubr.f32.mxu0 0.0
  %1209 = vmatmul.mubr.f32.gmra.mxu0 %v1139
  %v1210 = vpop.f32.mrf.mxu0
  %v1211 = vadd.f32 0.0, %v1210
  %v1212 = vpop.f32.mrf.mxu0
  %1213 = vmatprep.mubr.f32.mxu0 0.0
  %1214 = vmatmul.mubr.f32.gmra.mxu0 %v1142
  %v1215 = vpop.f32.mrf.mxu0
  %v1216 = vadd.f32 0.0, %v1215
  %v1217 = vpop.f32.mrf.mxu0
  %1218 = vdwg.mxu0
  %v1220 = vsel %vm651, %v557, 0
  %v1223 = vsel %vm651, %v558, 0
  %1225 = vmatprep.subr.mxu0 0.0
  %1226 = vmatpush1.msra.mxu0 0.0
  %1227 = vmatprep.subr.mxu0 0.0
  %1228 = vmatpush1.msra.mxu0 0.0
  %1229 = vmatprep.subr.mxu0 0.0
  %1230 = vmatpush1.msra.mxu0 0.0
  %1231 = vmatprep.subr.mxu0 0.0
  %1232 = vmatpush1.msra.mxu0 0.0
  %1233 = vmatprep.subr.mxu0 0.0
  %1234 = vmatpush1.msra.mxu0 0.0
  %1235 = vmatprep.subr.mxu0 0.0
  %1236 = vmatpush1.msra.mxu0 0.0
  %1237 = vmatprep.subr.mxu0 0.0
  %1238 = vmatpush1.msra.mxu0 0.0
  %1239 = vmatprep.subr.mxu0 0.0
  %1240 = vmatpush1.msra.mxu0 0.0
  %1241 = vmatprep.subr.mxu0 0.0
  %1242 = vmatpush1.msra.mxu0 0.0
  %1243 = vmatprep.subr.mxu0 0.0
  %1244 = vmatpush1.msra.mxu0 0.0
  %1245 = vmatprep.subr.mxu0 0.0
  %1246 = vmatpush1.msra.mxu0 0.0
  %1247 = vmatprep.subr.mxu0 0.0
  %1248 = vmatpush1.msra.mxu0 0.0
  %1249 = vmatprep.subr.mxu0 0.0
  %1250 = vmatpush1.msra.mxu0 0.0
  %1251 = vmatprep.subr.mxu0 0.0
  %1252 = vmatpush1.msra.mxu0 0.0
  %1253 = vmatprep.subr.mxu0 0.0
  %1254 = vmatpush1.msra.mxu0 0.0
  %1255 = vmatprep.subr.mxu0 0.0
  %1256 = vmatpush1.msra.mxu0 %v622
  %1257 = vmatprep.subr.mxu0 0.0
  %1258 = vmatpush2.msra.mxu0 0.0
  %1259 = vmatprep.subr.mxu0 0.0
  %1260 = vmatpush2.msra.mxu0 0.0
  %1261 = vmatprep.subr.mxu0 0.0
  %1262 = vmatpush2.msra.mxu0 0.0
  %1263 = vmatprep.subr.mxu0 0.0
  %1264 = vmatpush2.msra.mxu0 0.0
  %1265 = vmatprep.subr.mxu0 0.0
  %1266 = vmatpush2.msra.mxu0 0.0
  %1267 = vmatprep.subr.mxu0 0.0
  %1268 = vmatpush2.msra.mxu0 0.0
  %1269 = vmatprep.subr.mxu0 0.0
  %1270 = vmatpush2.msra.mxu0 0.0
  %1271 = vmatprep.subr.mxu0 0.0
  %1272 = vmatpush2.msra.mxu0 0.0
  %1273 = vmatprep.subr.mxu0 0.0
  %1274 = vmatpush2.msra.mxu0 0.0
  %1275 = vmatprep.subr.mxu0 0.0
  %1276 = vmatpush2.msra.mxu0 0.0
  %1277 = vmatprep.subr.mxu0 0.0
  %1278 = vmatpush2.msra.mxu0 0.0
  %1279 = vmatprep.subr.mxu0 0.0
  %1280 = vmatpush2.msra.mxu0 0.0
  %1281 = vmatprep.subr.mxu0 0.0
  %1282 = vmatpush2.msra.mxu0 0.0
  %1283 = vmatprep.subr.mxu0 0.0
  %1284 = vmatpush2.msra.mxu0 0.0
  %1285 = vmatprep.subr.mxu0 0.0
  %1286 = vmatpush2.msra.mxu0 0.0
  %1287 = vmatprep.subr.mxu0 0.0
  %1288 = vmatpush2.msra.mxu0 0.0
  %1289 = vmatprep.mubr.f32.mxu0 0.0
  %1290 = vmatmul.mubr.f32.gmra.mxu0 %v1220
  %v1291 = vpop.f32.mrf.mxu0
  %v1292 = vadd.f32 0.0, %v1291
  %v1293 = vpop.f32.mrf.mxu0
  %1294 = vmatprep.mubr.f32.mxu0 0.0
  %1295 = vmatmul.mubr.f32.gmra.mxu0 %v1223
  %v1296 = vpop.f32.mrf.mxu0
  %v1297 = vadd.f32 0.0, %v1296
  %v1298 = vpop.f32.mrf.mxu0
  %1299 = vdwg.mxu0
  %v1301 = vsel %vm651, %v559, 0
  %v1304 = vsel %vm651, %v560, 0
  %1306 = vmatprep.subr.mxu0 0.0
  %1307 = vmatpush1.msra.mxu0 0.0
  %1308 = vmatprep.subr.mxu0 0.0
  %1309 = vmatpush1.msra.mxu0 0.0
  %1310 = vmatprep.subr.mxu0 0.0
  %1311 = vmatpush1.msra.mxu0 0.0
  %1312 = vmatprep.subr.mxu0 0.0
  %1313 = vmatpush1.msra.mxu0 0.0
  %1314 = vmatprep.subr.mxu0 0.0
  %1315 = vmatpush1.msra.mxu0 0.0
  %1316 = vmatprep.subr.mxu0 0.0
  %1317 = vmatpush1.msra.mxu0 0.0
  %1318 = vmatprep.subr.mxu0 0.0
  %1319 = vmatpush1.msra.mxu0 0.0
  %1320 = vmatprep.subr.mxu0 0.0
  %1321 = vmatpush1.msra.mxu0 0.0
  %1322 = vmatprep.subr.mxu0 0.0
  %1323 = vmatpush1.msra.mxu0 0.0
  %1324 = vmatprep.subr.mxu0 0.0
  %1325 = vmatpush1.msra.mxu0 0.0
  %1326 = vmatprep.subr.mxu0 0.0
  %1327 = vmatpush1.msra.mxu0 0.0
  %1328 = vmatprep.subr.mxu0 0.0
  %1329 = vmatpush1.msra.mxu0 0.0
  %1330 = vmatprep.subr.mxu0 0.0
  %1331 = vmatpush1.msra.mxu0 0.0
  %1332 = vmatprep.subr.mxu0 0.0
  %1333 = vmatpush1.msra.mxu0 0.0
  %1334 = vmatprep.subr.mxu0 0.0
  %1335 = vmatpush1.msra.mxu0 0.0
  %1336 = vmatprep.subr.mxu0 0.0
  %1337 = vmatpush1.msra.mxu0 %v623
  %1338 = vmatprep.subr.mxu0 0.0
  %1339 = vmatpush2.msra.mxu0 0.0
  %1340 = vmatprep.subr.mxu0 0.0
  %1341 = vmatpush2.msra.mxu0 0.0
  %1342 = vmatprep.subr.mxu0 0.0
  %1343 = vmatpush2.msra.mxu0 0.0
  %1344 = vmatprep.subr.mxu0 0.0
  %1345 = vmatpush2.msra.mxu0 0.0
  %1346 = vmatprep.subr.mxu0 0.0
  %1347 = vmatpush2.msra.mxu0 0.0
  %1348 = vmatprep.subr.mxu0 0.0
  %1349 = vmatpush2.msra.mxu0 0.0
  %1350 = vmatprep.subr.mxu0 0.0
  %1351 = vmatpush2.msra.mxu0 0.0
  %1352 = vmatprep.subr.mxu0 0.0
  %1353 = vmatpush2.msra.mxu0 0.0
  %1354 = vmatprep.subr.mxu0 0.0
  %1355 = vmatpush2.msra.mxu0 0.0
  %1356 = vmatprep.subr.mxu0 0.0
  %1357 = vmatpush2.msra.mxu0 0.0
  %1358 = vmatprep.subr.mxu0 0.0
  %1359 = vmatpush2.msra.mxu0 0.0
  %1360 = vmatprep.subr.mxu0 0.0
  %1361 = vmatpush2.msra.mxu0 0.0
  %1362 = vmatprep.subr.mxu0 0.0
  %1363 = vmatpush2.msra.mxu0 0.0
  %1364 = vmatprep.subr.mxu0 0.0
  %1365 = vmatpush2.msra.mxu0 0.0
  %1366 = vmatprep.subr.mxu0 0.0
  %1367 = vmatpush2.msra.mxu0 0.0
  %1368 = vmatprep.subr.mxu0 0.0
  %1369 = vmatpush2.msra.mxu0 0.0
  %1370 = vmatprep.mubr.f32.mxu0 0.0
  %1371 = vmatmul.mubr.f32.gmra.mxu0 %v1301
  %v1372 = vpop.f32.mrf.mxu0
  %v1373 = vadd.f32 0.0, %v1372
  %v1374 = vpop.f32.mrf.mxu0
  %1375 = vmatprep.mubr.f32.mxu0 0.0
  %1376 = vmatmul.mubr.f32.gmra.mxu0 %v1304
  %v1377 = vpop.f32.mrf.mxu0
  %v1378 = vadd.f32 0.0, %v1377
  %v1379 = vpop.f32.mrf.mxu0
  %1380 = vdwg.mxu0
  %v1382 = vsel %vm651, %v561, 0
  %v1385 = vsel %vm651, %v562, 0
  %1387 = vmatprep.subr.mxu0 0.0
  %1388 = vmatpush1.msra.mxu0 0.0
  %1389 = vmatprep.subr.mxu0 0.0
  %1390 = vmatpush1.msra.mxu0 0.0
  %1391 = vmatprep.subr.mxu0 0.0
  %1392 = vmatpush1.msra.mxu0 0.0
  %1393 = vmatprep.subr.mxu0 0.0
  %1394 = vmatpush1.msra.mxu0 0.0
  %1395 = vmatprep.subr.mxu0 0.0
  %1396 = vmatpush1.msra.mxu0 0.0
  %1397 = vmatprep.subr.mxu0 0.0
  %1398 = vmatpush1.msra.mxu0 0.0
  %1399 = vmatprep.subr.mxu0 0.0
  %1400 = vmatpush1.msra.mxu0 0.0
  %1401 = vmatprep.subr.mxu0 0.0
  %1402 = vmatpush1.msra.mxu0 0.0
  %1403 = vmatprep.subr.mxu0 0.0
  %1404 = vmatpush1.msra.mxu0 0.0
  %1405 = vmatprep.subr.mxu0 0.0
  %1406 = vmatpush1.msra.mxu0 0.0
  %1407 = vmatprep.subr.mxu0 0.0
  %1408 = vmatpush1.msra.mxu0 0.0
  %1409 = vmatprep.subr.mxu0 0.0
  %1410 = vmatpush1.msra.mxu0 0.0
  %1411 = vmatprep.subr.mxu0 0.0
  %1412 = vmatpush1.msra.mxu0 0.0
  %1413 = vmatprep.subr.mxu0 0.0
  %1414 = vmatpush1.msra.mxu0 0.0
  %1415 = vmatprep.subr.mxu0 0.0
  %1416 = vmatpush1.msra.mxu0 0.0
  %1417 = vmatprep.subr.mxu0 0.0
  %1418 = vmatpush1.msra.mxu0 %v624
  %1419 = vmatprep.subr.mxu0 0.0
  %1420 = vmatpush2.msra.mxu0 0.0
  %1421 = vmatprep.subr.mxu0 0.0
  %1422 = vmatpush2.msra.mxu0 0.0
  %1423 = vmatprep.subr.mxu0 0.0
  %1424 = vmatpush2.msra.mxu0 0.0
  %1425 = vmatprep.subr.mxu0 0.0
  %1426 = vmatpush2.msra.mxu0 0.0
  %1427 = vmatprep.subr.mxu0 0.0
  %1428 = vmatpush2.msra.mxu0 0.0
  %1429 = vmatprep.subr.mxu0 0.0
  %1430 = vmatpush2.msra.mxu0 0.0
  %1431 = vmatprep.subr.mxu0 0.0
  %1432 = vmatpush2.msra.mxu0 0.0
  %1433 = vmatprep.subr.mxu0 0.0
  %1434 = vmatpush2.msra.mxu0 0.0
  %1435 = vmatprep.subr.mxu0 0.0
  %1436 = vmatpush2.msra.mxu0 0.0
  %1437 = vmatprep.subr.mxu0 0.0
  %1438 = vmatpush2.msra.mxu0 0.0
  %1439 = vmatprep.subr.mxu0 0.0
  %1440 = vmatpush2.msra.mxu0 0.0
  %1441 = vmatprep.subr.mxu0 0.0
  %1442 = vmatpush2.msra.mxu0 0.0
  %1443 = vmatprep.subr.mxu0 0.0
  %1444 = vmatpush2.msra.mxu0 0.0
  %1445 = vmatprep.subr.mxu0 0.0
  %1446 = vmatpush2.msra.mxu0 0.0
  %1447 = vmatprep.subr.mxu0 0.0
  %1448 = vmatpush2.msra.mxu0 0.0
  %1449 = vmatprep.subr.mxu0 0.0
  %1450 = vmatpush2.msra.mxu0 0.0
  %1451 = vmatprep.mubr.f32.mxu0 0.0
  %1452 = vmatmul.mubr.f32.gmra.mxu0 %v1382
  %v1453 = vpop.f32.mrf.mxu0
  %v1454 = vadd.f32 0.0, %v1453
  %v1455 = vpop.f32.mrf.mxu0
  %1456 = vmatprep.mubr.f32.mxu0 0.0
  %1457 = vmatmul.mubr.f32.gmra.mxu0 %v1385
  %v1458 = vpop.f32.mrf.mxu0
  %v1459 = vadd.f32 0.0, %v1458
  %v1460 = vpop.f32.mrf.mxu0
  %1461 = vdwg.mxu0
  %v1463 = vsel %vm651, %v563, 0
  %v1466 = vsel %vm651, %v564, 0
  %1468 = vmatprep.subr.mxu0 0.0
  %1469 = vmatpush1.msra.mxu0 0.0
  %1470 = vmatprep.subr.mxu0 0.0
  %1471 = vmatpush1.msra.mxu0 0.0
  %1472 = vmatprep.subr.mxu0 0.0
  %1473 = vmatpush1.msra.mxu0 0.0
  %1474 = vmatprep.subr.mxu0 0.0
  %1475 = vmatpush1.msra.mxu0 0.0
  %1476 = vmatprep.subr.mxu0 0.0
  %1477 = vmatpush1.msra.mxu0 0.0
  %1478 = vmatprep.subr.mxu0 0.0
  %1479 = vmatpush1.msra.mxu0 0.0
  %1480 = vmatprep.subr.mxu0 0.0
  %1481 = vmatpush1.msra.mxu0 0.0
  %1482 = vmatprep.subr.mxu0 0.0
  %1483 = vmatpush1.msra.mxu0 0.0
  %1484 = vmatprep.subr.mxu0 0.0
  %1485 = vmatpush1.msra.mxu0 0.0
  %1486 = vmatprep.subr.mxu0 0.0
  %1487 = vmatpush1.msra.mxu0 0.0
  %1488 = vmatprep.subr.mxu0 0.0
  %1489 = vmatpush1.msra.mxu0 0.0
  %1490 = vmatprep.subr.mxu0 0.0
  %1491 = vmatpush1.msra.mxu0 0.0
  %1492 = vmatprep.subr.mxu0 0.0
  %1493 = vmatpush1.msra.mxu0 0.0
  %1494 = vmatprep.subr.mxu0 0.0
  %1495 = vmatpush1.msra.mxu0 0.0
  %1496 = vmatprep.subr.mxu0 0.0
  %1497 = vmatpush1.msra.mxu0 0.0
  %1498 = vmatprep.subr.mxu0 0.0
  %1499 = vmatpush1.msra.mxu0 %v625
  %1500 = vmatprep.subr.mxu0 0.0
  %1501 = vmatpush2.msra.mxu0 0.0
  %1502 = vmatprep.subr.mxu0 0.0
  %1503 = vmatpush2.msra.mxu0 0.0
  %1504 = vmatprep.subr.mxu0 0.0
  %1505 = vmatpush2.msra.mxu0 0.0
  %1506 = vmatprep.subr.mxu0 0.0
  %1507 = vmatpush2.msra.mxu0 0.0
  %1508 = vmatprep.subr.mxu0 0.0
  %1509 = vmatpush2.msra.mxu0 0.0
  %1510 = vmatprep.subr.mxu0 0.0
  %1511 = vmatpush2.msra.mxu0 0.0
  %1512 = vmatprep.subr.mxu0 0.0
  %1513 = vmatpush2.msra.mxu0 0.0
  %1514 = vmatprep.subr.mxu0 0.0
  %1515 = vmatpush2.msra.mxu0 0.0
  %1516 = vmatprep.subr.mxu0 0.0
  %1517 = vmatpush2.msra.mxu0 0.0
  %1518 = vmatprep.subr.mxu0 0.0
  %1519 = vmatpush2.msra.mxu0 0.0
  %1520 = vmatprep.subr.mxu0 0.0
  %1521 = vmatpush2.msra.mxu0 0.0
  %1522 = vmatprep.subr.mxu0 0.0
  %1523 = vmatpush2.msra.mxu0 0.0
  %1524 = vmatprep.subr.mxu0 0.0
  %1525 = vmatpush2.msra.mxu0 0.0
  %1526 = vmatprep.subr.mxu0 0.0
  %1527 = vmatpush2.msra.mxu0 0.0
  %1528 = vmatprep.subr.mxu0 0.0
  %1529 = vmatpush2.msra.mxu0 0.0
  %1530 = vmatprep.subr.mxu0 0.0
  %1531 = vmatpush2.msra.mxu0 0.0
  %1532 = vmatprep.mubr.f32.mxu0 0.0
  %1533 = vmatmul.mubr.f32.gmra.mxu0 %v1463
  %v1534 = vpop.f32.mrf.mxu0
  %v1535 = vadd.f32 0.0, %v1534
  %v1536 = vpop.f32.mrf.mxu0
  %1537 = vmatprep.mubr.f32.mxu0 0.0
  %1538 = vmatmul.mubr.f32.gmra.mxu0 %v1466
  %v1539 = vpop.f32.mrf.mxu0
  %v1540 = vadd.f32 0.0, %v1539
  %v1541 = vpop.f32.mrf.mxu0
  %1542 = vdwg.mxu0
  %v1544 = vsel %vm651, %v565, 0
  %v1547 = vsel %vm651, %v566, 0
  %1549 = vmatprep.subr.mxu0 0.0
  %1550 = vmatpush1.msra.mxu0 0.0
  %1551 = vmatprep.subr.mxu0 0.0
  %1552 = vmatpush1.msra.mxu0 0.0
  %1553 = vmatprep.subr.mxu0 0.0
  %1554 = vmatpush1.msra.mxu0 0.0
  %1555 = vmatprep.subr.mxu0 0.0
  %1556 = vmatpush1.msra.mxu0 0.0
  %1557 = vmatprep.subr.mxu0 0.0
  %1558 = vmatpush1.msra.mxu0 0.0
  %1559 = vmatprep.subr.mxu0 0.0
  %1560 = vmatpush1.msra.mxu0 0.0
  %1561 = vmatprep.subr.mxu0 0.0
  %1562 = vmatpush1.msra.mxu0 0.0
  %1563 = vmatprep.subr.mxu0 0.0
  %1564 = vmatpush1.msra.mxu0 0.0
  %1565 = vmatprep.subr.mxu0 0.0
  %1566 = vmatpush1.msra.mxu0 0.0
  %1567 = vmatprep.subr.mxu0 0.0
  %1568 = vmatpush1.msra.mxu0 0.0
  %1569 = vmatprep.subr.mxu0 0.0
  %1570 = vmatpush1.msra.mxu0 0.0
  %1571 = vmatprep.subr.mxu0 0.0
  %1572 = vmatpush1.msra.mxu0 0.0
  %1573 = vmatprep.subr.mxu0 0.0
  %1574 = vmatpush1.msra.mxu0 0.0
  %1575 = vmatprep.subr.mxu0 0.0
  %1576 = vmatpush1.msra.mxu0 0.0
  %1577 = vmatprep.subr.mxu0 0.0
  %1578 = vmatpush1.msra.mxu0 0.0
  %1579 = vmatprep.subr.mxu0 0.0
  %1580 = vmatpush1.msra.mxu0 %v626
  %1581 = vmatprep.subr.mxu0 0.0
  %1582 = vmatpush2.msra.mxu0 0.0
  %1583 = vmatprep.subr.mxu0 0.0
  %1584 = vmatpush2.msra.mxu0 0.0
  %1585 = vmatprep.subr.mxu0 0.0
  %1586 = vmatpush2.msra.mxu0 0.0
  %1587 = vmatprep.subr.mxu0 0.0
  %1588 = vmatpush2.msra.mxu0 0.0
  %1589 = vmatprep.subr.mxu0 0.0
  %1590 = vmatpush2.msra.mxu0 0.0
  %1591 = vmatprep.subr.mxu0 0.0
  %1592 = vmatpush2.msra.mxu0 0.0
  %1593 = vmatprep.subr.mxu0 0.0
  %1594 = vmatpush2.msra.mxu0 0.0
  %1595 = vmatprep.subr.mxu0 0.0
  %1596 = vmatpush2.msra.mxu0 0.0
  %1597 = vmatprep.subr.mxu0 0.0
  %1598 = vmatpush2.msra.mxu0 0.0
  %1599 = vmatprep.subr.mxu0 0.0
  %1600 = vmatpush2.msra.mxu0 0.0
  %1601 = vmatprep.subr.mxu0 0.0
  %1602 = vmatpush2.msra.mxu0 0.0
  %1603 = vmatprep.subr.mxu0 0.0
  %1604 = vmatpush2.msra.mxu0 0.0
  %1605 = vmatprep.subr.mxu0 0.0
  %1606 = vmatpush2.msra.mxu0 0.0
  %1607 = vmatprep.subr.mxu0 0.0
  %1608 = vmatpush2.msra.mxu0 0.0
  %1609 = vmatprep.subr.mxu0 0.0
  %1610 = vmatpush2.msra.mxu0 0.0
  %1611 = vmatprep.subr.mxu0 0.0
  %1612 = vmatpush2.msra.mxu0 0.0
  %1613 = vmatprep.mubr.f32.mxu0 0.0
  %1614 = vmatmul.mubr.f32.gmra.mxu0 %v1544
  %v1615 = vpop.f32.mrf.mxu0
  %v1616 = vadd.f32 0.0, %v1615
  %v1617 = vpop.f32.mrf.mxu0
  %1618 = vmatprep.mubr.f32.mxu0 0.0
  %1619 = vmatmul.mubr.f32.gmra.mxu0 %v1547
  %v1620 = vpop.f32.mrf.mxu0
  %v1621 = vadd.f32 0.0, %v1620
  %v1622 = vpop.f32.mrf.mxu0
  %1623 = vdwg.mxu0
  %v1625 = vsel %vm651, %v567, 0
  %v1628 = vsel %vm651, %v568, 0
  %1630 = vmatprep.subr.mxu0 0.0
  %1631 = vmatpush1.msra.mxu0 0.0
  %1632 = vmatprep.subr.mxu0 0.0
  %1633 = vmatpush1.msra.mxu0 0.0
  %1634 = vmatprep.subr.mxu0 0.0
  %1635 = vmatpush1.msra.mxu0 0.0
  %1636 = vmatprep.subr.mxu0 0.0
  %1637 = vmatpush1.msra.mxu0 0.0
  %1638 = vmatprep.subr.mxu0 0.0
  %1639 = vmatpush1.msra.mxu0 0.0
  %1640 = vmatprep.subr.mxu0 0.0
  %1641 = vmatpush1.msra.mxu0 0.0
  %1642 = vmatprep.subr.mxu0 0.0
  %1643 = vmatpush1.msra.mxu0 0.0
  %1644 = vmatprep.subr.mxu0 0.0
  %1645 = vmatpush1.msra.mxu0 0.0
  %1646 = vmatprep.subr.mxu0 0.0
  %1647 = vmatpush1.msra.mxu0 0.0
  %1648 = vmatprep.subr.mxu0 0.0
  %1649 = vmatpush1.msra.mxu0 0.0
  %1650 = vmatprep.subr.mxu0 0.0
  %1651 = vmatpush1.msra.mxu0 0.0
  %1652 = vmatprep.subr.mxu0 0.0
  %1653 = vmatpush1.msra.mxu0 0.0
  %1654 = vmatprep.subr.mxu0 0.0
  %1655 = vmatpush1.msra.mxu0 0.0
  %1656 = vmatprep.subr.mxu0 0.0
  %1657 = vmatpush1.msra.mxu0 0.0
  %1658 = vmatprep.subr.mxu0 0.0
  %1659 = vmatpush1.msra.mxu0 0.0
  %1660 = vmatprep.subr.mxu0 0.0
  %1661 = vmatpush1.msra.mxu0 %v627
  %1662 = vmatprep.subr.mxu0 0.0
  %1663 = vmatpush2.msra.mxu0 0.0
  %1664 = vmatprep.subr.mxu0 0.0
  %1665 = vmatpush2.msra.mxu0 0.0
  %1666 = vmatprep.subr.mxu0 0.0
  %1667 = vmatpush2.msra.mxu0 0.0
  %1668 = vmatprep.subr.mxu0 0.0
  %1669 = vmatpush2.msra.mxu0 0.0
  %1670 = vmatprep.subr.mxu0 0.0
  %1671 = vmatpush2.msra.mxu0 0.0
  %1672 = vmatprep.subr.mxu0 0.0
  %1673 = vmatpush2.msra.mxu0 0.0
  %1674 = vmatprep.subr.mxu0 0.0
  %1675 = vmatpush2.msra.mxu0 0.0
  %1676 = vmatprep.subr.mxu0 0.0
  %1677 = vmatpush2.msra.mxu0 0.0
  %1678 = vmatprep.subr.mxu0 0.0
  %1679 = vmatpush2.msra.mxu0 0.0
  %1680 = vmatprep.subr.mxu0 0.0
  %1681 = vmatpush2.msra.mxu0 0.0
  %1682 = vmatprep.subr.mxu0 0.0
  %1683 = vmatpush2.msra.mxu0 0.0
  %1684 = vmatprep.subr.mxu0 0.0
  %1685 = vmatpush2.msra.mxu0 0.0
  %1686 = vmatprep.subr.mxu0 0.0
  %1687 = vmatpush2.msra.mxu0 0.0
  %1688 = vmatprep.subr.mxu0 0.0
  %1689 = vmatpush2.msra.mxu0 0.0
  %1690 = vmatprep.subr.mxu0 0.0
  %1691 = vmatpush2.msra.mxu0 0.0
  %1692 = vmatprep.subr.mxu0 0.0
  %1693 = vmatpush2.msra.mxu0 0.0
  %1694 = vmatprep.mubr.f32.mxu0 0.0
  %1695 = vmatmul.mubr.f32.gmra.mxu0 %v1625
  %v1696 = vpop.f32.mrf.mxu0
  %v1697 = vadd.f32 0.0, %v1696
  %v1698 = vpop.f32.mrf.mxu0
  %1699 = vmatprep.mubr.f32.mxu0 0.0
  %1700 = vmatmul.mubr.f32.gmra.mxu0 %v1628
  %v1701 = vpop.f32.mrf.mxu0
  %v1702 = vadd.f32 0.0, %v1701
  %v1703 = vpop.f32.mrf.mxu0
  %1704 = vdwg.mxu0
  %v1706 = vsel %vm651, %v569, 0
  %v1709 = vsel %vm651, %v570, 0
  %1711 = vmatprep.subr.mxu0 0.0
  %1712 = vmatpush1.msra.mxu0 0.0
  %1713 = vmatprep.subr.mxu0 0.0
  %1714 = vmatpush1.msra.mxu0 0.0
  %1715 = vmatprep.subr.mxu0 0.0
  %1716 = vmatpush1.msra.mxu0 0.0
  %1717 = vmatprep.subr.mxu0 0.0
  %1718 = vmatpush1.msra.mxu0 0.0
  %1719 = vmatprep.subr.mxu0 0.0
  %1720 = vmatpush1.msra.mxu0 0.0
  %1721 = vmatprep.subr.mxu0 0.0
  %1722 = vmatpush1.msra.mxu0 0.0
  %1723 = vmatprep.subr.mxu0 0.0
  %1724 = vmatpush1.msra.mxu0 0.0
  %1725 = vmatprep.subr.mxu0 0.0
  %1726 = vmatpush1.msra.mxu0 0.0
  %1727 = vmatprep.subr.mxu0 0.0
  %1728 = vmatpush1.msra.mxu0 0.0
  %1729 = vmatprep.subr.mxu0 0.0
  %1730 = vmatpush1.msra.mxu0 0.0
  %1731 = vmatprep.subr.mxu0 0.0
  %1732 = vmatpush1.msra.mxu0 0.0
  %1733 = vmatprep.subr.mxu0 0.0
  %1734 = vmatpush1.msra.mxu0 0.0
  %1735 = vmatprep.subr.mxu0 0.0
  %1736 = vmatpush1.msra.mxu0 0.0
  %1737 = vmatprep.subr.mxu0 0.0
  %1738 = vmatpush1.msra.mxu0 0.0
  %1739 = vmatprep.subr.mxu0 0.0
  %1740 = vmatpush1.msra.mxu0 0.0
  %1741 = vmatprep.subr.mxu0 0.0
  %1742 = vmatpush1.msra.mxu0 %v628
  %1743 = vmatprep.subr.mxu0 0.0
  %1744 = vmatpush2.msra.mxu0 0.0
  %1745 = vmatprep.subr.mxu0 0.0
  %1746 = vmatpush2.msra.mxu0 0.0
  %1747 = vmatprep.subr.mxu0 0.0
  %1748 = vmatpush2.msra.mxu0 0.0
  %1749 = vmatprep.subr.mxu0 0.0
  %1750 = vmatpush2.msra.mxu0 0.0
  %1751 = vmatprep.subr.mxu0 0.0
  %1752 = vmatpush2.msra.mxu0 0.0
  %1753 = vmatprep.subr.mxu0 0.0
  %1754 = vmatpush2.msra.mxu0 0.0
  %1755 = vmatprep.subr.mxu0 0.0
  %1756 = vmatpush2.msra.mxu0 0.0
  %1757 = vmatprep.subr.mxu0 0.0
  %1758 = vmatpush2.msra.mxu0 0.0
  %1759 = vmatprep.subr.mxu0 0.0
  %1760 = vmatpush2.msra.mxu0 0.0
  %1761 = vmatprep.subr.mxu0 0.0
  %1762 = vmatpush2.msra.mxu0 0.0
  %1763 = vmatprep.subr.mxu0 0.0
  %1764 = vmatpush2.msra.mxu0 0.0
  %1765 = vmatprep.subr.mxu0 0.0
  %1766 = vmatpush2.msra.mxu0 0.0
  %1767 = vmatprep.subr.mxu0 0.0
  %1768 = vmatpush2.msra.mxu0 0.0
  %1769 = vmatprep.subr.mxu0 0.0
  %1770 = vmatpush2.msra.mxu0 0.0
  %1771 = vmatprep.subr.mxu0 0.0
  %1772 = vmatpush2.msra.mxu0 0.0
  %1773 = vmatprep.subr.mxu0 0.0
  %1774 = vmatpush2.msra.mxu0 0.0
  %1775 = vmatprep.mubr.f32.mxu0 0.0
  %1776 = vmatmul.mubr.f32.gmra.mxu0 %v1706
  %v1777 = vpop.f32.mrf.mxu0
  %v1778 = vadd.f32 0.0, %v1777
  %v1779 = vpop.f32.mrf.mxu0
  %1780 = vmatprep.mubr.f32.mxu0 0.0
  %1781 = vmatmul.mubr.f32.gmra.mxu0 %v1709
  %v1782 = vpop.f32.mrf.mxu0
  %v1783 = vadd.f32 0.0, %v1782
  %v1784 = vpop.f32.mrf.mxu0
  %1785 = vdwg.mxu0
  %v1787 = vsel %vm651, %v571, 0
  %v1790 = vsel %vm651, %v572, 0
  %1792 = vmatprep.subr.mxu0 0.0
  %1793 = vmatpush1.msra.mxu0 0.0
  %1794 = vmatprep.subr.mxu0 0.0
  %1795 = vmatpush1.msra.mxu0 0.0
  %1796 = vmatprep.subr.mxu0 0.0
  %1797 = vmatpush1.msra.mxu0 0.0
  %1798 = vmatprep.subr.mxu0 0.0
  %1799 = vmatpush1.msra.mxu0 0.0
  %1800 = vmatprep.subr.mxu0 0.0
  %1801 = vmatpush1.msra.mxu0 0.0
  %1802 = vmatprep.subr.mxu0 0.0
  %1803 = vmatpush1.msra.mxu0 0.0
  %1804 = vmatprep.subr.mxu0 0.0
  %1805 = vmatpush1.msra.mxu0 0.0
  %1806 = vmatprep.subr.mxu0 0.0
  %1807 = vmatpush1.msra.mxu0 0.0
  %1808 = vmatprep.subr.mxu0 0.0
  %1809 = vmatpush1.msra.mxu0 0.0
  %1810 = vmatprep.subr.mxu0 0.0
  %1811 = vmatpush1.msra.mxu0 0.0
  %1812 = vmatprep.subr.mxu0 0.0
  %1813 = vmatpush1.msra.mxu0 0.0
  %1814 = vmatprep.subr.mxu0 0.0
  %1815 = vmatpush1.msra.mxu0 0.0
  %1816 = vmatprep.subr.mxu0 0.0
  %1817 = vmatpush1.msra.mxu0 0.0
  %1818 = vmatprep.subr.mxu0 0.0
  %1819 = vmatpush1.msra.mxu0 0.0
  %1820 = vmatprep.subr.mxu0 0.0
  %1821 = vmatpush1.msra.mxu0 0.0
  %1822 = vmatprep.subr.mxu0 0.0
  %1823 = vmatpush1.msra.mxu0 %v629
  %1824 = vmatprep.subr.mxu0 0.0
  %1825 = vmatpush2.msra.mxu0 0.0
  %1826 = vmatprep.subr.mxu0 0.0
  %1827 = vmatpush2.msra.mxu0 0.0
  %1828 = vmatprep.subr.mxu0 0.0
  %1829 = vmatpush2.msra.mxu0 0.0
  %1830 = vmatprep.subr.mxu0 0.0
  %1831 = vmatpush2.msra.mxu0 0.0
  %1832 = vmatprep.subr.mxu0 0.0
  %1833 = vmatpush2.msra.mxu0 0.0
  %1834 = vmatprep.subr.mxu0 0.0
  %1835 = vmatpush2.msra.mxu0 0.0
  %1836 = vmatprep.subr.mxu0 0.0
  %1837 = vmatpush2.msra.mxu0 0.0
  %1838 = vmatprep.subr.mxu0 0.0
  %1839 = vmatpush2.msra.mxu0 0.0
  %1840 = vmatprep.subr.mxu0 0.0
  %1841 = vmatpush2.msra.mxu0 0.0
  %1842 = vmatprep.subr.mxu0 0.0
  %1843 = vmatpush2.msra.mxu0 0.0
  %1844 = vmatprep.subr.mxu0 0.0
  %1845 = vmatpush2.msra.mxu0 0.0
  %1846 = vmatprep.subr.mxu0 0.0
  %1847 = vmatpush2.msra.mxu0 0.0
  %1848 = vmatprep.subr.mxu0 0.0
  %1849 = vmatpush2.msra.mxu0 0.0
  %1850 = vmatprep.subr.mxu0 0.0
  %1851 = vmatpush2.msra.mxu0 0.0
  %1852 = vmatprep.subr.mxu0 0.0
  %1853 = vmatpush2.msra.mxu0 0.0
  %1854 = vmatprep.subr.mxu0 0.0
  %1855 = vmatpush2.msra.mxu0 0.0
  %1856 = vmatprep.mubr.f32.mxu0 0.0
  %1857 = vmatmul.mubr.f32.gmra.mxu0 %v1787
  %v1858 = vpop.f32.mrf.mxu0
  %v1859 = vadd.f32 0.0, %v1858
  %v1860 = vpop.f32.mrf.mxu0
  %1861 = vmatprep.mubr.f32.mxu0 0.0
  %1862 = vmatmul.mubr.f32.gmra.mxu0 %v1790
  %v1863 = vpop.f32.mrf.mxu0
  %v1864 = vadd.f32 0.0, %v1863
  %v1865 = vpop.f32.mrf.mxu0
  %1866 = vdwg.mxu0
  %v1868 = vsel %vm651, %v573, 0
  %v1871 = vsel %vm651, %v574, 0
  %1873 = vmatprep.subr.mxu0 0.0
  %1874 = vmatpush1.msra.mxu0 0.0
  %1875 = vmatprep.subr.mxu0 0.0
  %1876 = vmatpush1.msra.mxu0 0.0
  %1877 = vmatprep.subr.mxu0 0.0
  %1878 = vmatpush1.msra.mxu0 0.0
  %1879 = vmatprep.subr.mxu0 0.0
  %1880 = vmatpush1.msra.mxu0 0.0
  %1881 = vmatprep.subr.mxu0 0.0
  %1882 = vmatpush1.msra.mxu0 0.0
  %1883 = vmatprep.subr.mxu0 0.0
  %1884 = vmatpush1.msra.mxu0 0.0
  %1885 = vmatprep.subr.mxu0 0.0
  %1886 = vmatpush1.msra.mxu0 0.0
  %1887 = vmatprep.subr.mxu0 0.0
  %1888 = vmatpush1.msra.mxu0 0.0
  %1889 = vmatprep.subr.mxu0 0.0
  %1890 = vmatpush1.msra.mxu0 0.0
  %1891 = vmatprep.subr.mxu0 0.0
  %1892 = vmatpush1.msra.mxu0 0.0
  %1893 = vmatprep.subr.mxu0 0.0
  %1894 = vmatpush1.msra.mxu0 0.0
  %1895 = vmatprep.subr.mxu0 0.0
  %1896 = vmatpush1.msra.mxu0 0.0
  %1897 = vmatprep.subr.mxu0 0.0
  %1898 = vmatpush1.msra.mxu0 0.0
  %1899 = vmatprep.subr.mxu0 0.0
  %1900 = vmatpush1.msra.mxu0 0.0
  %1901 = vmatprep.subr.mxu0 0.0
  %1902 = vmatpush1.msra.mxu0 0.0
  %1903 = vmatprep.subr.mxu0 0.0
  %1904 = vmatpush1.msra.mxu0 %v630
  %1905 = vmatprep.subr.mxu0 0.0
  %1906 = vmatpush2.msra.mxu0 0.0
  %1907 = vmatprep.subr.mxu0 0.0
  %1908 = vmatpush2.msra.mxu0 0.0
  %1909 = vmatprep.subr.mxu0 0.0
  %1910 = vmatpush2.msra.mxu0 0.0
  %1911 = vmatprep.subr.mxu0 0.0
  %1912 = vmatpush2.msra.mxu0 0.0
  %1913 = vmatprep.subr.mxu0 0.0
  %1914 = vmatpush2.msra.mxu0 0.0
  %1915 = vmatprep.subr.mxu0 0.0
  %1916 = vmatpush2.msra.mxu0 0.0
  %1917 = vmatprep.subr.mxu0 0.0
  %1918 = vmatpush2.msra.mxu0 0.0
  %1919 = vmatprep.subr.mxu0 0.0
  %1920 = vmatpush2.msra.mxu0 0.0
  %1921 = vmatprep.subr.mxu0 0.0
  %1922 = vmatpush2.msra.mxu0 0.0
  %1923 = vmatprep.subr.mxu0 0.0
  %1924 = vmatpush2.msra.mxu0 0.0
  %1925 = vmatprep.subr.mxu0 0.0
  %1926 = vmatpush2.msra.mxu0 0.0
  %1927 = vmatprep.subr.mxu0 0.0
  %1928 = vmatpush2.msra.mxu0 0.0
  %1929 = vmatprep.subr.mxu0 0.0
  %1930 = vmatpush2.msra.mxu0 0.0
  %1931 = vmatprep.subr.mxu0 0.0
  %1932 = vmatpush2.msra.mxu0 0.0
  %1933 = vmatprep.subr.mxu0 0.0
  %1934 = vmatpush2.msra.mxu0 0.0
  %1935 = vmatprep.subr.mxu0 0.0
  %1936 = vmatpush2.msra.mxu0 0.0
  %1937 = vmatprep.mubr.f32.mxu0 0.0
  %1938 = vmatmul.mubr.f32.gmra.mxu0 %v1868
  %v1939 = vpop.f32.mrf.mxu0
  %v1940 = vadd.f32 0.0, %v1939
  %v1941 = vpop.f32.mrf.mxu0
  %1942 = vmatprep.mubr.f32.mxu0 0.0
  %1943 = vmatmul.mubr.f32.gmra.mxu0 %v1871
  %v1944 = vpop.f32.mrf.mxu0
  %v1945 = vadd.f32 0.0, %v1944
  %v1946 = vpop.f32.mrf.mxu0
  %1947 = vdwg.mxu0
  %v1949 = vsel %vm651, %v575, 0
  %v1952 = vsel %vm651, %v576, 0
  %1954 = vmatprep.subr.mxu0 0.0
  %1955 = vmatpush1.msra.mxu0 0.0
  %1956 = vmatprep.subr.mxu0 0.0
  %1957 = vmatpush1.msra.mxu0 0.0
  %1958 = vmatprep.subr.mxu0 0.0
  %1959 = vmatpush1.msra.mxu0 0.0
  %1960 = vmatprep.subr.mxu0 0.0
  %1961 = vmatpush1.msra.mxu0 0.0
  %1962 = vmatprep.subr.mxu0 0.0
  %1963 = vmatpush1.msra.mxu0 0.0
  %1964 = vmatprep.subr.mxu0 0.0
  %1965 = vmatpush1.msra.mxu0 0.0
  %1966 = vmatprep.subr.mxu0 0.0
  %1967 = vmatpush1.msra.mxu0 0.0
  %1968 = vmatprep.subr.mxu0 0.0
  %1969 = vmatpush1.msra.mxu0 0.0
  %1970 = vmatprep.subr.mxu0 0.0
  %1971 = vmatpush1.msra.mxu0 0.0
  %1972 = vmatprep.subr.mxu0 0.0
  %1973 = vmatpush1.msra.mxu0 0.0
  %1974 = vmatprep.subr.mxu0 0.0
  %1975 = vmatpush1.msra.mxu0 0.0
  %1976 = vmatprep.subr.mxu0 0.0
  %1977 = vmatpush1.msra.mxu0 0.0
  %1978 = vmatprep.subr.mxu0 0.0
  %1979 = vmatpush1.msra.mxu0 0.0
  %1980 = vmatprep.subr.mxu0 0.0
  %1981 = vmatpush1.msra.mxu0 0.0
  %1982 = vmatprep.subr.mxu0 0.0
  %1983 = vmatpush1.msra.mxu0 0.0
  %1984 = vmatprep.subr.mxu0 0.0
  %1985 = vmatpush1.msra.mxu0 %v631
  %1986 = vmatprep.subr.mxu0 0.0
  %1987 = vmatpush2.msra.mxu0 0.0
  %1988 = vmatprep.subr.mxu0 0.0
  %1989 = vmatpush2.msra.mxu0 0.0
  %1990 = vmatprep.subr.mxu0 0.0
  %1991 = vmatpush2.msra.mxu0 0.0
  %1992 = vmatprep.subr.mxu0 0.0
  %1993 = vmatpush2.msra.mxu0 0.0
  %1994 = vmatprep.subr.mxu0 0.0
  %1995 = vmatpush2.msra.mxu0 0.0
  %1996 = vmatprep.subr.mxu0 0.0
  %1997 = vmatpush2.msra.mxu0 0.0
  %1998 = vmatprep.subr.mxu0 0.0
  %1999 = vmatpush2.msra.mxu0 0.0
  %2000 = vmatprep.subr.mxu0 0.0
  %2001 = vmatpush2.msra.mxu0 0.0
  %2002 = vmatprep.subr.mxu0 0.0
  %2003 = vmatpush2.msra.mxu0 0.0
  %2004 = vmatprep.subr.mxu0 0.0
  %2005 = vmatpush2.msra.mxu0 0.0
  %2006 = vmatprep.subr.mxu0 0.0
  %2007 = vmatpush2.msra.mxu0 0.0
  %2008 = vmatprep.subr.mxu0 0.0
  %2009 = vmatpush2.msra.mxu0 0.0
  %2010 = vmatprep.subr.mxu0 0.0
  %2011 = vmatpush2.msra.mxu0 0.0
  %2012 = vmatprep.subr.mxu0 0.0
  %2013 = vmatpush2.msra.mxu0 0.0
  %2014 = vmatprep.subr.mxu0 0.0
  %2015 = vmatpush2.msra.mxu0 0.0
  %2016 = vmatprep.subr.mxu0 0.0
  %2017 = vmatpush2.msra.mxu0 0.0
  %2018 = vmatprep.mubr.f32.mxu0 0.0
  %2019 = vmatmul.mubr.f32.gmra.mxu0 %v1949
  %v2020 = vpop.f32.mrf.mxu0
  %v2021 = vadd.f32 0.0, %v2020
  %v2022 = vpop.f32.mrf.mxu0
  %2023 = vmatprep.mubr.f32.mxu0 0.0
  %2024 = vmatmul.mubr.f32.gmra.mxu0 %v1952
  %v2025 = vpop.f32.mrf.mxu0
  %v2026 = vadd.f32 0.0, %v2025
  %v2027 = vpop.f32.mrf.mxu0
  %2028 = vdwg.mxu0
  %v2030 = vsel %vm651, %v577, 0
  %v2033 = vsel %vm651, %v578, 0
  %2035 = vmatprep.subr.mxu0 0.0
  %2036 = vmatpush1.msra.mxu0 0.0
  %2037 = vmatprep.subr.mxu0 0.0
  %2038 = vmatpush1.msra.mxu0 0.0
  %2039 = vmatprep.subr.mxu0 0.0
  %2040 = vmatpush1.msra.mxu0 0.0
  %2041 = vmatprep.subr.mxu0 0.0
  %2042 = vmatpush1.msra.mxu0 0.0
  %2043 = vmatprep.subr.mxu0 0.0
  %2044 = vmatpush1.msra.mxu0 0.0
  %2045 = vmatprep.subr.mxu0 0.0
  %2046 = vmatpush1.msra.mxu0 0.0
  %2047 = vmatprep.subr.mxu0 0.0
  %2048 = vmatpush1.msra.mxu0 0.0
  %2049 = vmatprep.subr.mxu0 0.0
  %2050 = vmatpush1.msra.mxu0 0.0
  %2051 = vmatprep.subr.mxu0 0.0
  %2052 = vmatpush1.msra.mxu0 0.0
  %2053 = vmatprep.subr.mxu0 0.0
  %2054 = vmatpush1.msra.mxu0 0.0
  %2055 = vmatprep.subr.mxu0 0.0
  %2056 = vmatpush1.msra.mxu0 0.0
  %2057 = vmatprep.subr.mxu0 0.0
  %2058 = vmatpush1.msra.mxu0 0.0
  %2059 = vmatprep.subr.mxu0 0.0
  %2060 = vmatpush1.msra.mxu0 0.0
  %2061 = vmatprep.subr.mxu0 0.0
  %2062 = vmatpush1.msra.mxu0 0.0
  %2063 = vmatprep.subr.mxu0 0.0
  %2064 = vmatpush1.msra.mxu0 0.0
  %2065 = vmatprep.subr.mxu0 0.0
  %2066 = vmatpush1.msra.mxu0 %v632
  %2067 = vmatprep.subr.mxu0 0.0
  %2068 = vmatpush2.msra.mxu0 0.0
  %2069 = vmatprep.subr.mxu0 0.0
  %2070 = vmatpush2.msra.mxu0 0.0
  %2071 = vmatprep.subr.mxu0 0.0
  %2072 = vmatpush2.msra.mxu0 0.0
  %2073 = vmatprep.subr.mxu0 0.0
  %2074 = vmatpush2.msra.mxu0 0.0
  %2075 = vmatprep.subr.mxu0 0.0
  %2076 = vmatpush2.msra.mxu0 0.0
  %2077 = vmatprep.subr.mxu0 0.0
  %2078 = vmatpush2.msra.mxu0 0.0
  %2079 = vmatprep.subr.mxu0 0.0
  %2080 = vmatpush2.msra.mxu0 0.0
  %2081 = vmatprep.subr.mxu0 0.0
  %2082 = vmatpush2.msra.mxu0 0.0
  %2083 = vmatprep.subr.mxu0 0.0
  %2084 = vmatpush2.msra.mxu0 0.0
  %2085 = vmatprep.subr.mxu0 0.0
  %2086 = vmatpush2.msra.mxu0 0.0
  %2087 = vmatprep.subr.mxu0 0.0
  %2088 = vmatpush2.msra.mxu0 0.0
  %2089 = vmatprep.subr.mxu0 0.0
  %2090 = vmatpush2.msra.mxu0 0.0
  %2091 = vmatprep.subr.mxu0 0.0
  %2092 = vmatpush2.msra.mxu0 0.0
  %2093 = vmatprep.subr.mxu0 0.0
  %2094 = vmatpush2.msra.mxu0 0.0
  %2095 = vmatprep.subr.mxu0 0.0
  %2096 = vmatpush2.msra.mxu0 0.0
  %2097 = vmatprep.subr.mxu0 0.0
  %2098 = vmatpush2.msra.mxu0 0.0
  %2099 = vmatprep.mubr.f32.mxu0 0.0
  %2100 = vmatmul.mubr.f32.gmra.mxu0 %v2030
  %v2101 = vpop.f32.mrf.mxu0
  %v2102 = vadd.f32 0.0, %v2101
  %v2103 = vpop.f32.mrf.mxu0
  %2104 = vmatprep.mubr.f32.mxu0 0.0
  %2105 = vmatmul.mubr.f32.gmra.mxu0 %v2033
  %v2106 = vpop.f32.mrf.mxu0
  %v2107 = vadd.f32 0.0, %v2106
  %v2108 = vpop.f32.mrf.mxu0
  %2109 = vdwg.mxu0
  %v2111 = vsel %vm651, %v579, 0
  %v2114 = vsel %vm651, %v580, 0
  %2116 = vmatprep.subr.mxu0 0.0
  %2117 = vmatpush1.msra.mxu0 0.0
  %2118 = vmatprep.subr.mxu0 0.0
  %2119 = vmatpush1.msra.mxu0 0.0
  %2120 = vmatprep.subr.mxu0 0.0
  %2121 = vmatpush1.msra.mxu0 0.0
  %2122 = vmatprep.subr.mxu0 0.0
  %2123 = vmatpush1.msra.mxu0 0.0
  %2124 = vmatprep.subr.mxu0 0.0
  %2125 = vmatpush1.msra.mxu0 0.0
  %2126 = vmatprep.subr.mxu0 0.0
  %2127 = vmatpush1.msra.mxu0 0.0
  %2128 = vmatprep.subr.mxu0 0.0
  %2129 = vmatpush1.msra.mxu0 0.0
  %2130 = vmatprep.subr.mxu0 0.0
  %2131 = vmatpush1.msra.mxu0 0.0
  %2132 = vmatprep.subr.mxu0 0.0
  %2133 = vmatpush1.msra.mxu0 0.0
  %2134 = vmatprep.subr.mxu0 0.0
  %2135 = vmatpush1.msra.mxu0 0.0
  %2136 = vmatprep.subr.mxu0 0.0
  %2137 = vmatpush1.msra.mxu0 0.0
  %2138 = vmatprep.subr.mxu0 0.0
  %2139 = vmatpush1.msra.mxu0 0.0
  %2140 = vmatprep.subr.mxu0 0.0
  %2141 = vmatpush1.msra.mxu0 0.0
  %2142 = vmatprep.subr.mxu0 0.0
  %2143 = vmatpush1.msra.mxu0 0.0
  %2144 = vmatprep.subr.mxu0 0.0
  %2145 = vmatpush1.msra.mxu0 0.0
  %2146 = vmatprep.subr.mxu0 0.0
  %2147 = vmatpush1.msra.mxu0 %v633
  %2148 = vmatprep.subr.mxu0 0.0
  %2149 = vmatpush2.msra.mxu0 0.0
  %2150 = vmatprep.subr.mxu0 0.0
  %2151 = vmatpush2.msra.mxu0 0.0
  %2152 = vmatprep.subr.mxu0 0.0
  %2153 = vmatpush2.msra.mxu0 0.0
  %2154 = vmatprep.subr.mxu0 0.0
  %2155 = vmatpush2.msra.mxu0 0.0
  %2156 = vmatprep.subr.mxu0 0.0
  %2157 = vmatpush2.msra.mxu0 0.0
  %2158 = vmatprep.subr.mxu0 0.0
  %2159 = vmatpush2.msra.mxu0 0.0
  %2160 = vmatprep.subr.mxu0 0.0
  %2161 = vmatpush2.msra.mxu0 0.0
  %2162 = vmatprep.subr.mxu0 0.0
  %2163 = vmatpush2.msra.mxu0 0.0
  %2164 = vmatprep.subr.mxu0 0.0
  %2165 = vmatpush2.msra.mxu0 0.0
  %2166 = vmatprep.subr.mxu0 0.0
  %2167 = vmatpush2.msra.mxu0 0.0
  %2168 = vmatprep.subr.mxu0 0.0
  %2169 = vmatpush2.msra.mxu0 0.0
  %2170 = vmatprep.subr.mxu0 0.0
  %2171 = vmatpush2.msra.mxu0 0.0
  %2172 = vmatprep.subr.mxu0 0.0
  %2173 = vmatpush2.msra.mxu0 0.0
  %2174 = vmatprep.subr.mxu0 0.0
  %2175 = vmatpush2.msra.mxu0 0.0
  %2176 = vmatprep.subr.mxu0 0.0
  %2177 = vmatpush2.msra.mxu0 0.0
  %2178 = vmatprep.subr.mxu0 0.0
  %2179 = vmatpush2.msra.mxu0 0.0
  %2180 = vmatprep.mubr.f32.mxu0 0.0
  %2181 = vmatmul.mubr.f32.gmra.mxu0 %v2111
  %v2182 = vpop.f32.mrf.mxu0
  %v2183 = vadd.f32 0.0, %v2182
  %v2184 = vpop.f32.mrf.mxu0
  %2185 = vmatprep.mubr.f32.mxu0 0.0
  %2186 = vmatmul.mubr.f32.gmra.mxu0 %v2114
  %v2187 = vpop.f32.mrf.mxu0
  %v2188 = vadd.f32 0.0, %v2187
  %v2189 = vpop.f32.mrf.mxu0
  %2190 = vdwg.mxu0
  %v2192 = vsel %vm651, %v581, 0
  %v2195 = vsel %vm651, %v582, 0
  %2197 = vmatprep.subr.mxu0 0.0
  %2198 = vmatpush1.msra.mxu0 0.0
  %2199 = vmatprep.subr.mxu0 0.0
  %2200 = vmatpush1.msra.mxu0 0.0
  %2201 = vmatprep.subr.mxu0 0.0
  %2202 = vmatpush1.msra.mxu0 0.0
  %2203 = vmatprep.subr.mxu0 0.0
  %2204 = vmatpush1.msra.mxu0 0.0
  %2205 = vmatprep.subr.mxu0 0.0
  %2206 = vmatpush1.msra.mxu0 0.0
  %2207 = vmatprep.subr.mxu0 0.0
  %2208 = vmatpush1.msra.mxu0 0.0
  %2209 = vmatprep.subr.mxu0 0.0
  %2210 = vmatpush1.msra.mxu0 0.0
  %2211 = vmatprep.subr.mxu0 0.0
  %2212 = vmatpush1.msra.mxu0 0.0
  %2213 = vmatprep.subr.mxu0 0.0
  %2214 = vmatpush1.msra.mxu0 0.0
  %2215 = vmatprep.subr.mxu0 0.0
  %2216 = vmatpush1.msra.mxu0 0.0
  %2217 = vmatprep.subr.mxu0 0.0
  %2218 = vmatpush1.msra.mxu0 0.0
  %2219 = vmatprep.subr.mxu0 0.0
  %2220 = vmatpush1.msra.mxu0 0.0
  %2221 = vmatprep.subr.mxu0 0.0
  %2222 = vmatpush1.msra.mxu0 0.0
  %2223 = vmatprep.subr.mxu0 0.0
  %2224 = vmatpush1.msra.mxu0 0.0
  %2225 = vmatprep.subr.mxu0 0.0
  %2226 = vmatpush1.msra.mxu0 0.0
  %2227 = vmatprep.subr.mxu0 0.0
  %2228 = vmatpush1.msra.mxu0 %v634
  %2229 = vmatprep.subr.mxu0 0.0
  %2230 = vmatpush2.msra.mxu0 0.0
  %2231 = vmatprep.subr.mxu0 0.0
  %2232 = vmatpush2.msra.mxu0 0.0
  %2233 = vmatprep.subr.mxu0 0.0
  %2234 = vmatpush2.msra.mxu0 0.0
  %2235 = vmatprep.subr.mxu0 0.0
  %2236 = vmatpush2.msra.mxu0 0.0
  %2237 = vmatprep.subr.mxu0 0.0
  %2238 = vmatpush2.msra.mxu0 0.0
  %2239 = vmatprep.subr.mxu0 0.0
  %2240 = vmatpush2.msra.mxu0 0.0
  %2241 = vmatprep.subr.mxu0 0.0
  %2242 = vmatpush2.msra.mxu0 0.0
  %2243 = vmatprep.subr.mxu0 0.0
  %2244 = vmatpush2.msra.mxu0 0.0
  %2245 = vmatprep.subr.mxu0 0.0
  %2246 = vmatpush2.msra.mxu0 0.0
  %2247 = vmatprep.subr.mxu0 0.0
  %2248 = vmatpush2.msra.mxu0 0.0
  %2249 = vmatprep.subr.mxu0 0.0
  %2250 = vmatpush2.msra.mxu0 0.0
  %2251 = vmatprep.subr.mxu0 0.0
  %2252 = vmatpush2.msra.mxu0 0.0
  %2253 = vmatprep.subr.mxu0 0.0
  %2254 = vmatpush2.msra.mxu0 0.0
  %2255 = vmatprep.subr.mxu0 0.0
  %2256 = vmatpush2.msra.mxu0 0.0
  %2257 = vmatprep.subr.mxu0 0.0
  %2258 = vmatpush2.msra.mxu0 0.0
  %2259 = vmatprep.subr.mxu0 0.0
  %2260 = vmatpush2.msra.mxu0 0.0
  %2261 = vmatprep.mubr.f32.mxu0 0.0
  %2262 = vmatmul.mubr.f32.gmra.mxu0 %v2192
  %v2263 = vpop.f32.mrf.mxu0
  %v2264 = vadd.f32 0.0, %v2263
  %v2265 = vpop.f32.mrf.mxu0
  %2266 = vmatprep.mubr.f32.mxu0 0.0
  %2267 = vmatmul.mubr.f32.gmra.mxu0 %v2195
  %v2268 = vpop.f32.mrf.mxu0
  %v2269 = vadd.f32 0.0, %v2268
  %v2270 = vpop.f32.mrf.mxu0
  %2271 = vdwg.mxu0
  %v2273 = vsel %vm651, %v583, 0
  %v2276 = vsel %vm651, %v584, 0
  %2278 = vmatprep.subr.mxu0 0.0
  %2279 = vmatpush1.msra.mxu0 0.0
  %2280 = vmatprep.subr.mxu0 0.0
  %2281 = vmatpush1.msra.mxu0 0.0
  %2282 = vmatprep.subr.mxu0 0.0
  %2283 = vmatpush1.msra.mxu0 0.0
  %2284 = vmatprep.subr.mxu0 0.0
  %2285 = vmatpush1.msra.mxu0 0.0
  %2286 = vmatprep.subr.mxu0 0.0
  %2287 = vmatpush1.msra.mxu0 0.0
  %2288 = vmatprep.subr.mxu0 0.0
  %2289 = vmatpush1.msra.mxu0 0.0
  %2290 = vmatprep.subr.mxu0 0.0
  %2291 = vmatpush1.msra.mxu0 0.0
  %2292 = vmatprep.subr.mxu0 0.0
  %2293 = vmatpush1.msra.mxu0 0.0
  %2294 = vmatprep.subr.mxu0 0.0
  %2295 = vmatpush1.msra.mxu0 0.0
  %2296 = vmatprep.subr.mxu0 0.0
  %2297 = vmatpush1.msra.mxu0 0.0
  %2298 = vmatprep.subr.mxu0 0.0
  %2299 = vmatpush1.msra.mxu0 0.0
  %2300 = vmatprep.subr.mxu0 0.0
  %2301 = vmatpush1.msra.mxu0 0.0
  %2302 = vmatprep.subr.mxu0 0.0
  %2303 = vmatpush1.msra.mxu0 0.0
  %2304 = vmatprep.subr.mxu0 0.0
  %2305 = vmatpush1.msra.mxu0 0.0
  %2306 = vmatprep.subr.mxu0 0.0
  %2307 = vmatpush1.msra.mxu0 0.0
  %2308 = vmatprep.subr.mxu0 0.0
  %2309 = vmatpush1.msra.mxu0 %v635
  %2310 = vmatprep.subr.mxu0 0.0
  %2311 = vmatpush2.msra.mxu0 0.0
  %2312 = vmatprep.subr.mxu0 0.0
  %2313 = vmatpush2.msra.mxu0 0.0
  %2314 = vmatprep.subr.mxu0 0.0
  %2315 = vmatpush2.msra.mxu0 0.0
  %2316 = vmatprep.subr.mxu0 0.0
  %2317 = vmatpush2.msra.mxu0 0.0
  %2318 = vmatprep.subr.mxu0 0.0
  %2319 = vmatpush2.msra.mxu0 0.0
  %2320 = vmatprep.subr.mxu0 0.0
  %2321 = vmatpush2.msra.mxu0 0.0
  %2322 = vmatprep.subr.mxu0 0.0
  %2323 = vmatpush2.msra.mxu0 0.0
  %2324 = vmatprep.subr.mxu0 0.0
  %2325 = vmatpush2.msra.mxu0 0.0
  %2326 = vmatprep.subr.mxu0 0.0
  %2327 = vmatpush2.msra.mxu0 0.0
  %2328 = vmatprep.subr.mxu0 0.0
  %2329 = vmatpush2.msra.mxu0 0.0
  %2330 = vmatprep.subr.mxu0 0.0
  %2331 = vmatpush2.msra.mxu0 0.0
  %2332 = vmatprep.subr.mxu0 0.0
  %2333 = vmatpush2.msra.mxu0 0.0
  %2334 = vmatprep.subr.mxu0 0.0
  %2335 = vmatpush2.msra.mxu0 0.0
  %2336 = vmatprep.subr.mxu0 0.0
  %2337 = vmatpush2.msra.mxu0 0.0
  %2338 = vmatprep.subr.mxu0 0.0
  %2339 = vmatpush2.msra.mxu0 0.0
  %2340 = vmatprep.subr.mxu0 0.0
  %2341 = vmatpush2.msra.mxu0 0.0
  %2342 = vmatprep.mubr.f32.mxu0 0.0
  %2343 = vmatmul.mubr.f32.gmra.mxu0 %v2273
  %v2344 = vpop.f32.mrf.mxu0
  %v2345 = vadd.f32 0.0, %v2344
  %v2346 = vpop.f32.mrf.mxu0
  %2347 = vmatprep.mubr.f32.mxu0 0.0
  %2348 = vmatmul.mubr.f32.gmra.mxu0 %v2276
  %v2349 = vpop.f32.mrf.mxu0
  %v2350 = vadd.f32 0.0, %v2349
  %v2351 = vpop.f32.mrf.mxu0
  %2352 = vdwg.mxu0
  %v2354 = vsel %vm651, %v585, 0
  %v2357 = vsel %vm651, %v586, 0
  %2359 = vmatprep.subr.mxu0 0.0
  %2360 = vmatpush1.msra.mxu0 0.0
  %2361 = vmatprep.subr.mxu0 0.0
  %2362 = vmatpush1.msra.mxu0 0.0
  %2363 = vmatprep.subr.mxu0 0.0
  %2364 = vmatpush1.msra.mxu0 0.0
  %2365 = vmatprep.subr.mxu0 0.0
  %2366 = vmatpush1.msra.mxu0 0.0
  %2367 = vmatprep.subr.mxu0 0.0
  %2368 = vmatpush1.msra.mxu0 0.0
  %2369 = vmatprep.subr.mxu0 0.0
  %2370 = vmatpush1.msra.mxu0 0.0
  %2371 = vmatprep.subr.mxu0 0.0
  %2372 = vmatpush1.msra.mxu0 0.0
  %2373 = vmatprep.subr.mxu0 0.0
  %2374 = vmatpush1.msra.mxu0 0.0
  %2375 = vmatprep.subr.mxu0 0.0
  %2376 = vmatpush1.msra.mxu0 0.0
  %2377 = vmatprep.subr.mxu0 0.0
  %2378 = vmatpush1.msra.mxu0 0.0
  %2379 = vmatprep.subr.mxu0 0.0
  %2380 = vmatpush1.msra.mxu0 0.0
  %2381 = vmatprep.subr.mxu0 0.0
  %2382 = vmatpush1.msra.mxu0 0.0
  %2383 = vmatprep.subr.mxu0 0.0
  %2384 = vmatpush1.msra.mxu0 0.0
  %2385 = vmatprep.subr.mxu0 0.0
  %2386 = vmatpush1.msra.mxu0 0.0
  %2387 = vmatprep.subr.mxu0 0.0
  %2388 = vmatpush1.msra.mxu0 0.0
  %2389 = vmatprep.subr.mxu0 0.0
  %2390 = vmatpush1.msra.mxu0 %v636
  %2391 = vmatprep.subr.mxu0 0.0
  %2392 = vmatpush2.msra.mxu0 0.0
  %2393 = vmatprep.subr.mxu0 0.0
  %2394 = vmatpush2.msra.mxu0 0.0
  %2395 = vmatprep.subr.mxu0 0.0
  %2396 = vmatpush2.msra.mxu0 0.0
  %2397 = vmatprep.subr.mxu0 0.0
  %2398 = vmatpush2.msra.mxu0 0.0
  %2399 = vmatprep.subr.mxu0 0.0
  %2400 = vmatpush2.msra.mxu0 0.0
  %2401 = vmatprep.subr.mxu0 0.0
  %2402 = vmatpush2.msra.mxu0 0.0
  %2403 = vmatprep.subr.mxu0 0.0
  %2404 = vmatpush2.msra.mxu0 0.0
  %2405 = vmatprep.subr.mxu0 0.0
  %2406 = vmatpush2.msra.mxu0 0.0
  %2407 = vmatprep.subr.mxu0 0.0
  %2408 = vmatpush2.msra.mxu0 0.0
  %2409 = vmatprep.subr.mxu0 0.0
  %2410 = vmatpush2.msra.mxu0 0.0
  %2411 = vmatprep.subr.mxu0 0.0
  %2412 = vmatpush2.msra.mxu0 0.0
  %2413 = vmatprep.subr.mxu0 0.0
  %2414 = vmatpush2.msra.mxu0 0.0
  %2415 = vmatprep.subr.mxu0 0.0
  %2416 = vmatpush2.msra.mxu0 0.0
  %2417 = vmatprep.subr.mxu0 0.0
  %2418 = vmatpush2.msra.mxu0 0.0
  %2419 = vmatprep.subr.mxu0 0.0
  %2420 = vmatpush2.msra.mxu0 0.0
  %2421 = vmatprep.subr.mxu0 0.0
  %2422 = vmatpush2.msra.mxu0 0.0
  %2423 = vmatprep.mubr.f32.mxu0 0.0
  %2424 = vmatmul.mubr.f32.gmra.mxu0 %v2354
  %v2425 = vpop.f32.mrf.mxu0
  %v2426 = vadd.f32 0.0, %v2425
  %v2427 = vpop.f32.mrf.mxu0
  %2428 = vmatprep.mubr.f32.mxu0 0.0
  %2429 = vmatmul.mubr.f32.gmra.mxu0 %v2357
  %v2430 = vpop.f32.mrf.mxu0
  %v2431 = vadd.f32 0.0, %v2430
  %v2432 = vpop.f32.mrf.mxu0
  %2433 = vdwg.mxu0
  %v2435 = vsel %vm651, %v587, 0
  %v2438 = vsel %vm651, %v588, 0
  %2440 = vmatprep.subr.mxu0 0.0
  %2441 = vmatpush1.msra.mxu0 0.0
  %2442 = vmatprep.subr.mxu0 0.0
  %2443 = vmatpush1.msra.mxu0 0.0
  %2444 = vmatprep.subr.mxu0 0.0
  %2445 = vmatpush1.msra.mxu0 0.0
  %2446 = vmatprep.subr.mxu0 0.0
  %2447 = vmatpush1.msra.mxu0 0.0
  %2448 = vmatprep.subr.mxu0 0.0
  %2449 = vmatpush1.msra.mxu0 0.0
  %2450 = vmatprep.subr.mxu0 0.0
  %2451 = vmatpush1.msra.mxu0 0.0
  %2452 = vmatprep.subr.mxu0 0.0
  %2453 = vmatpush1.msra.mxu0 0.0
  %2454 = vmatprep.subr.mxu0 0.0
  %2455 = vmatpush1.msra.mxu0 0.0
  %2456 = vmatprep.subr.mxu0 0.0
  %2457 = vmatpush1.msra.mxu0 0.0
  %2458 = vmatprep.subr.mxu0 0.0
  %2459 = vmatpush1.msra.mxu0 0.0
  %2460 = vmatprep.subr.mxu0 0.0
  %2461 = vmatpush1.msra.mxu0 0.0
  %2462 = vmatprep.subr.mxu0 0.0
  %2463 = vmatpush1.msra.mxu0 0.0
  %2464 = vmatprep.subr.mxu0 0.0
  %2465 = vmatpush1.msra.mxu0 0.0
  %2466 = vmatprep.subr.mxu0 0.0
  %2467 = vmatpush1.msra.mxu0 0.0
  %2468 = vmatprep.subr.mxu0 0.0
  %2469 = vmatpush1.msra.mxu0 0.0
  %2470 = vmatprep.subr.mxu0 0.0
  %2471 = vmatpush1.msra.mxu0 %v637
  %2472 = vmatprep.subr.mxu0 0.0
  %2473 = vmatpush2.msra.mxu0 0.0
  %2474 = vmatprep.subr.mxu0 0.0
  %2475 = vmatpush2.msra.mxu0 0.0
  %2476 = vmatprep.subr.mxu0 0.0
  %2477 = vmatpush2.msra.mxu0 0.0
  %2478 = vmatprep.subr.mxu0 0.0
  %2479 = vmatpush2.msra.mxu0 0.0
  %2480 = vmatprep.subr.mxu0 0.0
  %2481 = vmatpush2.msra.mxu0 0.0
  %2482 = vmatprep.subr.mxu0 0.0
  %2483 = vmatpush2.msra.mxu0 0.0
  %2484 = vmatprep.subr.mxu0 0.0
  %2485 = vmatpush2.msra.mxu0 0.0
  %2486 = vmatprep.subr.mxu0 0.0
  %2487 = vmatpush2.msra.mxu0 0.0
  %2488 = vmatprep.subr.mxu0 0.0
  %2489 = vmatpush2.msra.mxu0 0.0
  %2490 = vmatprep.subr.mxu0 0.0
  %2491 = vmatpush2.msra.mxu0 0.0
  %2492 = vmatprep.subr.mxu0 0.0
  %2493 = vmatpush2.msra.mxu0 0.0
  %2494 = vmatprep.subr.mxu0 0.0
  %2495 = vmatpush2.msra.mxu0 0.0
  %2496 = vmatprep.subr.mxu0 0.0
  %2497 = vmatpush2.msra.mxu0 0.0
  %2498 = vmatprep.subr.mxu0 0.0
  %2499 = vmatpush2.msra.mxu0 0.0
  %2500 = vmatprep.subr.mxu0 0.0
  %2501 = vmatpush2.msra.mxu0 0.0
  %2502 = vmatprep.subr.mxu0 0.0
  %2503 = vmatpush2.msra.mxu0 0.0
  %2504 = vmatprep.mubr.f32.mxu0 0.0
  %2505 = vmatmul.mubr.f32.gmra.mxu0 %v2435
  %v2506 = vpop.f32.mrf.mxu0
  %v2507 = vadd.f32 0.0, %v2506
  %v2508 = vpop.f32.mrf.mxu0
  %2509 = vmatprep.mubr.f32.mxu0 0.0
  %2510 = vmatmul.mubr.f32.gmra.mxu0 %v2438
  %v2511 = vpop.f32.mrf.mxu0
  %v2512 = vadd.f32 0.0, %v2511
  %v2513 = vpop.f32.mrf.mxu0
  %2514 = vdwg.mxu0
  %v2516 = vsel %vm651, %v589, 0
  %v2519 = vsel %vm651, %v590, 0
  %2521 = vmatprep.subr.mxu0 0.0
  %2522 = vmatpush1.msra.mxu0 0.0
  %2523 = vmatprep.subr.mxu0 0.0
  %2524 = vmatpush1.msra.mxu0 0.0
  %2525 = vmatprep.subr.mxu0 0.0
  %2526 = vmatpush1.msra.mxu0 0.0
  %2527 = vmatprep.subr.mxu0 0.0
  %2528 = vmatpush1.msra.mxu0 0.0
  %2529 = vmatprep.subr.mxu0 0.0
  %2530 = vmatpush1.msra.mxu0 0.0
  %2531 = vmatprep.subr.mxu0 0.0
  %2532 = vmatpush1.msra.mxu0 0.0
  %2533 = vmatprep.subr.mxu0 0.0
  %2534 = vmatpush1.msra.mxu0 0.0
  %2535 = vmatprep.subr.mxu0 0.0
  %2536 = vmatpush1.msra.mxu0 0.0
  %2537 = vmatprep.subr.mxu0 0.0
  %2538 = vmatpush1.msra.mxu0 0.0
  %2539 = vmatprep.subr.mxu0 0.0
  %2540 = vmatpush1.msra.mxu0 0.0
  %2541 = vmatprep.subr.mxu0 0.0
  %2542 = vmatpush1.msra.mxu0 0.0
  %2543 = vmatprep.subr.mxu0 0.0
  %2544 = vmatpush1.msra.mxu0 0.0
  %2545 = vmatprep.subr.mxu0 0.0
  %2546 = vmatpush1.msra.mxu0 0.0
  %2547 = vmatprep.subr.mxu0 0.0
  %2548 = vmatpush1.msra.mxu0 0.0
  %2549 = vmatprep.subr.mxu0 0.0
  %2550 = vmatpush1.msra.mxu0 0.0
  %2551 = vmatprep.subr.mxu0 0.0
  %2552 = vmatpush1.msra.mxu0 %v638
  %2553 = vmatprep.subr.mxu0 0.0
  %2554 = vmatpush2.msra.mxu0 0.0
  %2555 = vmatprep.subr.mxu0 0.0
  %2556 = vmatpush2.msra.mxu0 0.0
  %2557 = vmatprep.subr.mxu0 0.0
  %2558 = vmatpush2.msra.mxu0 0.0
  %2559 = vmatprep.subr.mxu0 0.0
  %2560 = vmatpush2.msra.mxu0 0.0
  %2561 = vmatprep.subr.mxu0 0.0
  %2562 = vmatpush2.msra.mxu0 0.0
  %2563 = vmatprep.subr.mxu0 0.0
  %2564 = vmatpush2.msra.mxu0 0.0
  %2565 = vmatprep.subr.mxu0 0.0
  %2566 = vmatpush2.msra.mxu0 0.0
  %2567 = vmatprep.subr.mxu0 0.0
  %2568 = vmatpush2.msra.mxu0 0.0
  %2569 = vmatprep.subr.mxu0 0.0
  %2570 = vmatpush2.msra.mxu0 0.0
  %2571 = vmatprep.subr.mxu0 0.0
  %2572 = vmatpush2.msra.mxu0 0.0
  %2573 = vmatprep.subr.mxu0 0.0
  %2574 = vmatpush2.msra.mxu0 0.0
  %2575 = vmatprep.subr.mxu0 0.0
  %2576 = vmatpush2.msra.mxu0 0.0
  %2577 = vmatprep.subr.mxu0 0.0
  %2578 = vmatpush2.msra.mxu0 0.0
  %2579 = vmatprep.subr.mxu0 0.0
  %2580 = vmatpush2.msra.mxu0 0.0
  %2581 = vmatprep.subr.mxu0 0.0
  %2582 = vmatpush2.msra.mxu0 0.0
  %2583 = vmatprep.subr.mxu0 0.0
  %2584 = vmatpush2.msra.mxu0 0.0
  %2585 = vmatprep.mubr.f32.mxu0 0.0
  %2586 = vmatmul.mubr.f32.gmra.mxu0 %v2516
  %v2587 = vpop.f32.mrf.mxu0
  %v2588 = vadd.f32 0.0, %v2587
  %v2589 = vpop.f32.mrf.mxu0
  %2590 = vmatprep.mubr.f32.mxu0 0.0
  %2591 = vmatmul.mubr.f32.gmra.mxu0 %v2519
  %v2592 = vpop.f32.mrf.mxu0
  %v2593 = vadd.f32 0.0, %v2592
  %v2594 = vpop.f32.mrf.mxu0
  %2595 = vdwg.mxu0
  %v2597 = vsel %vm651, %v591, 0
  %v2600 = vsel %vm651, %v592, 0
  %2602 = vmatprep.subr.mxu0 0.0
  %2603 = vmatpush1.msra.mxu0 0.0
  %2604 = vmatprep.subr.mxu0 0.0
  %2605 = vmatpush1.msra.mxu0 0.0
  %2606 = vmatprep.subr.mxu0 0.0
  %2607 = vmatpush1.msra.mxu0 0.0
  %2608 = vmatprep.subr.mxu0 0.0
  %2609 = vmatpush1.msra.mxu0 0.0
  %2610 = vmatprep.subr.mxu0 0.0
  %2611 = vmatpush1.msra.mxu0 0.0
  %2612 = vmatprep.subr.mxu0 0.0
  %2613 = vmatpush1.msra.mxu0 0.0
  %2614 = vmatprep.subr.mxu0 0.0
  %2615 = vmatpush1.msra.mxu0 0.0
  %2616 = vmatprep.subr.mxu0 0.0
  %2617 = vmatpush1.msra.mxu0 0.0
  %2618 = vmatprep.subr.mxu0 0.0
  %2619 = vmatpush1.msra.mxu0 0.0
  %2620 = vmatprep.subr.mxu0 0.0
  %2621 = vmatpush1.msra.mxu0 0.0
  %2622 = vmatprep.subr.mxu0 0.0
  %2623 = vmatpush1.msra.mxu0 0.0
  %2624 = vmatprep.subr.mxu0 0.0
  %2625 = vmatpush1.msra.mxu0 0.0
  %2626 = vmatprep.subr.mxu0 0.0
  %2627 = vmatpush1.msra.mxu0 0.0
  %2628 = vmatprep.subr.mxu0 0.0
  %2629 = vmatpush1.msra.mxu0 0.0
  %2630 = vmatprep.subr.mxu0 0.0
  %2631 = vmatpush1.msra.mxu0 0.0
  %2632 = vmatprep.subr.mxu0 0.0
  %2633 = vmatpush1.msra.mxu0 %v639
  %2634 = vmatprep.subr.mxu0 0.0
  %2635 = vmatpush2.msra.mxu0 0.0
  %2636 = vmatprep.subr.mxu0 0.0
  %2637 = vmatpush2.msra.mxu0 0.0
  %2638 = vmatprep.subr.mxu0 0.0
  %2639 = vmatpush2.msra.mxu0 0.0
  %2640 = vmatprep.subr.mxu0 0.0
  %2641 = vmatpush2.msra.mxu0 0.0
  %2642 = vmatprep.subr.mxu0 0.0
  %2643 = vmatpush2.msra.mxu0 0.0
  %2644 = vmatprep.subr.mxu0 0.0
  %2645 = vmatpush2.msra.mxu0 0.0
  %2646 = vmatprep.subr.mxu0 0.0
  %2647 = vmatpush2.msra.mxu0 0.0
  %2648 = vmatprep.subr.mxu0 0.0
  %2649 = vmatpush2.msra.mxu0 0.0
  %2650 = vmatprep.subr.mxu0 0.0
  %2651 = vmatpush2.msra.mxu0 0.0
  %2652 = vmatprep.subr.mxu0 0.0
  %2653 = vmatpush2.msra.mxu0 0.0
  %2654 = vmatprep.subr.mxu0 0.0
  %2655 = vmatpush2.msra.mxu0 0.0
  %2656 = vmatprep.subr.mxu0 0.0
  %2657 = vmatpush2.msra.mxu0 0.0
  %2658 = vmatprep.subr.mxu0 0.0
  %2659 = vmatpush2.msra.mxu0 0.0
  %2660 = vmatprep.subr.mxu0 0.0
  %2661 = vmatpush2.msra.mxu0 0.0
  %2662 = vmatprep.subr.mxu0 0.0
  %2663 = vmatpush2.msra.mxu0 0.0
  %2664 = vmatprep.subr.mxu0 0.0
  %2665 = vmatpush2.msra.mxu0 0.0
  %2666 = vmatprep.mubr.f32.mxu0 0.0
  %2667 = vmatmul.mubr.f32.gmra.mxu0 %v2597
  %v2668 = vpop.f32.mrf.mxu0
  %v2669 = vadd.f32 0.0, %v2668
  %v2670 = vpop.f32.mrf.mxu0
  %2671 = vmatprep.mubr.f32.mxu0 0.0
  %2672 = vmatmul.mubr.f32.gmra.mxu0 %v2600
  %v2673 = vpop.f32.mrf.mxu0
  %v2674 = vadd.f32 0.0, %v2673
  %v2675 = vpop.f32.mrf.mxu0
  %2676 = vdwg.mxu0
  %v2678 = vsel %vm651, %v593, 0
  %v2681 = vsel %vm651, %v594, 0
  %2683 = vmatprep.subr.mxu0 0.0
  %2684 = vmatpush1.msra.mxu0 0.0
  %2685 = vmatprep.subr.mxu0 0.0
  %2686 = vmatpush1.msra.mxu0 0.0
  %2687 = vmatprep.subr.mxu0 0.0
  %2688 = vmatpush1.msra.mxu0 0.0
  %2689 = vmatprep.subr.mxu0 0.0
  %2690 = vmatpush1.msra.mxu0 0.0
  %2691 = vmatprep.subr.mxu0 0.0
  %2692 = vmatpush1.msra.mxu0 0.0
  %2693 = vmatprep.subr.mxu0 0.0
  %2694 = vmatpush1.msra.mxu0 0.0
  %2695 = vmatprep.subr.mxu0 0.0
  %2696 = vmatpush1.msra.mxu0 0.0
  %2697 = vmatprep.subr.mxu0 0.0
  %2698 = vmatpush1.msra.mxu0 0.0
  %2699 = vmatprep.subr.mxu0 0.0
  %2700 = vmatpush1.msra.mxu0 0.0
  %2701 = vmatprep.subr.mxu0 0.0
  %2702 = vmatpush1.msra.mxu0 0.0
  %2703 = vmatprep.subr.mxu0 0.0
  %2704 = vmatpush1.msra.mxu0 0.0
  %2705 = vmatprep.subr.mxu0 0.0
  %2706 = vmatpush1.msra.mxu0 0.0
  %2707 = vmatprep.subr.mxu0 0.0
  %2708 = vmatpush1.msra.mxu0 0.0
  %2709 = vmatprep.subr.mxu0 0.0
  %2710 = vmatpush1.msra.mxu0 0.0
  %2711 = vmatprep.subr.mxu0 0.0
  %2712 = vmatpush1.msra.mxu0 0.0
  %2713 = vmatprep.subr.mxu0 0.0
  %2714 = vmatpush1.msra.mxu0 %v640
  %2715 = vmatprep.subr.mxu0 0.0
  %2716 = vmatpush2.msra.mxu0 0.0
  %2717 = vmatprep.subr.mxu0 0.0
  %2718 = vmatpush2.msra.mxu0 0.0
  %2719 = vmatprep.subr.mxu0 0.0
  %2720 = vmatpush2.msra.mxu0 0.0
  %2721 = vmatprep.subr.mxu0 0.0
  %2722 = vmatpush2.msra.mxu0 0.0
  %2723 = vmatprep.subr.mxu0 0.0
  %2724 = vmatpush2.msra.mxu0 0.0
  %2725 = vmatprep.subr.mxu0 0.0
  %2726 = vmatpush2.msra.mxu0 0.0
  %2727 = vmatprep.subr.mxu0 0.0
  %2728 = vmatpush2.msra.mxu0 0.0
  %2729 = vmatprep.subr.mxu0 0.0
  %2730 = vmatpush2.msra.mxu0 0.0
  %2731 = vmatprep.subr.mxu0 0.0
  %2732 = vmatpush2.msra.mxu0 0.0
  %2733 = vmatprep.subr.mxu0 0.0
  %2734 = vmatpush2.msra.mxu0 0.0
  %2735 = vmatprep.subr.mxu0 0.0
  %2736 = vmatpush2.msra.mxu0 0.0
  %2737 = vmatprep.subr.mxu0 0.0
  %2738 = vmatpush2.msra.mxu0 0.0
  %2739 = vmatprep.subr.mxu0 0.0
  %2740 = vmatpush2.msra.mxu0 0.0
  %2741 = vmatprep.subr.mxu0 0.0
  %2742 = vmatpush2.msra.mxu0 0.0
  %2743 = vmatprep.subr.mxu0 0.0
  %2744 = vmatpush2.msra.mxu0 0.0
  %2745 = vmatprep.subr.mxu0 0.0
  %2746 = vmatpush2.msra.mxu0 0.0
  %2747 = vmatprep.mubr.f32.mxu0 0.0
  %2748 = vmatmul.mubr.f32.gmra.mxu0 %v2678
  %v2749 = vpop.f32.mrf.mxu0
  %v2750 = vadd.f32 0.0, %v2749
  %v2751 = vpop.f32.mrf.mxu0
  %2752 = vmatprep.mubr.f32.mxu0 0.0
  %2753 = vmatmul.mubr.f32.gmra.mxu0 %v2681
  %v2754 = vpop.f32.mrf.mxu0
  %v2755 = vadd.f32 0.0, %v2754
  %v2756 = vpop.f32.mrf.mxu0
  %2757 = vdwg.mxu0
  %v2759 = vsel %vm651, %v595, 0
  %v2762 = vsel %vm651, %v596, 0
  %2764 = vmatprep.subr.mxu0 0.0
  %2765 = vmatpush1.msra.mxu0 0.0
  %2766 = vmatprep.subr.mxu0 0.0
  %2767 = vmatpush1.msra.mxu0 0.0
  %2768 = vmatprep.subr.mxu0 0.0
  %2769 = vmatpush1.msra.mxu0 0.0
  %2770 = vmatprep.subr.mxu0 0.0
  %2771 = vmatpush1.msra.mxu0 0.0
  %2772 = vmatprep.subr.mxu0 0.0
  %2773 = vmatpush1.msra.mxu0 0.0
  %2774 = vmatprep.subr.mxu0 0.0
  %2775 = vmatpush1.msra.mxu0 0.0
  %2776 = vmatprep.subr.mxu0 0.0
  %2777 = vmatpush1.msra.mxu0 0.0
  %2778 = vmatprep.subr.mxu0 0.0
  %2779 = vmatpush1.msra.mxu0 0.0
  %2780 = vmatprep.subr.mxu0 0.0
  %2781 = vmatpush1.msra.mxu0 0.0
  %2782 = vmatprep.subr.mxu0 0.0
  %2783 = vmatpush1.msra.mxu0 0.0
  %2784 = vmatprep.subr.mxu0 0.0
  %2785 = vmatpush1.msra.mxu0 0.0
  %2786 = vmatprep.subr.mxu0 0.0
  %2787 = vmatpush1.msra.mxu0 0.0
  %2788 = vmatprep.subr.mxu0 0.0
  %2789 = vmatpush1.msra.mxu0 0.0
  %2790 = vmatprep.subr.mxu0 0.0
  %2791 = vmatpush1.msra.mxu0 0.0
  %2792 = vmatprep.subr.mxu0 0.0
  %2793 = vmatpush1.msra.mxu0 0.0
  %2794 = vmatprep.subr.mxu0 0.0
  %2795 = vmatpush1.msra.mxu0 %v641
  %2796 = vmatprep.subr.mxu0 0.0
  %2797 = vmatpush2.msra.mxu0 0.0
  %2798 = vmatprep.subr.mxu0 0.0
  %2799 = vmatpush2.msra.mxu0 0.0
  %2800 = vmatprep.subr.mxu0 0.0
  %2801 = vmatpush2.msra.mxu0 0.0
  %2802 = vmatprep.subr.mxu0 0.0
  %2803 = vmatpush2.msra.mxu0 0.0
  %2804 = vmatprep.subr.mxu0 0.0
  %2805 = vmatpush2.msra.mxu0 0.0
  %2806 = vmatprep.subr.mxu0 0.0
  %2807 = vmatpush2.msra.mxu0 0.0
  %2808 = vmatprep.subr.mxu0 0.0
  %2809 = vmatpush2.msra.mxu0 0.0
  %2810 = vmatprep.subr.mxu0 0.0
  %2811 = vmatpush2.msra.mxu0 0.0
  %2812 = vmatprep.subr.mxu0 0.0
  %2813 = vmatpush2.msra.mxu0 0.0
  %2814 = vmatprep.subr.mxu0 0.0
  %2815 = vmatpush2.msra.mxu0 0.0
  %2816 = vmatprep.subr.mxu0 0.0
  %2817 = vmatpush2.msra.mxu0 0.0
  %2818 = vmatprep.subr.mxu0 0.0
  %2819 = vmatpush2.msra.mxu0 0.0
  %2820 = vmatprep.subr.mxu0 0.0
  %2821 = vmatpush2.msra.mxu0 0.0
  %2822 = vmatprep.subr.mxu0 0.0
  %2823 = vmatpush2.msra.mxu0 0.0
  %2824 = vmatprep.subr.mxu0 0.0
  %2825 = vmatpush2.msra.mxu0 0.0
  %2826 = vmatprep.subr.mxu0 0.0
  %2827 = vmatpush2.msra.mxu0 0.0
  %2828 = vmatprep.mubr.f32.mxu0 0.0
  %2829 = vmatmul.mubr.f32.gmra.mxu0 %v2759
  %v2830 = vpop.f32.mrf.mxu0
  %v2831 = vadd.f32 0.0, %v2830
  %v2832 = vpop.f32.mrf.mxu0
  %2833 = vmatprep.mubr.f32.mxu0 0.0
  %2834 = vmatmul.mubr.f32.gmra.mxu0 %v2762
  %v2835 = vpop.f32.mrf.mxu0
  %v2836 = vadd.f32 0.0, %v2835
  %v2837 = vpop.f32.mrf.mxu0
  %2838 = vdwg.mxu0
  %v2840 = vsel %vm651, %v597, 0
  %v2843 = vsel %vm651, %v598, 0
  %2845 = vmatprep.subr.mxu0 0.0
  %2846 = vmatpush1.msra.mxu0 0.0
  %2847 = vmatprep.subr.mxu0 0.0
  %2848 = vmatpush1.msra.mxu0 0.0
  %2849 = vmatprep.subr.mxu0 0.0
  %2850 = vmatpush1.msra.mxu0 0.0
  %2851 = vmatprep.subr.mxu0 0.0
  %2852 = vmatpush1.msra.mxu0 0.0
  %2853 = vmatprep.subr.mxu0 0.0
  %2854 = vmatpush1.msra.mxu0 0.0
  %2855 = vmatprep.subr.mxu0 0.0
  %2856 = vmatpush1.msra.mxu0 0.0
  %2857 = vmatprep.subr.mxu0 0.0
  %2858 = vmatpush1.msra.mxu0 0.0
  %2859 = vmatprep.subr.mxu0 0.0
  %2860 = vmatpush1.msra.mxu0 0.0
  %2861 = vmatprep.subr.mxu0 0.0
  %2862 = vmatpush1.msra.mxu0 0.0
  %2863 = vmatprep.subr.mxu0 0.0
  %2864 = vmatpush1.msra.mxu0 0.0
  %2865 = vmatprep.subr.mxu0 0.0
  %2866 = vmatpush1.msra.mxu0 0.0
  %2867 = vmatprep.subr.mxu0 0.0
  %2868 = vmatpush1.msra.mxu0 0.0
  %2869 = vmatprep.subr.mxu0 0.0
  %2870 = vmatpush1.msra.mxu0 0.0
  %2871 = vmatprep.subr.mxu0 0.0
  %2872 = vmatpush1.msra.mxu0 0.0
  %2873 = vmatprep.subr.mxu0 0.0
  %2874 = vmatpush1.msra.mxu0 0.0
  %2875 = vmatprep.subr.mxu0 0.0
  %2876 = vmatpush1.msra.mxu0 %v642
  %2877 = vmatprep.subr.mxu0 0.0
  %2878 = vmatpush2.msra.mxu0 0.0
  %2879 = vmatprep.subr.mxu0 0.0
  %2880 = vmatpush2.msra.mxu0 0.0
  %2881 = vmatprep.subr.mxu0 0.0
  %2882 = vmatpush2.msra.mxu0 0.0
  %2883 = vmatprep.subr.mxu0 0.0
  %2884 = vmatpush2.msra.mxu0 0.0
  %2885 = vmatprep.subr.mxu0 0.0
  %2886 = vmatpush2.msra.mxu0 0.0
  %2887 = vmatprep.subr.mxu0 0.0
  %2888 = vmatpush2.msra.mxu0 0.0
  %2889 = vmatprep.subr.mxu0 0.0
  %2890 = vmatpush2.msra.mxu0 0.0
  %2891 = vmatprep.subr.mxu0 0.0
  %2892 = vmatpush2.msra.mxu0 0.0
  %2893 = vmatprep.subr.mxu0 0.0
  %2894 = vmatpush2.msra.mxu0 0.0
  %2895 = vmatprep.subr.mxu0 0.0
  %2896 = vmatpush2.msra.mxu0 0.0
  %2897 = vmatprep.subr.mxu0 0.0
  %2898 = vmatpush2.msra.mxu0 0.0
  %2899 = vmatprep.subr.mxu0 0.0
  %2900 = vmatpush2.msra.mxu0 0.0
  %2901 = vmatprep.subr.mxu0 0.0
  %2902 = vmatpush2.msra.mxu0 0.0
  %2903 = vmatprep.subr.mxu0 0.0
  %2904 = vmatpush2.msra.mxu0 0.0
  %2905 = vmatprep.subr.mxu0 0.0
  %2906 = vmatpush2.msra.mxu0 0.0
  %2907 = vmatprep.subr.mxu0 0.0
  %2908 = vmatpush2.msra.mxu0 0.0
  %2909 = vmatprep.mubr.f32.mxu0 0.0
  %2910 = vmatmul.mubr.f32.gmra.mxu0 %v2840
  %v2911 = vpop.f32.mrf.mxu0
  %v2912 = vadd.f32 0.0, %v2911
  %v2913 = vpop.f32.mrf.mxu0
  %2914 = vmatprep.mubr.f32.mxu0 0.0
  %2915 = vmatmul.mubr.f32.gmra.mxu0 %v2843
  %v2916 = vpop.f32.mrf.mxu0
  %v2917 = vadd.f32 0.0, %v2916
  %v2918 = vpop.f32.mrf.mxu0
  %2919 = vdwg.mxu0
  %v2921 = vsel %vm651, %v599, 0
  %v2924 = vsel %vm651, %v600, 0
  %2926 = vmatprep.subr.mxu0 0.0
  %2927 = vmatpush1.msra.mxu0 0.0
  %2928 = vmatprep.subr.mxu0 0.0
  %2929 = vmatpush1.msra.mxu0 0.0
  %2930 = vmatprep.subr.mxu0 0.0
  %2931 = vmatpush1.msra.mxu0 0.0
  %2932 = vmatprep.subr.mxu0 0.0
  %2933 = vmatpush1.msra.mxu0 0.0
  %2934 = vmatprep.subr.mxu0 0.0
  %2935 = vmatpush1.msra.mxu0 0.0
  %2936 = vmatprep.subr.mxu0 0.0
  %2937 = vmatpush1.msra.mxu0 0.0
  %2938 = vmatprep.subr.mxu0 0.0
  %2939 = vmatpush1.msra.mxu0 0.0
  %2940 = vmatprep.subr.mxu0 0.0
  %2941 = vmatpush1.msra.mxu0 0.0
  %2942 = vmatprep.subr.mxu0 0.0
  %2943 = vmatpush1.msra.mxu0 0.0
  %2944 = vmatprep.subr.mxu0 0.0
  %2945 = vmatpush1.msra.mxu0 0.0
  %2946 = vmatprep.subr.mxu0 0.0
  %2947 = vmatpush1.msra.mxu0 0.0
  %2948 = vmatprep.subr.mxu0 0.0
  %2949 = vmatpush1.msra.mxu0 0.0
  %2950 = vmatprep.subr.mxu0 0.0
  %2951 = vmatpush1.msra.mxu0 0.0
  %2952 = vmatprep.subr.mxu0 0.0
  %2953 = vmatpush1.msra.mxu0 0.0
  %2954 = vmatprep.subr.mxu0 0.0
  %2955 = vmatpush1.msra.mxu0 0.0
  %2956 = vmatprep.subr.mxu0 0.0
  %2957 = vmatpush1.msra.mxu0 %v643
  %2958 = vmatprep.subr.mxu0 0.0
  %2959 = vmatpush2.msra.mxu0 0.0
  %2960 = vmatprep.subr.mxu0 0.0
  %2961 = vmatpush2.msra.mxu0 0.0
  %2962 = vmatprep.subr.mxu0 0.0
  %2963 = vmatpush2.msra.mxu0 0.0
  %2964 = vmatprep.subr.mxu0 0.0
  %2965 = vmatpush2.msra.mxu0 0.0
  %2966 = vmatprep.subr.mxu0 0.0
  %2967 = vmatpush2.msra.mxu0 0.0
  %2968 = vmatprep.subr.mxu0 0.0
  %2969 = vmatpush2.msra.mxu0 0.0
  %2970 = vmatprep.subr.mxu0 0.0
  %2971 = vmatpush2.msra.mxu0 0.0
  %2972 = vmatprep.subr.mxu0 0.0
  %2973 = vmatpush2.msra.mxu0 0.0
  %2974 = vmatprep.subr.mxu0 0.0
  %2975 = vmatpush2.msra.mxu0 0.0
  %2976 = vmatprep.subr.mxu0 0.0
  %2977 = vmatpush2.msra.mxu0 0.0
  %2978 = vmatprep.subr.mxu0 0.0
  %2979 = vmatpush2.msra.mxu0 0.0
  %2980 = vmatprep.subr.mxu0 0.0
  %2981 = vmatpush2.msra.mxu0 0.0
  %2982 = vmatprep.subr.mxu0 0.0
  %2983 = vmatpush2.msra.mxu0 0.0
  %2984 = vmatprep.subr.mxu0 0.0
  %2985 = vmatpush2.msra.mxu0 0.0
  %2986 = vmatprep.subr.mxu0 0.0
  %2987 = vmatpush2.msra.mxu0 0.0
  %2988 = vmatprep.subr.mxu0 0.0
  %2989 = vmatpush2.msra.mxu0 0.0
  %2990 = vmatprep.mubr.f32.mxu0 0.0
  %2991 = vmatmul.mubr.f32.gmra.mxu0 %v2921
  %v2992 = vpop.f32.mrf.mxu0
  %v2993 = vadd.f32 0.0, %v2992
  %v2994 = vpop.f32.mrf.mxu0
  %2995 = vmatprep.mubr.f32.mxu0 0.0
  %2996 = vmatmul.mubr.f32.gmra.mxu0 %v2924
  %v2997 = vpop.f32.mrf.mxu0
  %v2998 = vadd.f32 0.0, %v2997
  %v2999 = vpop.f32.mrf.mxu0
  %3000 = vdwg.mxu0
  %v3002 = vsel %vm651, %v601, 0
  %v3005 = vsel %vm651, %v602, 0
  %3007 = vmatprep.subr.mxu0 0.0
  %3008 = vmatpush1.msra.mxu0 0.0
  %3009 = vmatprep.subr.mxu0 0.0
  %3010 = vmatpush1.msra.mxu0 0.0
  %3011 = vmatprep.subr.mxu0 0.0
  %3012 = vmatpush1.msra.mxu0 0.0
  %3013 = vmatprep.subr.mxu0 0.0
  %3014 = vmatpush1.msra.mxu0 0.0
  %3015 = vmatprep.subr.mxu0 0.0
  %3016 = vmatpush1.msra.mxu0 0.0
  %3017 = vmatprep.subr.mxu0 0.0
  %3018 = vmatpush1.msra.mxu0 0.0
  %3019 = vmatprep.subr.mxu0 0.0
  %3020 = vmatpush1.msra.mxu0 0.0
  %3021 = vmatprep.subr.mxu0 0.0
  %3022 = vmatpush1.msra.mxu0 0.0
  %3023 = vmatprep.subr.mxu0 0.0
  %3024 = vmatpush1.msra.mxu0 0.0
  %3025 = vmatprep.subr.mxu0 0.0
  %3026 = vmatpush1.msra.mxu0 0.0
  %3027 = vmatprep.subr.mxu0 0.0
  %3028 = vmatpush1.msra.mxu0 0.0
  %3029 = vmatprep.subr.mxu0 0.0
  %3030 = vmatpush1.msra.mxu0 0.0
  %3031 = vmatprep.subr.mxu0 0.0
  %3032 = vmatpush1.msra.mxu0 0.0
  %3033 = vmatprep.subr.mxu0 0.0
  %3034 = vmatpush1.msra.mxu0 0.0
  %3035 = vmatprep.subr.mxu0 0.0
  %3036 = vmatpush1.msra.mxu0 0.0
  %3037 = vmatprep.subr.mxu0 0.0
  %3038 = vmatpush1.msra.mxu0 %v644
  %3039 = vmatprep.subr.mxu0 0.0
  %3040 = vmatpush2.msra.mxu0 0.0
  %3041 = vmatprep.subr.mxu0 0.0
  %3042 = vmatpush2.msra.mxu0 0.0
  %3043 = vmatprep.subr.mxu0 0.0
  %3044 = vmatpush2.msra.mxu0 0.0
  %3045 = vmatprep.subr.mxu0 0.0
  %3046 = vmatpush2.msra.mxu0 0.0
  %3047 = vmatprep.subr.mxu0 0.0
  %3048 = vmatpush2.msra.mxu0 0.0
  %3049 = vmatprep.subr.mxu0 0.0
  %3050 = vmatpush2.msra.mxu0 0.0
  %3051 = vmatprep.subr.mxu0 0.0
  %3052 = vmatpush2.msra.mxu0 0.0
  %3053 = vmatprep.subr.mxu0 0.0
  %3054 = vmatpush2.msra.mxu0 0.0
  %3055 = vmatprep.subr.mxu0 0.0
  %3056 = vmatpush2.msra.mxu0 0.0
  %3057 = vmatprep.subr.mxu0 0.0
  %3058 = vmatpush2.msra.mxu0 0.0
  %3059 = vmatprep.subr.mxu0 0.0
  %3060 = vmatpush2.msra.mxu0 0.0
  %3061 = vmatprep.subr.mxu0 0.0
  %3062 = vmatpush2.msra.mxu0 0.0
  %3063 = vmatprep.subr.mxu0 0.0
  %3064 = vmatpush2.msra.mxu0 0.0
  %3065 = vmatprep.subr.mxu0 0.0
  %3066 = vmatpush2.msra.mxu0 0.0
  %3067 = vmatprep.subr.mxu0 0.0
  %3068 = vmatpush2.msra.mxu0 0.0
  %3069 = vmatprep.subr.mxu0 0.0
  %3070 = vmatpush2.msra.mxu0 0.0
  %3071 = vmatprep.mubr.f32.mxu0 0.0
  %3072 = vmatmul.mubr.f32.gmra.mxu0 %v3002
  %v3073 = vpop.f32.mrf.mxu0
  %v3074 = vadd.f32 0.0, %v3073
  %v3075 = vpop.f32.mrf.mxu0
  %3076 = vmatprep.mubr.f32.mxu0 0.0
  %3077 = vmatmul.mubr.f32.gmra.mxu0 %v3005
  %v3078 = vpop.f32.mrf.mxu0
  %v3079 = vadd.f32 0.0, %v3078
  %v3080 = vpop.f32.mrf.mxu0
  %3081 = vdwg.mxu0
  %v3083 = vsel %vm651, %v603, 0
  %v3086 = vsel %vm651, %v604, 0
  %3088 = vmatprep.subr.mxu0 0.0
  %3089 = vmatpush1.msra.mxu0 0.0
  %3090 = vmatprep.subr.mxu0 0.0
  %3091 = vmatpush1.msra.mxu0 0.0
  %3092 = vmatprep.subr.mxu0 0.0
  %3093 = vmatpush1.msra.mxu0 0.0
  %3094 = vmatprep.subr.mxu0 0.0
  %3095 = vmatpush1.msra.mxu0 0.0
  %3096 = vmatprep.subr.mxu0 0.0
  %3097 = vmatpush1.msra.mxu0 0.0
  %3098 = vmatprep.subr.mxu0 0.0
  %3099 = vmatpush1.msra.mxu0 0.0
  %3100 = vmatprep.subr.mxu0 0.0
  %3101 = vmatpush1.msra.mxu0 0.0
  %3102 = vmatprep.subr.mxu0 0.0
  %3103 = vmatpush1.msra.mxu0 0.0
  %3104 = vmatprep.subr.mxu0 0.0
  %3105 = vmatpush1.msra.mxu0 0.0
  %3106 = vmatprep.subr.mxu0 0.0
  %3107 = vmatpush1.msra.mxu0 0.0
  %3108 = vmatprep.subr.mxu0 0.0
  %3109 = vmatpush1.msra.mxu0 0.0
  %3110 = vmatprep.subr.mxu0 0.0
  %3111 = vmatpush1.msra.mxu0 0.0
  %3112 = vmatprep.subr.mxu0 0.0
  %3113 = vmatpush1.msra.mxu0 0.0
  %3114 = vmatprep.subr.mxu0 0.0
  %3115 = vmatpush1.msra.mxu0 0.0
  %3116 = vmatprep.subr.mxu0 0.0
  %3117 = vmatpush1.msra.mxu0 0.0
  %3118 = vmatprep.subr.mxu0 0.0
  %3119 = vmatpush1.msra.mxu0 %v645
  %3120 = vmatprep.subr.mxu0 0.0
  %3121 = vmatpush2.msra.mxu0 0.0
  %3122 = vmatprep.subr.mxu0 0.0
  %3123 = vmatpush2.msra.mxu0 0.0
  %3124 = vmatprep.subr.mxu0 0.0
  %3125 = vmatpush2.msra.mxu0 0.0
  %3126 = vmatprep.subr.mxu0 0.0
  %3127 = vmatpush2.msra.mxu0 0.0
  %3128 = vmatprep.subr.mxu0 0.0
  %3129 = vmatpush2.msra.mxu0 0.0
  %3130 = vmatprep.subr.mxu0 0.0
  %3131 = vmatpush2.msra.mxu0 0.0
  %3132 = vmatprep.subr.mxu0 0.0
  %3133 = vmatpush2.msra.mxu0 0.0
  %3134 = vmatprep.subr.mxu0 0.0
  %3135 = vmatpush2.msra.mxu0 0.0
  %3136 = vmatprep.subr.mxu0 0.0
  %3137 = vmatpush2.msra.mxu0 0.0
  %3138 = vmatprep.subr.mxu0 0.0
  %3139 = vmatpush2.msra.mxu0 0.0
  %3140 = vmatprep.subr.mxu0 0.0
  %3141 = vmatpush2.msra.mxu0 0.0
  %3142 = vmatprep.subr.mxu0 0.0
  %3143 = vmatpush2.msra.mxu0 0.0
  %3144 = vmatprep.subr.mxu0 0.0
  %3145 = vmatpush2.msra.mxu0 0.0
  %3146 = vmatprep.subr.mxu0 0.0
  %3147 = vmatpush2.msra.mxu0 0.0
  %3148 = vmatprep.subr.mxu0 0.0
  %3149 = vmatpush2.msra.mxu0 0.0
  %3150 = vmatprep.subr.mxu0 0.0
  %3151 = vmatpush2.msra.mxu0 0.0
  %3152 = vmatprep.mubr.f32.mxu0 0.0
  %3153 = vmatmul.mubr.f32.gmra.mxu0 %v3083
  %v3154 = vpop.f32.mrf.mxu0
  %v3155 = vadd.f32 0.0, %v3154
  %v3156 = vpop.f32.mrf.mxu0
  %3157 = vmatprep.mubr.f32.mxu0 0.0
  %3158 = vmatmul.mubr.f32.gmra.mxu0 %v3086
  %v3159 = vpop.f32.mrf.mxu0
  %v3160 = vadd.f32 0.0, %v3159
  %v3161 = vpop.f32.mrf.mxu0
  %3162 = vdwg.mxu0
  %v3164 = vsel %vm651, %v605, 0
  %v3167 = vsel %vm651, %v606, 0
  %3169 = vmatprep.subr.mxu0 0.0
  %3170 = vmatpush1.msra.mxu0 0.0
  %3171 = vmatprep.subr.mxu0 0.0
  %3172 = vmatpush1.msra.mxu0 0.0
  %3173 = vmatprep.subr.mxu0 0.0
  %3174 = vmatpush1.msra.mxu0 0.0
  %3175 = vmatprep.subr.mxu0 0.0
  %3176 = vmatpush1.msra.mxu0 0.0
  %3177 = vmatprep.subr.mxu0 0.0
  %3178 = vmatpush1.msra.mxu0 0.0
  %3179 = vmatprep.subr.mxu0 0.0
  %3180 = vmatpush1.msra.mxu0 0.0
  %3181 = vmatprep.subr.mxu0 0.0
  %3182 = vmatpush1.msra.mxu0 0.0
  %3183 = vmatprep.subr.mxu0 0.0
  %3184 = vmatpush1.msra.mxu0 0.0
  %3185 = vmatprep.subr.mxu0 0.0
  %3186 = vmatpush1.msra.mxu0 0.0
  %3187 = vmatprep.subr.mxu0 0.0
  %3188 = vmatpush1.msra.mxu0 0.0
  %3189 = vmatprep.subr.mxu0 0.0
  %3190 = vmatpush1.msra.mxu0 0.0
  %3191 = vmatprep.subr.mxu0 0.0
  %3192 = vmatpush1.msra.mxu0 0.0
  %3193 = vmatprep.subr.mxu0 0.0
  %3194 = vmatpush1.msra.mxu0 0.0
  %3195 = vmatprep.subr.mxu0 0.0
  %3196 = vmatpush1.msra.mxu0 0.0
  %3197 = vmatprep.subr.mxu0 0.0
  %3198 = vmatpush1.msra.mxu0 0.0
  %3199 = vmatprep.subr.mxu0 0.0
  %3200 = vmatpush1.msra.mxu0 %v646
  %3201 = vmatprep.subr.mxu0 0.0
  %3202 = vmatpush2.msra.mxu0 0.0
  %3203 = vmatprep.subr.mxu0 0.0
  %3204 = vmatpush2.msra.mxu0 0.0
  %3205 = vmatprep.subr.mxu0 0.0
  %3206 = vmatpush2.msra.mxu0 0.0
  %3207 = vmatprep.subr.mxu0 0.0
  %3208 = vmatpush2.msra.mxu0 0.0
  %3209 = vmatprep.subr.mxu0 0.0
  %3210 = vmatpush2.msra.mxu0 0.0
  %3211 = vmatprep.subr.mxu0 0.0
  %3212 = vmatpush2.msra.mxu0 0.0
  %3213 = vmatprep.subr.mxu0 0.0
  %3214 = vmatpush2.msra.mxu0 0.0
  %3215 = vmatprep.subr.mxu0 0.0
  %3216 = vmatpush2.msra.mxu0 0.0
  %3217 = vmatprep.subr.mxu0 0.0
  %3218 = vmatpush2.msra.mxu0 0.0
  %3219 = vmatprep.subr.mxu0 0.0
  %3220 = vmatpush2.msra.mxu0 0.0
  %3221 = vmatprep.subr.mxu0 0.0
  %3222 = vmatpush2.msra.mxu0 0.0
  %3223 = vmatprep.subr.mxu0 0.0
  %3224 = vmatpush2.msra.mxu0 0.0
  %3225 = vmatprep.subr.mxu0 0.0
  %3226 = vmatpush2.msra.mxu0 0.0
  %3227 = vmatprep.subr.mxu0 0.0
  %3228 = vmatpush2.msra.mxu0 0.0
  %3229 = vmatprep.subr.mxu0 0.0
  %3230 = vmatpush2.msra.mxu0 0.0
  %3231 = vmatprep.subr.mxu0 0.0
  %3232 = vmatpush2.msra.mxu0 0.0
  %3233 = vmatprep.mubr.f32.mxu0 0.0
  %3234 = vmatmul.mubr.f32.gmra.mxu0 %v3164
  %v3235 = vpop.f32.mrf.mxu0
  %v3236 = vadd.f32 0.0, %v3235
  %v3237 = vpop.f32.mrf.mxu0
  %3238 = vmatprep.mubr.f32.mxu0 0.0
  %3239 = vmatmul.mubr.f32.gmra.mxu0 %v3167
  %v3240 = vpop.f32.mrf.mxu0
  %v3241 = vadd.f32 0.0, %v3240
  %v3242 = vpop.f32.mrf.mxu0
  %3243 = vdwg.mxu0
  %v3245 = vsel %vm651, %v607, 0
  %v3248 = vsel %vm651, %v608, 0
  %3250 = vmatprep.subr.mxu0 0.0
  %3251 = vmatpush1.msra.mxu0 0.0
  %3252 = vmatprep.subr.mxu0 0.0
  %3253 = vmatpush1.msra.mxu0 0.0
  %3254 = vmatprep.subr.mxu0 0.0
  %3255 = vmatpush1.msra.mxu0 0.0
  %3256 = vmatprep.subr.mxu0 0.0
  %3257 = vmatpush1.msra.mxu0 0.0
  %3258 = vmatprep.subr.mxu0 0.0
  %3259 = vmatpush1.msra.mxu0 0.0
  %3260 = vmatprep.subr.mxu0 0.0
  %3261 = vmatpush1.msra.mxu0 0.0
  %3262 = vmatprep.subr.mxu0 0.0
  %3263 = vmatpush1.msra.mxu0 0.0
  %3264 = vmatprep.subr.mxu0 0.0
  %3265 = vmatpush1.msra.mxu0 0.0
  %3266 = vmatprep.subr.mxu0 0.0
  %3267 = vmatpush1.msra.mxu0 0.0
  %3268 = vmatprep.subr.mxu0 0.0
  %3269 = vmatpush1.msra.mxu0 0.0
  %3270 = vmatprep.subr.mxu0 0.0
  %3271 = vmatpush1.msra.mxu0 0.0
  %3272 = vmatprep.subr.mxu0 0.0
  %3273 = vmatpush1.msra.mxu0 0.0
  %3274 = vmatprep.subr.mxu0 0.0
  %3275 = vmatpush1.msra.mxu0 0.0
  %3276 = vmatprep.subr.mxu0 0.0
  %3277 = vmatpush1.msra.mxu0 0.0
  %3278 = vmatprep.subr.mxu0 0.0
  %3279 = vmatpush1.msra.mxu0 0.0
  %3280 = vmatprep.subr.mxu0 0.0
  %3281 = vmatpush1.msra.mxu0 %v647
  %3282 = vmatprep.subr.mxu0 0.0
  %3283 = vmatpush2.msra.mxu0 0.0
  %3284 = vmatprep.subr.mxu0 0.0
  %3285 = vmatpush2.msra.mxu0 0.0
  %3286 = vmatprep.subr.mxu0 0.0
  %3287 = vmatpush2.msra.mxu0 0.0
  %3288 = vmatprep.subr.mxu0 0.0
  %3289 = vmatpush2.msra.mxu0 0.0
  %3290 = vmatprep.subr.mxu0 0.0
  %3291 = vmatpush2.msra.mxu0 0.0
  %3292 = vmatprep.subr.mxu0 0.0
  %3293 = vmatpush2.msra.mxu0 0.0
  %3294 = vmatprep.subr.mxu0 0.0
  %3295 = vmatpush2.msra.mxu0 0.0
  %3296 = vmatprep.subr.mxu0 0.0
  %3297 = vmatpush2.msra.mxu0 0.0
  %3298 = vmatprep.subr.mxu0 0.0
  %3299 = vmatpush2.msra.mxu0 0.0
  %3300 = vmatprep.subr.mxu0 0.0
  %3301 = vmatpush2.msra.mxu0 0.0
  %3302 = vmatprep.subr.mxu0 0.0
  %3303 = vmatpush2.msra.mxu0 0.0
  %3304 = vmatprep.subr.mxu0 0.0
  %3305 = vmatpush2.msra.mxu0 0.0
  %3306 = vmatprep.subr.mxu0 0.0
  %3307 = vmatpush2.msra.mxu0 0.0
  %3308 = vmatprep.subr.mxu0 0.0
  %3309 = vmatpush2.msra.mxu0 0.0
  %3310 = vmatprep.subr.mxu0 0.0
  %3311 = vmatpush2.msra.mxu0 0.0
  %3312 = vmatprep.subr.mxu0 0.0
  %3313 = vmatpush2.msra.mxu0 0.0
  %3314 = vmatprep.mubr.f32.mxu0 0.0
  %3315 = vmatmul.mubr.f32.gmra.mxu0 %v3245
  %v3316 = vpop.f32.mrf.mxu0
  %v3317 = vadd.f32 0.0, %v3316
  %v3318 = vpop.f32.mrf.mxu0
  %3319 = vmatprep.mubr.f32.mxu0 0.0
  %3320 = vmatmul.mubr.f32.gmra.mxu0 %v3248
  %v3321 = vpop.f32.mrf.mxu0
  %v3322 = vadd.f32 0.0, %v3321
  %v3323 = vpop.f32.mrf.mxu0
  %3324 = vdwg.mxu0
  %v3326 = vsel %vm651, %v609, 0
  %v3329 = vsel %vm651, %v610, 0
  %3331 = vmatprep.subr.mxu0 0.0
  %3332 = vmatpush1.msra.mxu0 0.0
  %3333 = vmatprep.subr.mxu0 0.0
  %3334 = vmatpush1.msra.mxu0 0.0
  %3335 = vmatprep.subr.mxu0 0.0
  %3336 = vmatpush1.msra.mxu0 0.0
  %3337 = vmatprep.subr.mxu0 0.0
  %3338 = vmatpush1.msra.mxu0 0.0
  %3339 = vmatprep.subr.mxu0 0.0
  %3340 = vmatpush1.msra.mxu0 0.0
  %3341 = vmatprep.subr.mxu0 0.0
  %3342 = vmatpush1.msra.mxu0 0.0
  %3343 = vmatprep.subr.mxu0 0.0
  %3344 = vmatpush1.msra.mxu0 0.0
  %3345 = vmatprep.subr.mxu0 0.0
  %3346 = vmatpush1.msra.mxu0 0.0
  %3347 = vmatprep.subr.mxu0 0.0
  %3348 = vmatpush1.msra.mxu0 0.0
  %3349 = vmatprep.subr.mxu0 0.0
  %3350 = vmatpush1.msra.mxu0 0.0
  %3351 = vmatprep.subr.mxu0 0.0
  %3352 = vmatpush1.msra.mxu0 0.0
  %3353 = vmatprep.subr.mxu0 0.0
  %3354 = vmatpush1.msra.mxu0 0.0
  %3355 = vmatprep.subr.mxu0 0.0
  %3356 = vmatpush1.msra.mxu0 0.0
  %3357 = vmatprep.subr.mxu0 0.0
  %3358 = vmatpush1.msra.mxu0 0.0
  %3359 = vmatprep.subr.mxu0 0.0
  %3360 = vmatpush1.msra.mxu0 0.0
  %3361 = vmatprep.subr.mxu0 0.0
  %3362 = vmatpush1.msra.mxu0 %v648
  %3363 = vmatprep.subr.mxu0 0.0
  %3364 = vmatpush2.msra.mxu0 0.0
  %3365 = vmatprep.subr.mxu0 0.0
  %3366 = vmatpush2.msra.mxu0 0.0
  %3367 = vmatprep.subr.mxu0 0.0
  %3368 = vmatpush2.msra.mxu0 0.0
  %3369 = vmatprep.subr.mxu0 0.0
  %3370 = vmatpush2.msra.mxu0 0.0
  %3371 = vmatprep.subr.mxu0 0.0
  %3372 = vmatpush2.msra.mxu0 0.0
  %3373 = vmatprep.subr.mxu0 0.0
  %3374 = vmatpush2.msra.mxu0 0.0
  %3375 = vmatprep.subr.mxu0 0.0
  %3376 = vmatpush2.msra.mxu0 0.0
  %3377 = vmatprep.subr.mxu0 0.0
  %3378 = vmatpush2.msra.mxu0 0.0
  %3379 = vmatprep.subr.mxu0 0.0
  %3380 = vmatpush2.msra.mxu0 0.0
  %3381 = vmatprep.subr.mxu0 0.0
  %3382 = vmatpush2.msra.mxu0 0.0
  %3383 = vmatprep.subr.mxu0 0.0
  %3384 = vmatpush2.msra.mxu0 0.0
  %3385 = vmatprep.subr.mxu0 0.0
  %3386 = vmatpush2.msra.mxu0 0.0
  %3387 = vmatprep.subr.mxu0 0.0
  %3388 = vmatpush2.msra.mxu0 0.0
  %3389 = vmatprep.subr.mxu0 0.0
  %3390 = vmatpush2.msra.mxu0 0.0
  %3391 = vmatprep.subr.mxu0 0.0
  %3392 = vmatpush2.msra.mxu0 0.0
  %3393 = vmatprep.subr.mxu0 0.0
  %3394 = vmatpush2.msra.mxu0 0.0
  %3395 = vmatprep.mubr.f32.mxu0 0.0
  %3396 = vmatmul.mubr.f32.gmra.mxu0 %v3326
  %v3397 = vpop.f32.mrf.mxu0
  %v3398 = vadd.f32 0.0, %v3397
  %v3399 = vpop.f32.mrf.mxu0
  %3400 = vmatprep.mubr.f32.mxu0 0.0
  %3401 = vmatmul.mubr.f32.gmra.mxu0 %v3329
  %v3402 = vpop.f32.mrf.mxu0
  %v3403 = vadd.f32 0.0, %v3402
  %v3404 = vpop.f32.mrf.mxu0
  %3405 = vdwg.mxu0
  %v3407 = vsel %vm651, %v611, 0
  %v3410 = vsel %vm651, %v612, 0
  %3412 = vmatprep.subr.mxu0 0.0
  %3413 = vmatpush1.msra.mxu0 0.0
  %3414 = vmatprep.subr.mxu0 0.0
  %3415 = vmatpush1.msra.mxu0 0.0
  %3416 = vmatprep.subr.mxu0 0.0
  %3417 = vmatpush1.msra.mxu0 0.0
  %3418 = vmatprep.subr.mxu0 0.0
  %3419 = vmatpush1.msra.mxu0 0.0
  %3420 = vmatprep.subr.mxu0 0.0
  %3421 = vmatpush1.msra.mxu0 0.0
  %3422 = vmatprep.subr.mxu0 0.0
  %3423 = vmatpush1.msra.mxu0 0.0
  %3424 = vmatprep.subr.mxu0 0.0
  %3425 = vmatpush1.msra.mxu0 0.0
  %3426 = vmatprep.subr.mxu0 0.0
  %3427 = vmatpush1.msra.mxu0 0.0
  %3428 = vmatprep.subr.mxu0 0.0
  %3429 = vmatpush1.msra.mxu0 0.0
  %3430 = vmatprep.subr.mxu0 0.0
  %3431 = vmatpush1.msra.mxu0 0.0
  %3432 = vmatprep.subr.mxu0 0.0
  %3433 = vmatpush1.msra.mxu0 0.0
  %3434 = vmatprep.subr.mxu0 0.0
  %3435 = vmatpush1.msra.mxu0 0.0
  %3436 = vmatprep.subr.mxu0 0.0
  %3437 = vmatpush1.msra.mxu0 0.0
  %3438 = vmatprep.subr.mxu0 0.0
  %3439 = vmatpush1.msra.mxu0 0.0
  %3440 = vmatprep.subr.mxu0 0.0
  %3441 = vmatpush1.msra.mxu0 0.0
  %3442 = vmatprep.subr.mxu0 0.0
  %3443 = vmatpush1.msra.mxu0 %v649
  %3444 = vmatprep.subr.mxu0 0.0
  %3445 = vmatpush2.msra.mxu0 0.0
  %3446 = vmatprep.subr.mxu0 0.0
  %3447 = vmatpush2.msra.mxu0 0.0
  %3448 = vmatprep.subr.mxu0 0.0
  %3449 = vmatpush2.msra.mxu0 0.0
  %3450 = vmatprep.subr.mxu0 0.0
  %3451 = vmatpush2.msra.mxu0 0.0
  %3452 = vmatprep.subr.mxu0 0.0
  %3453 = vmatpush2.msra.mxu0 0.0
  %3454 = vmatprep.subr.mxu0 0.0
  %3455 = vmatpush2.msra.mxu0 0.0
  %3456 = vmatprep.subr.mxu0 0.0
  %3457 = vmatpush2.msra.mxu0 0.0
  %3458 = vmatprep.subr.mxu0 0.0
  %3459 = vmatpush2.msra.mxu0 0.0
  %3460 = vmatprep.subr.mxu0 0.0
  %3461 = vmatpush2.msra.mxu0 0.0
  %3462 = vmatprep.subr.mxu0 0.0
  %3463 = vmatpush2.msra.mxu0 0.0
  %3464 = vmatprep.subr.mxu0 0.0
  %3465 = vmatpush2.msra.mxu0 0.0
  %3466 = vmatprep.subr.mxu0 0.0
  %3467 = vmatpush2.msra.mxu0 0.0
  %3468 = vmatprep.subr.mxu0 0.0
  %3469 = vmatpush2.msra.mxu0 0.0
  %3470 = vmatprep.subr.mxu0 0.0
  %3471 = vmatpush2.msra.mxu0 0.0
  %3472 = vmatprep.subr.mxu0 0.0
  %3473 = vmatpush2.msra.mxu0 0.0
  %3474 = vmatprep.subr.mxu0 0.0
  %3475 = vmatpush2.msra.mxu0 0.0
  %3476 = vmatprep.mubr.f32.mxu0 0.0
  %3477 = vmatmul.mubr.f32.gmra.mxu0 %v3407
  %v3478 = vpop.f32.mrf.mxu0
  %v3479 = vadd.f32 0.0, %v3478
  %v3480 = vpop.f32.mrf.mxu0
  %3481 = vmatprep.mubr.f32.mxu0 0.0
  %3482 = vmatmul.mubr.f32.gmra.mxu0 %v3410
  %v3483 = vpop.f32.mrf.mxu0
  %v3484 = vadd.f32 0.0, %v3483
  %v3485 = vpop.f32.mrf.mxu0
  %3486 = vdwg.mxu0
  %v3488 = vsel %vm651, %v613, 0
  %v3491 = vsel %vm651, %v614, 0
  %3493 = vmatprep.subr.mxu0 0.0
  %3494 = vmatpush1.msra.mxu0 0.0
  %3495 = vmatprep.subr.mxu0 0.0
  %3496 = vmatpush1.msra.mxu0 0.0
  %3497 = vmatprep.subr.mxu0 0.0
  %3498 = vmatpush1.msra.mxu0 0.0
  %3499 = vmatprep.subr.mxu0 0.0
  %3500 = vmatpush1.msra.mxu0 0.0
  %3501 = vmatprep.subr.mxu0 0.0
  %3502 = vmatpush1.msra.mxu0 0.0
  %3503 = vmatprep.subr.mxu0 0.0
  %3504 = vmatpush1.msra.mxu0 0.0
  %3505 = vmatprep.subr.mxu0 0.0
  %3506 = vmatpush1.msra.mxu0 0.0
  %3507 = vmatprep.subr.mxu0 0.0
  %3508 = vmatpush1.msra.mxu0 0.0
  %3509 = vmatprep.subr.mxu0 0.0
  %3510 = vmatpush1.msra.mxu0 0.0
  %3511 = vmatprep.subr.mxu0 0.0
  %3512 = vmatpush1.msra.mxu0 0.0
  %3513 = vmatprep.subr.mxu0 0.0
  %3514 = vmatpush1.msra.mxu0 0.0
  %3515 = vmatprep.subr.mxu0 0.0
  %3516 = vmatpush1.msra.mxu0 0.0
  %3517 = vmatprep.subr.mxu0 0.0
  %3518 = vmatpush1.msra.mxu0 0.0
  %3519 = vmatprep.subr.mxu0 0.0
  %3520 = vmatpush1.msra.mxu0 0.0
  %3521 = vmatprep.subr.mxu0 0.0
  %3522 = vmatpush1.msra.mxu0 0.0
  %3523 = vmatprep.subr.mxu0 0.0
  %3524 = vmatpush1.msra.mxu0 %v650
  %3525 = vmatprep.subr.mxu0 0.0
  %3526 = vmatpush2.msra.mxu0 0.0
  %3527 = vmatprep.subr.mxu0 0.0
  %3528 = vmatpush2.msra.mxu0 0.0
  %3529 = vmatprep.subr.mxu0 0.0
  %3530 = vmatpush2.msra.mxu0 0.0
  %3531 = vmatprep.subr.mxu0 0.0
  %3532 = vmatpush2.msra.mxu0 0.0
  %3533 = vmatprep.subr.mxu0 0.0
  %3534 = vmatpush2.msra.mxu0 0.0
  %3535 = vmatprep.subr.mxu0 0.0
  %3536 = vmatpush2.msra.mxu0 0.0
  %3537 = vmatprep.subr.mxu0 0.0
  %3538 = vmatpush2.msra.mxu0 0.0
  %3539 = vmatprep.subr.mxu0 0.0
  %3540 = vmatpush2.msra.mxu0 0.0
  %3541 = vmatprep.subr.mxu0 0.0
  %3542 = vmatpush2.msra.mxu0 0.0
  %3543 = vmatprep.subr.mxu0 0.0
  %3544 = vmatpush2.msra.mxu0 0.0
  %3545 = vmatprep.subr.mxu0 0.0
  %3546 = vmatpush2.msra.mxu0 0.0
  %3547 = vmatprep.subr.mxu0 0.0
  %3548 = vmatpush2.msra.mxu0 0.0
  %3549 = vmatprep.subr.mxu0 0.0
  %3550 = vmatpush2.msra.mxu0 0.0
  %3551 = vmatprep.subr.mxu0 0.0
  %3552 = vmatpush2.msra.mxu0 0.0
  %3553 = vmatprep.subr.mxu0 0.0
  %3554 = vmatpush2.msra.mxu0 0.0
  %3555 = vmatprep.subr.mxu0 0.0
  %3556 = vmatpush2.msra.mxu0 0.0
  %3557 = vmatprep.mubr.f32.mxu0 0.0
  %3558 = vmatmul.mubr.f32.gmra.mxu0 %v3488
  %v3559 = vpop.f32.mrf.mxu0
  %v3560 = vadd.f32 0.0, %v3559
  %v3561 = vpop.f32.mrf.mxu0
  %3562 = vmatprep.mubr.f32.mxu0 0.0
  %3563 = vmatmul.mubr.f32.gmra.mxu0 %v3491
  %v3564 = vpop.f32.mrf.mxu0
  %v3565 = vadd.f32 0.0, %v3564
  %v3566 = vpop.f32.mrf.mxu0
  %3567 = vdwg.mxu0
  %v3568 = vsel %vm651, %v725, 0.0
  %v3569 = vsel %vm651, %v806, 0.0
  %v3570 = vadd.f32 %v3568, %v3569
  %v3571 = vsel %vm651, %v887, 0.0
  %v3572 = vadd.f32 %v3570, %v3571
  %v3573 = vsel %vm651, %v968, 0.0
  %v3574 = vadd.f32 %v3572, %v3573
  %v3575 = vsel %vm651, %v1049, 0.0
  %v3576 = vadd.f32 %v3574, %v3575
  %v3577 = vsel %vm651, %v1130, 0.0
  %v3578 = vadd.f32 %v3576, %v3577
  %v3579 = vsel %vm651, %v1211, 0.0
  %v3580 = vadd.f32 %v3578, %v3579
  %v3581 = vsel %vm651, %v1292, 0.0
  %v3582 = vadd.f32 %v3580, %v3581
  %v3583 = vsel %vm651, %v1373, 0.0
  %v3584 = vadd.f32 %v3582, %v3583
  %v3585 = vsel %vm651, %v1454, 0.0
  %v3586 = vadd.f32 %v3584, %v3585
  %v3587 = vsel %vm651, %v1535, 0.0
  %v3588 = vadd.f32 %v3586, %v3587
  %v3589 = vsel %vm651, %v1616, 0.0
  %v3590 = vadd.f32 %v3588, %v3589
  %v3591 = vsel %vm651, %v1697, 0.0
  %v3592 = vadd.f32 %v3590, %v3591
  %v3593 = vsel %vm651, %v1778, 0.0
  %v3594 = vadd.f32 %v3592, %v3593
  %v3595 = vsel %vm651, %v1859, 0.0
  %v3596 = vadd.f32 %v3594, %v3595
  %v3597 = vsel %vm651, %v1940, 0.0
  %v3598 = vadd.f32 %v3596, %v3597
  %v3599 = vsel %vm651, %v2021, 0.0
  %v3600 = vadd.f32 %v3598, %v3599
  %v3601 = vsel %vm651, %v2102, 0.0
  %v3602 = vadd.f32 %v3600, %v3601
  %v3603 = vsel %vm651, %v2183, 0.0
  %v3604 = vadd.f32 %v3602, %v3603
  %v3605 = vsel %vm651, %v2264, 0.0
  %v3606 = vadd.f32 %v3604, %v3605
  %v3607 = vsel %vm651, %v2345, 0.0
  %v3608 = vadd.f32 %v3606, %v3607
  %v3609 = vsel %vm651, %v2426, 0.0
  %v3610 = vadd.f32 %v3608, %v3609
  %v3611 = vsel %vm651, %v2507, 0.0
  %v3612 = vadd.f32 %v3610, %v3611
  %v3613 = vsel %vm651, %v2588, 0.0
  %v3614 = vadd.f32 %v3612, %v3613
  %v3615 = vsel %vm651, %v2669, 0.0
  %v3616 = vadd.f32 %v3614, %v3615
  %v3617 = vsel %vm651, %v2750, 0.0
  %v3618 = vadd.f32 %v3616, %v3617
  %v3619 = vsel %vm651, %v2831, 0.0
  %v3620 = vadd.f32 %v3618, %v3619
  %v3621 = vsel %vm651, %v2912, 0.0
  %v3622 = vadd.f32 %v3620, %v3621
  %v3623 = vsel %vm651, %v2993, 0.0
  %v3624 = vadd.f32 %v3622, %v3623
  %v3625 = vsel %vm651, %v3074, 0.0
  %v3626 = vadd.f32 %v3624, %v3625
  %v3627 = vsel %vm651, %v3155, 0.0
  %v3628 = vadd.f32 %v3626, %v3627
  %v3629 = vsel %vm651, %v3236, 0.0
  %v3630 = vadd.f32 %v3628, %v3629
  %v3631 = vsel %vm651, %v3317, 0.0
  %v3632 = vadd.f32 %v3630, %v3631
  %v3633 = vsel %vm651, %v3398, 0.0
  %v3634 = vadd.f32 %v3632, %v3633
  %v3635 = vsel %vm651, %v3479, 0.0
  %v3636 = vadd.f32 %v3634, %v3635
  %v3637 = vsel %vm651, %v3560, 0.0
  %v3638 = vadd.f32 %v3636, %v3637
  %v3639 = vsel %vm651, %v730, 0.0
  %v3640 = vsel %vm651, %v811, 0.0
  %v3641 = vadd.f32 %v3639, %v3640
  %v3642 = vsel %vm651, %v892, 0.0
  %v3643 = vadd.f32 %v3641, %v3642
  %v3644 = vsel %vm651, %v973, 0.0
  %v3645 = vadd.f32 %v3643, %v3644
  %v3646 = vsel %vm651, %v1054, 0.0
  %v3647 = vadd.f32 %v3645, %v3646
  %v3648 = vsel %vm651, %v1135, 0.0
  %v3649 = vadd.f32 %v3647, %v3648
  %v3650 = vsel %vm651, %v1216, 0.0
  %v3651 = vadd.f32 %v3649, %v3650
  %v3652 = vsel %vm651, %v1297, 0.0
  %v3653 = vadd.f32 %v3651, %v3652
  %v3654 = vsel %vm651, %v1378, 0.0
  %v3655 = vadd.f32 %v3653, %v3654
  %v3656 = vsel %vm651, %v1459, 0.0
  %v3657 = vadd.f32 %v3655, %v3656
  %v3658 = vsel %vm651, %v1540, 0.0
  %v3659 = vadd.f32 %v3657, %v3658
  %v3660 = vsel %vm651, %v1621, 0.0
  %v3661 = vadd.f32 %v3659, %v3660
  %v3662 = vsel %vm651, %v1702, 0.0
  %v3663 = vadd.f32 %v3661, %v3662
  %v3664 = vsel %vm651, %v1783, 0.0
  %v3665 = vadd.f32 %v3663, %v3664
  %v3666 = vsel %vm651, %v1864, 0.0
  %v3667 = vadd.f32 %v3665, %v3666
  %v3668 = vsel %vm651, %v1945, 0.0
  %v3669 = vadd.f32 %v3667, %v3668
  %v3670 = vsel %vm651, %v2026, 0.0
  %v3671 = vadd.f32 %v3669, %v3670
  %v3672 = vsel %vm651, %v2107, 0.0
  %v3673 = vadd.f32 %v3671, %v3672
  %v3674 = vsel %vm651, %v2188, 0.0
  %v3675 = vadd.f32 %v3673, %v3674
  %v3676 = vsel %vm651, %v2269, 0.0
  %v3677 = vadd.f32 %v3675, %v3676
  %v3678 = vsel %vm651, %v2350, 0.0
  %v3679 = vadd.f32 %v3677, %v3678
  %v3680 = vsel %vm651, %v2431, 0.0
  %v3681 = vadd.f32 %v3679, %v3680
  %v3682 = vsel %vm651, %v2512, 0.0
  %v3683 = vadd.f32 %v3681, %v3682
  %v3684 = vsel %vm651, %v2593, 0.0
  %v3685 = vadd.f32 %v3683, %v3684
  %v3686 = vsel %vm651, %v2674, 0.0
  %v3687 = vadd.f32 %v3685, %v3686
  %v3688 = vsel %vm651, %v2755, 0.0
  %v3689 = vadd.f32 %v3687, %v3688
  %v3690 = vsel %vm651, %v2836, 0.0
  %v3691 = vadd.f32 %v3689, %v3690
  %v3692 = vsel %vm651, %v2917, 0.0
  %v3693 = vadd.f32 %v3691, %v3692
  %v3694 = vsel %vm651, %v2998, 0.0
  %v3695 = vadd.f32 %v3693, %v3694
  %v3696 = vsel %vm651, %v3079, 0.0
  %v3697 = vadd.f32 %v3695, %v3696
  %v3698 = vsel %vm651, %v3160, 0.0
  %v3699 = vadd.f32 %v3697, %v3698
  %v3700 = vsel %vm651, %v3241, 0.0
  %v3701 = vadd.f32 %v3699, %v3700
  %v3702 = vsel %vm651, %v3322, 0.0
  %v3703 = vadd.f32 %v3701, %v3702
  %v3704 = vsel %vm651, %v3403, 0.0
  %v3705 = vadd.f32 %v3703, %v3704
  %v3706 = vsel %vm651, %v3484, 0.0
  %v3707 = vadd.f32 %v3705, %v3706
  %v3708 = vsel %vm651, %v3565, 0.0
  %v3709 = vadd.f32 %v3707, %v3708
  %v3710 = vld [vmem:[%s4] sm:$0x1]
  %v3712 = vlaneseq
  %v3713 = vshrl.u32 %v3712, 7
  %v3714 = vsub.s32 0, %v3713
  %v3715 = vrot.slane %v3710, %v3714
  %v3717 = vadd.f32 %v3638, %v3715
  %v3718 = vadd.f32 %v3709, %v3715
  %v3719 = vld [vmem:[%s5] sm:$0xff]
  %v3720 = vld [vmem:[%s5 + $0x8] sm:$0xff]
  %v3721 = vadd.f32 %v3717, %v3719
  %v3722 = vadd.f32 %v3718, %v3720
  %3723 = vst.msk [vmem:[%s6] sm:$0xff] %vm651, %v3721
  %3724 = vst.msk [vmem:[%s6 + $0x8] sm:$0xff] %vm651, %v3722
  // Predicated region
  $region26: #{aggressive_conv_to_gestalt.1} parent=0 // pred_check
    _
  $region27: #{aggressive_conv_to_gestalt.1} parent=0 // pred_check_branch
    %3726 = sbr.rel (0) target = $region29
  $region28: #{aggressive_conv_to_gestalt.1} parent=0 // pred_region
    _
  $region29: #{aggressive_conv_to_gestalt.1} parent=0 // pred_fallthru
    _
  // Predicated region
  $region30: #{aggressive_conv_to_gestalt.1} parent=0 // pred_check
    _
  $region31: #{aggressive_conv_to_gestalt.1} parent=0 // pred_check_branch
    %3728 = sbr.rel (0) target = $region33
  $region32: #{aggressive_conv_to_gestalt.1} parent=0 // pred_region
    _
  $region33: #{aggressive_conv_to_gestalt.1} parent=0 // pred_fallthru
    _

</llo_original>
